<compile_context>
chip_gen: v5e
topology: v5e:2x2
jax: 0.10.0
libtpu: 0.0.40
codegen_flags: <defaults>
</compile_context>

<pallas_src>
import jax
import jax.numpy as jnp
import numpy as np
from jax.experimental import pallas as pl
from jax.experimental.pallas import tpu as pltpu

IN_DIM = 3 * 218 * 178       # 116412, fixed by the module's first Linear
HIDDEN = 100
TK = 14592                   # reduction tile (multiple of 128)
KPC = 8                      # number of reduction tiles
D_PAD = KPC * TK             # 116736 -> only 324 zero-padded rows (~0.3%)
NEG_SLOPE = 0.2              # nn.LeakyReLU(0.2)
EPS = 1e-5                   # nn.LayerNorm default eps


def _disc_kernel(x_ref, w1t_ref, b1_ref, gamma_ref, beta_ref, w2_ref, b2_ref,
                 out_ref, acc_ref):
    """Fused Linear(IN_DIM,100) reduction + epilogue.

    Grid is 1-D over the K tiles.  acc_ref is a resident (B, HIDDEN) f32
    accumulator; on the last K step we run the cheap epilogue and store the
    (B, 1) sigmoid output.
    """
    k = pl.program_id(0)

    @pl.when(k == 0)
    def _():
        acc_ref[...] = jnp.zeros_like(acc_ref)

    # x tile: (B, TK), W1 tile (transposed layout): (HIDDEN, TK).
    # Contract the last dims (trans_b form) -> (B, HIDDEN) on the MXU.
    acc_ref[...] += jax.lax.dot_general(
        x_ref[...], w1t_ref[...],
        dimension_numbers=(((1,), (1,)), ((), ())),
        preferred_element_type=jnp.float32)

    @pl.when(k == pl.num_programs(0) - 1)
    def _():
        h = acc_ref[...] + b1_ref[...]                      # bias    (B, HIDDEN)
        h = jnp.where(h >= 0, h, NEG_SLOPE * h)             # LeakyReLU(0.2)

        n = float(HIDDEN)                                   # LayerNorm(100)
        mean = jnp.sum(h, axis=-1, keepdims=True) / n
        diff = h - mean
        var = jnp.sum(diff * diff, axis=-1, keepdims=True) / n
        hn = diff * jax.lax.rsqrt(var + EPS) * gamma_ref[...] + beta_ref[...]

        # Linear(100, 1): row-wise dot with the single w2 row, plus bias.
        logit = jnp.sum(hn * w2_ref[...], axis=-1, keepdims=True) + b2_ref[...]
        out_ref[...] = jax.nn.sigmoid(logit)                # (B, 1)


def prepare_params(w1, b1, gamma, beta, w2, b2):
    """One-time parameter setup (outside the hot path).

    W1 is stored transposed, (HIDDEN, D_PAD), matching PyTorch's native
    (out_features, in_features) layout, zero-padded along the feature axis so
    the padded rows contribute nothing to the reduction.
    """
    w1t = (jnp.zeros((HIDDEN, D_PAD), jnp.float32)
           .at[:, :IN_DIM].set(jnp.asarray(w1, jnp.float32).T))
    return {
        "w1t": w1t,                                             # (100, D_PAD)
        "b1": jnp.asarray(b1, jnp.float32).reshape(1, HIDDEN),  # (1, 100)
        "gamma": jnp.asarray(gamma, jnp.float32).reshape(1, HIDDEN),
        "beta": jnp.asarray(beta, jnp.float32).reshape(1, HIDDEN),
        "w2": jnp.asarray(w2, jnp.float32).reshape(1, HIDDEN),  # (1, 100)
        "b2": jnp.asarray(b2, jnp.float32).reshape(1, 1),       # (1, 1)
    }


def _make_forward(w1_buffer_depth):
    """Build the jitted forward.  w1_buffer_depth=None -> default 2-deep
    pipelining; an int requests pl.Buffered(depth) on the W1 stream."""
    if w1_buffer_depth is None:
        w1_spec = pl.BlockSpec((HIDDEN, TK), lambda k: (0, k))
    else:
        w1_spec = pl.BlockSpec((HIDDEN, TK), lambda k: (0, k),
                               pipeline_mode=pl.Buffered(w1_buffer_depth))

    @jax.jit
    def forward(x_nchw, params):
        B = x_nchw.shape[0]
        x = x_nchw.reshape(B, IN_DIM)                       # nn.Flatten (row-major NCHW)
        if x.dtype != jnp.float32:
            x = x.astype(jnp.float32)
        xp = jnp.pad(x, ((0, 0), (0, D_PAD - IN_DIM)))      # only 324 extra columns

        small = pl.BlockSpec((1, HIDDEN), lambda k: (0, 0))  # resident tiny params
        out = pl.pallas_call(
            _disc_kernel,
            out_shape=jax.ShapeDtypeStruct((B, 1), jnp.float32),
            grid_spec=pltpu.PrefetchScalarGridSpec(
                num_scalar_prefetch=0,
                grid=(KPC,),
                in_specs=[
                    pl.BlockSpec((B, TK), lambda k: (0, k)),       # x tile
                    w1_spec,                                       # W1^T tile
                    small,                                         # b1
                    small,                                         # gamma
                    small,                                         # beta
                    small,                                         # w2 row
                    pl.BlockSpec((1, 1), lambda k: (0, 0)),        # b2
                ],
                out_specs=pl.BlockSpec((B, 1), lambda k: (0, 0)),
                scratch_shapes=[pltpu.VMEM((B, HIDDEN), jnp.float32)],
            ),
            compiler_params=pltpu.CompilerParams(
                dimension_semantics=("arbitrary",),
                vmem_limit_bytes=40 * 1024 * 1024,
            ),
        )(xp, params["w1t"], params["b1"], params["gamma"], params["beta"],
          params["w2"], params["b2"])
        return out                                          # (B, 1)

    return forward


def _reference_forward(x_nchw, w1, b1, gamma, beta, w2, b2):
    B = x_nchw.shape[0]
    x = x_nchw.reshape(B, IN_DIM).astype(jnp.float32)
    h = x @ w1 + b1
    h = jnp.where(h >= 0, h, NEG_SLOPE * h)
    mean = jnp.mean(h, axis=-1, keepdims=True)
    var = jnp.mean((h - mean) ** 2, axis=-1, keepdims=True)
    hn = (h - mean) * jax.lax.rsqrt(var + EPS) * gamma + beta
    return jax.nn.sigmoid(hn @ w2 + b2)


if __name__ == "__main__":
    key = jax.random.PRNGKey(0)
    kx, kw1, kb1, kw2, kb2 = jax.random.split(key, 5)

    B = 2
    # Input shape is forced by the module: Flatten + Linear(3*218*178, 100).
    x = jax.random.normal(kx, (B, 3, 218, 178), dtype=jnp.float32)

    # Deterministic parameter init (PyTorch-default-style uniform bounds).
    bound1 = 1.0 / np.sqrt(IN_DIM)
    w1 = jax.random.uniform(kw1, (IN_DIM, HIDDEN), jnp.float32, -bound1, bound1)
    b1 = jax.random.uniform(kb1, (HIDDEN,), jnp.float32, -bound1, bound1)
    gamma = jnp.ones((HIDDEN,), jnp.float32)     # LayerNorm weight init
    beta = jnp.zeros((HIDDEN,), jnp.float32)     # LayerNorm bias init
    bound2 = 1.0 / np.sqrt(HIDDEN)
    w2 = jax.random.uniform(kw2, (HIDDEN, 1), jnp.float32, -bound2, bound2)
    b2 = jax.random.uniform(kb2, (1,), jnp.float32, -bound2, bound2)

    # One-time setup (outside the per-call hot path): transposed + padded W1.
    params = prepare_params(w1, b1, gamma, beta, w2, b2)
    params = jax.tree_util.tree_map(jax.block_until_ready, params)

    # Prefer the 3-deep-buffered W1 stream; fall back to the default
    # double-buffered pipeline if pipeline_mode isn't supported here.
    out = None
    for depth in (3, None):
        try:
            forward = _make_forward(depth)
            out = jax.block_until_ready(forward(x, params))
            break
        except Exception:
            if depth is None:
                raise

    ref = _reference_forward(x, w1, b1, gamma, beta, w2, b2)
    np.testing.assert_allclose(np.asarray(out), np.asarray(ref),
                               rtol=1e-4, atol=1e-4)
    assert out.shape == (B, 1)
    print("KERNEL_OK")
</pallas_src>

<mosaic_0001>
module attributes {stable_mosaic.version = 11 : i64} {
  func.func @_disc_kernel(%arg0: i32, %arg1: memref<2x14592xf32, #tpu.memory_space<vmem>>, %arg2: memref<100x14592xf32, #tpu.memory_space<vmem>>, %arg3: memref<1x100xf32, #tpu.memory_space<vmem>>, %arg4: memref<1x100xf32, #tpu.memory_space<vmem>>, %arg5: memref<1x100xf32, #tpu.memory_space<vmem>>, %arg6: memref<1x100xf32, #tpu.memory_space<vmem>>, %arg7: memref<1x1xf32, #tpu.memory_space<vmem>>, %arg8: memref<2x1xf32, #tpu.memory_space<vmem>>, %arg9: memref<2x100xf32, #tpu.memory_space<vmem>>) attributes {dimension_semantics = [#tpu.dimension_semantics<arbitrary>], iteration_bounds = array<i64: 8>, scalar_prefetch = 0 : i64, scratch_operands = 1 : i64, tpu.core_type = #tpu.core_type<tc>, window_params = [{transform_indices = @transform_0, window_bounds = array<i64: 2, 14592>}, {transform_indices = @transform_1, window_bounds = array<i64: 100, 14592>}, {pipeline_mode = #tpu.pipeline_mode<synchronous>, transform_indices = @transform_2, window_bounds = array<i64: 1, 100>}, {pipeline_mode = #tpu.pipeline_mode<synchronous>, transform_indices = @transform_3, window_bounds = array<i64: 1, 100>}, {pipeline_mode = #tpu.pipeline_mode<synchronous>, transform_indices = @transform_4, window_bounds = array<i64: 1, 100>}, {pipeline_mode = #tpu.pipeline_mode<synchronous>, transform_indices = @transform_5, window_bounds = array<i64: 1, 100>}, {pipeline_mode = #tpu.pipeline_mode<synchronous>, transform_indices = @transform_6, window_bounds = array<i64: 1, 1>}, {pipeline_mode = #tpu.pipeline_mode<synchronous>, transform_indices = @transform_7, window_bounds = array<i64: 2, 1>}]} {
    %c0_i32 = arith.constant 0 : i32
    %0 = arith.cmpi eq, %arg0, %c0_i32 : i32
    %1 = arith.extui %0 : i1 to i32
    %c0_i32_0 = arith.constant 0 : i32
    %2 = arith.cmpi ne, %1, %c0_i32_0 : i32
    scf.if %2 {
      %cst_9 = arith.constant 0.000000e+00 : f32
      %12 = vector.broadcast %cst_9 : f32 to vector<2x100xf32>
      %c0_10 = arith.constant 0 : index
      %c0_11 = arith.constant 0 : index
      %13 = vector.load %arg9[%c0_10, %c0_11] : memref<2x100xf32, #tpu.memory_space<vmem>>, vector<2x100xf32>
      tpu.vector_store %arg9[%c0_10, %c0_11], %12 {strides = array<i32>} : memref<2x100xf32, #tpu.memory_space<vmem>>, vector<2x100xf32>,
    } else {
    }
    %c0 = arith.constant 0 : index
    %c0_1 = arith.constant 0 : index
    %3 = vector.load %arg9[%c0, %c0_1] : memref<2x100xf32, #tpu.memory_space<vmem>>, vector<2x100xf32>
    %c0_2 = arith.constant 0 : index
    %c0_3 = arith.constant 0 : index
    %4 = vector.load %arg1[%c0_2, %c0_3] : memref<2x14592xf32, #tpu.memory_space<vmem>>, vector<2x14592xf32>
    %c0_4 = arith.constant 0 : index
    %c0_5 = arith.constant 0 : index
    %5 = vector.load %arg2[%c0_4, %c0_5] : memref<100x14592xf32, #tpu.memory_space<vmem>>, vector<100x14592xf32>
    %cst = arith.constant dense<0.000000e+00> : vector<2x100xf32>
    %6 = tpu.matmul %4, %5, %cst {dimension_numbers = #tpu.dot_dimension_numbers<[1], [1], [0], [0], [0, 0, 1, 0], [], []>} : vector<2x14592xf32>, vector<100x14592xf32>, vector<2x100xf32> -> vector<2x100xf32>
    %7 = arith.addf %3, %6 : vector<2x100xf32>
    %c0_6 = arith.constant 0 : index
    %c0_7 = arith.constant 0 : index
    %8 = vector.load %arg9[%c0_6, %c0_7] : memref<2x100xf32, #tpu.memory_space<vmem>>, vector<2x100xf32>
    tpu.vector_store %arg9[%c0_6, %c0_7], %7 {strides = array<i32>} : memref<2x100xf32, #tpu.memory_space<vmem>>, vector<2x100xf32>,
    %c7_i32 = arith.constant 7 : i32
    %9 = arith.cmpi eq, %arg0, %c7_i32 : i32
    %10 = arith.extui %9 : i1 to i32
    %c0_i32_8 = arith.constant 0 : i32
    %11 = arith.cmpi ne, %10, %c0_i32_8 : i32
    scf.if %11 {
      %c0_9 = arith.constant 0 : index
      %c0_10 = arith.constant 0 : index
      %12 = vector.load %arg9[%c0_9, %c0_10] : memref<2x100xf32, #tpu.memory_space<vmem>>, vector<2x100xf32>
      %c0_11 = arith.constant 0 : index
      %c0_12 = arith.constant 0 : index
      %13 = vector.load %arg3[%c0_11, %c0_12] : memref<1x100xf32, #tpu.memory_space<vmem>>, vector<1x100xf32>
      %14 = vector.broadcast %13 : vector<1x100xf32> to vector<2x100xf32>
      %15 = arith.addf %12, %14 : vector<2x100xf32>
      %cst_13 = arith.constant 0.000000e+00 : f32
      %16 = vector.broadcast %cst_13 : f32 to vector<2x100xf32>
      %17 = arith.cmpf oge, %15, %16 : vector<2x100xf32>
      %cst_14 = arith.constant 2.000000e-01 : f32
      %18 = vector.broadcast %cst_14 : f32 to vector<2x100xf32>
      %19 = arith.mulf %18, %15 : vector<2x100xf32>
      %20 = arith.select %17, %15, %19 : vector<2x100xi1>, vector<2x100xf32>
      %cst_15 = arith.constant dense<0.000000e+00> : vector<2xf32>
      %21 = vector.multi_reduction <add>, %20, %cst_15 [1] : vector<2x100xf32> to vector<2xf32>
      %22 = vector.shape_cast %21 : vector<2xf32> to vector<2x1xf32>
      %cst_16 = arith.constant 1.000000e+02 : f32
      %23 = vector.broadcast %cst_16 : f32 to vector<2x1xf32>
      %24 = arith.divf %22, %23 : vector<2x1xf32>
      %25 = vector.broadcast %24 : vector<2x1xf32> to vector<2x100xf32>
      %26 = arith.subf %20, %25 : vector<2x100xf32>
      %27 = arith.mulf %26, %26 : vector<2x100xf32>
      %cst_17 = arith.constant dense<0.000000e+00> : vector<2xf32>
      %28 = vector.multi_reduction <add>, %27, %cst_17 [1] : vector<2x100xf32> to vector<2xf32>
      %29 = vector.shape_cast %28 : vector<2xf32> to vector<2x1xf32>
      %cst_18 = arith.constant 1.000000e+02 : f32
      %30 = vector.broadcast %cst_18 : f32 to vector<2x1xf32>
      %31 = arith.divf %29, %30 : vector<2x1xf32>
      %cst_19 = arith.constant 9.99999974E-6 : f32
      %32 = vector.broadcast %cst_19 : f32 to vector<2x1xf32>
      %33 = arith.addf %31, %32 : vector<2x1xf32>
      %34 = math.rsqrt %33 : vector<2x1xf32>
      %35 = vector.broadcast %34 : vector<2x1xf32> to vector<2x100xf32>
      %36 = arith.mulf %26, %35 : vector<2x100xf32>
      %c0_20 = arith.constant 0 : index
      %c0_21 = arith.constant 0 : index
      %37 = vector.load %arg4[%c0_20, %c0_21] : memref<1x100xf32, #tpu.memory_space<vmem>>, vector<1x100xf32>
      %38 = vector.broadcast %37 : vector<1x100xf32> to vector<2x100xf32>
      %39 = arith.mulf %36, %38 : vector<2x100xf32>
      %c0_22 = arith.constant 0 : index
      %c0_23 = arith.constant 0 : index
      %40 = vector.load %arg5[%c0_22, %c0_23] : memref<1x100xf32, #tpu.memory_space<vmem>>, vector<1x100xf32>
      %41 = vector.broadcast %40 : vector<1x100xf32> to vector<2x100xf32>
      %42 = arith.addf %39, %41 : vector<2x100xf32>
      %c0_24 = arith.constant 0 : index
      %c0_25 = arith.constant 0 : index
      %43 = vector.load %arg6[%c0_24, %c0_25] : memref<1x100xf32, #tpu.memory_space<vmem>>, vector<1x100xf32>
      %44 = vector.broadcast %43 : vector<1x100xf32> to vector<2x100xf32>
      %45 = arith.mulf %42, %44 : vector<2x100xf32>
      %cst_26 = arith.constant dense<0.000000e+00> : vector<2xf32>
      %46 = vector.multi_reduction <add>, %45, %cst_26 [1] : vector<2x100xf32> to vector<2xf32>
      %47 = vector.shape_cast %46 : vector<2xf32> to vector<2x1xf32>
      %c0_27 = arith.constant 0 : index
      %c0_28 = arith.constant 0 : index
      %48 = vector.load %arg7[%c0_27, %c0_28] : memref<1x1xf32, #tpu.memory_space<vmem>>, vector<1x1xf32>
      %49 = vector.broadcast %48 : vector<1x1xf32> to vector<2x1xf32>
      %50 = arith.addf %47, %49 : vector<2x1xf32>
      %51 = arith.negf %50 : vector<2x1xf32>
      %52 = math.exp %51 : vector<2x1xf32>
      %cst_29 = arith.constant 1.000000e+00 : f32
      %53 = vector.broadcast %cst_29 : f32 to vector<2x1xf32>
      %54 = arith.addf %53, %52 : vector<2x1xf32>
      %55 = arith.divf %53, %54 : vector<2x1xf32>
      %c0_30 = arith.constant 0 : index
      %c0_31 = arith.constant 0 : index
      %56 = vector.load %arg8[%c0_30, %c0_31] : memref<2x1xf32, #tpu.memory_space<vmem>>, vector<2x1xf32>
      tpu.vector_store %arg8[%c0_30, %c0_31], %55 {strides = array<i32>} : memref<2x1xf32, #tpu.memory_space<vmem>>, vector<2x1xf32>,
    } else {
    }
    return
  }
  func.func @transform_0(%arg0: i32) -> (i32, i32) {
    %c0_i32 = arith.constant 0 : i32
    %c0_i32_0 = arith.constant 0 : i32
    return %c0_i32, %arg0 : i32, i32
  }
  func.func @transform_1(%arg0: i32) -> (i32, i32) {
    %c0_i32 = arith.constant 0 : i32
    %c0_i32_0 = arith.constant 0 : i32
    return %c0_i32, %arg0 : i32, i32
  }
  func.func @transform_2(%arg0: i32) -> (i32, i32) {
    %c0_i32 = arith.constant 0 : i32
    %c0_i32_0 = arith.constant 0 : i32
    %c0_i32_1 = arith.constant 0 : i32
    return %c0_i32, %c0_i32_0 : i32, i32
  }
  func.func @transform_3(%arg0: i32) -> (i32, i32) {
    %c0_i32 = arith.constant 0 : i32
    %c0_i32_0 = arith.constant 0 : i32
    %c0_i32_1 = arith.constant 0 : i32
    return %c0_i32, %c0_i32_0 : i32, i32
  }
  func.func @transform_4(%arg0: i32) -> (i32, i32) {
    %c0_i32 = arith.constant 0 : i32
    %c0_i32_0 = arith.constant 0 : i32
    %c0_i32_1 = arith.constant 0 : i32
    return %c0_i32, %c0_i32_0 : i32, i32
  }
  func.func @transform_5(%arg0: i32) -> (i32, i32) {
    %c0_i32 = arith.constant 0 : i32
    %c0_i32_0 = arith.constant 0 : i32
    %c0_i32_1 = arith.constant 0 : i32
    return %c0_i32, %c0_i32_0 : i32, i32
  }
  func.func @transform_6(%arg0: i32) -> (i32, i32) {
    %c0_i32 = arith.constant 0 : i32
    %c0_i32_0 = arith.constant 0 : i32
    %c0_i32_1 = arith.constant 0 : i32
    return %c0_i32, %c0_i32_0 : i32, i32
  }
  func.func @transform_7(%arg0: i32) -> (i32, i32) {
    %c0_i32 = arith.constant 0 : i32
    %c0_i32_0 = arith.constant 0 : i32
    %c0_i32_1 = arith.constant 0 : i32
    return %c0_i32, %c0_i32_0 : i32, i32
  }
}

</mosaic_0001>

<llo_original>
// kernel: forward.1
$region0: #{forward.1}
  #allocation0 [shape = 'u32[]', space=smem, size = 0x4, offset = 0x4, fixed_abs, tag = 'smem constant byte address 0x4 - core index']
  #allocation1 [shape = 'u32[72,128]{1,0:T(1,128)}', space=vmem, size = 0x9000, scoped, tag = 'internal scratch']
  #allocation2 [shape = 'f32[2,100]{1,0:T(2,128)}', space=vmem, size = 0x400, scoped, tag = 'scratch operand']
  #allocation3 [shape = 'f32[1,1]{1,0:T(1,128)S(1)}', space=vmem, size = 0x200, scoped, tag = 'scoped memory for forward.1']
  %s0 = inlined_call_operand.vmem [shape: f32[2,116736], index: 0, kind: input, shape index: {}]
  %s1 = inlined_call_operand.hbm [shape: f32[100,116736], index: 1, kind: input, shape index: {}]
  %s2 = inlined_call_operand.vmem [shape: f32[1,100], index: 2, kind: input, shape index: {}]
  %s3 = inlined_call_operand.vmem [shape: f32[1,100], index: 3, kind: input, shape index: {}]
  %s4 = inlined_call_operand.vmem [shape: f32[1,100], index: 4, kind: input, shape index: {}]
  %s5 = inlined_call_operand.vmem [shape: f32[1,100], index: 5, kind: input, shape index: {}]
  %s6 = inlined_call_operand.<no memory space> [shape: f32[1,1], index: 6, kind: input, shape index: {}]
  %s7 = inlined_call_operand.vmem [shape: f32[2,1], index: 7, kind: output, shape index: {}]
  %s8 = sld [smem:[#allocation0]]
  $region73: #{forward.1} parent=0
    _
  %s10 = ssub.s32 1, %s8
  %s11 = scalar_select 0, %s10, %s8
  %v12 = vstv %s6
  %13 = vst [vmem:[#allocation3] sm:$0x1] %v12
  $region1: #{forward.1} parent=0
    #allocation4 [shape = 'u8[12140544]{0}', space=vmem, size = 0xb94000, scoped, tag = 'input window, operand 1']
    #allocation5 [shape = 's32[2]{0}', space=sflag, size = 0x8, scoped, tag = 'scoped memory for forward.1']
    %14 = vsyncpa [#allocation5], 0
    %s15 = scalar_lea.sflag [#allocation5], 1
    %16 = vsyncpa %s15, 0
    loop: start=0, step=1, limit=10
    $region2: #{forward.1} parent=1 // loop_pre_header
      _
    $region3: #{forward.1} parent=1 // loop_header
      %s18 = sphi 0, %s22
      %p19 = scmp.ge.s32.totalorder %s18, 10
      %s28 = sphi 0, %s30
      %s31 = sphi 0, %s28
      %s32 = sphi 0, %s31
      %s48 = sphi 0, %s32
      %s54 = sphi 0, %s56
      %s57 = sphi 0, %s54
      %s58 = sphi 0, %s57
      %s74 = sphi 0, %s58
      %s78 = sphi 0, %s78
      %s80 = sphi 0, %s78
      %s81 = sphi 0, %s80
      %s95 = sphi 0, %s81
      %s99 = sphi 0, %s99
      %s101 = sphi 0, %s99
      %s102 = sphi 0, %s101
      %s116 = sphi 0, %s102
      %s120 = sphi 0, %s120
      %s122 = sphi 0, %s120
      %s123 = sphi 0, %s122
      %s137 = sphi 0, %s123
      %s141 = sphi 0, %s141
      %s143 = sphi 0, %s141
      %s144 = sphi 0, %s143
      %s158 = sphi 0, %s144
      %s162 = sphi 0, %s162
      %s164 = sphi 0, %s162
      %s165 = sphi 0, %s164
      %s179 = sphi 0, %s165
      %s183 = sphi 0, %s183
      %s185 = sphi 0, %s183
      %s186 = sphi 0, %s185
      %s200 = sphi 0, %s186
    $region4: #{forward.1} parent=1 // loop_header_branch
      %21 = sbr.rel (%p19) target = $region8
    $region5: #{forward.1} parent=1 // loop_body
      %s23 = ssub.s32 %s18, 1
      %s24 = ssub.s32 %s18, 2
      %s25 = sadd.s32 %s18, 1
      %s26 = ssub.s32 %s18, %s25
      %p27 = scmp.eq.s32.totalorder %s26, 0
      %s29 = sadd.s32 %s28, 1
      %s30 = scalar_select %p27, %s28, %s29
      %p33 = pneg %p27
      %p34 = scmp.eq.s32.totalorder %s18, 7
      %p35 = por %p33, %p34
      %p36 = scmp.ne.s32.totalorder %s28, %s31
      %p37 = scmp.eq.s32.totalorder %s18, 0
      %p38 = por %p36, %p37
      %p39 = scmp.ne.s32.totalorder %s28, %s31
      %p40 = scmp.eq.s32.totalorder %s23, 7
      %p41 = por %p39, %p40
      %p42 = scmp.ne.s32.totalorder %s31, %s32
      %p43 = scmp.eq.s32.totalorder %s23, 0
      %p44 = por %p42, %p43
      %p45 = scmp.ne.s32.totalorder %s31, %s32
      %p46 = scmp.eq.s32.totalorder %s24, 7
      %p47 = por %p45, %p46
      %p49 = scmp.ne.s32.totalorder %s32, %s48
      %p50 = scmp.eq.s32.totalorder %s24, 0
      %p51 = por %p49, %p50
      %s52 = ssub.s32 %s18, %s25
      %p53 = scmp.eq.s32.totalorder %s52, 0
      %s55 = sadd.s32 %s54, 1
      %s56 = scalar_select %p53, %s54, %s55
      %p59 = pneg %p53
      %p60 = scmp.eq.s32.totalorder %s18, 7
      %p61 = por %p59, %p60
      %p62 = scmp.ne.s32.totalorder %s54, %s57
      %p63 = scmp.eq.s32.totalorder %s18, 0
      %p64 = por %p62, %p63
      %p65 = scmp.ne.s32.totalorder %s54, %s57
      %p66 = scmp.eq.s32.totalorder %s23, 7
      %p67 = por %p65, %p66
      %p68 = scmp.ne.s32.totalorder %s57, %s58
      %p69 = scmp.eq.s32.totalorder %s23, 0
      %p70 = por %p68, %p69
      %p71 = scmp.ne.s32.totalorder %s57, %s58
      %p72 = scmp.eq.s32.totalorder %s24, 7
      %p73 = por %p71, %p72
      %p75 = scmp.ne.s32.totalorder %s58, %s74
      %p76 = scmp.eq.s32.totalorder %s24, 0
      %p77 = por %p75, %p76
      %s79 = sadd.s32 %s78, 1
      %p82 = scmp.eq.s32.totalorder %s18, 7
      %p83 = scmp.ne.s32.totalorder %s78, %s80
      %p84 = scmp.eq.s32.totalorder %s18, 0
      %p85 = por %p83, %p84
      %p86 = scmp.ne.s32.totalorder %s78, %s80
      %p87 = scmp.eq.s32.totalorder %s23, 7
      %p88 = por %p86, %p87
      %p89 = scmp.ne.s32.totalorder %s80, %s81
      %p90 = scmp.eq.s32.totalorder %s23, 0
      %p91 = por %p89, %p90
      %p92 = scmp.ne.s32.totalorder %s80, %s81
      %p93 = scmp.eq.s32.totalorder %s24, 7
      %p94 = por %p92, %p93
      %p96 = scmp.ne.s32.totalorder %s81, %s95
      %p97 = scmp.eq.s32.totalorder %s24, 0
      %p98 = por %p96, %p97
      %s100 = sadd.s32 %s99, 1
      %p103 = scmp.eq.s32.totalorder %s18, 7
      %p104 = scmp.ne.s32.totalorder %s99, %s101
      %p105 = scmp.eq.s32.totalorder %s18, 0
      %p106 = por %p104, %p105
      %p107 = scmp.ne.s32.totalorder %s99, %s101
      %p108 = scmp.eq.s32.totalorder %s23, 7
      %p109 = por %p107, %p108
      %p110 = scmp.ne.s32.totalorder %s101, %s102
      %p111 = scmp.eq.s32.totalorder %s23, 0
      %p112 = por %p110, %p111
      %p113 = scmp.ne.s32.totalorder %s101, %s102
      %p114 = scmp.eq.s32.totalorder %s24, 7
      %p115 = por %p113, %p114
      %p117 = scmp.ne.s32.totalorder %s102, %s116
      %p118 = scmp.eq.s32.totalorder %s24, 0
      %p119 = por %p117, %p118
      %s121 = sadd.s32 %s120, 1
      %p124 = scmp.eq.s32.totalorder %s18, 7
      %p125 = scmp.ne.s32.totalorder %s120, %s122
      %p126 = scmp.eq.s32.totalorder %s18, 0
      %p127 = por %p125, %p126
      %p128 = scmp.ne.s32.totalorder %s120, %s122
      %p129 = scmp.eq.s32.totalorder %s23, 7
      %p130 = por %p128, %p129
      %p131 = scmp.ne.s32.totalorder %s122, %s123
      %p132 = scmp.eq.s32.totalorder %s23, 0
      %p133 = por %p131, %p132
      %p134 = scmp.ne.s32.totalorder %s122, %s123
      %p135 = scmp.eq.s32.totalorder %s24, 7
      %p136 = por %p134, %p135
      %p138 = scmp.ne.s32.totalorder %s123, %s137
      %p139 = scmp.eq.s32.totalorder %s24, 0
      %p140 = por %p138, %p139
      %s142 = sadd.s32 %s141, 1
      %p145 = scmp.eq.s32.totalorder %s18, 7
      %p146 = scmp.ne.s32.totalorder %s141, %s143
      %p147 = scmp.eq.s32.totalorder %s18, 0
      %p148 = por %p146, %p147
      %p149 = scmp.ne.s32.totalorder %s141, %s143
      %p150 = scmp.eq.s32.totalorder %s23, 7
      %p151 = por %p149, %p150
      %p152 = scmp.ne.s32.totalorder %s143, %s144
      %p153 = scmp.eq.s32.totalorder %s23, 0
      %p154 = por %p152, %p153
      %p155 = scmp.ne.s32.totalorder %s143, %s144
      %p156 = scmp.eq.s32.totalorder %s24, 7
      %p157 = por %p155, %p156
      %p159 = scmp.ne.s32.totalorder %s144, %s158
      %p160 = scmp.eq.s32.totalorder %s24, 0
      %p161 = por %p159, %p160
      %s163 = sadd.s32 %s162, 1
      %p166 = scmp.eq.s32.totalorder %s18, 7
      %p167 = scmp.ne.s32.totalorder %s162, %s164
      %p168 = scmp.eq.s32.totalorder %s18, 0
      %p169 = por %p167, %p168
      %p170 = scmp.ne.s32.totalorder %s162, %s164
      %p171 = scmp.eq.s32.totalorder %s23, 7
      %p172 = por %p170, %p171
      %p173 = scmp.ne.s32.totalorder %s164, %s165
      %p174 = scmp.eq.s32.totalorder %s23, 0
      %p175 = por %p173, %p174
      %p176 = scmp.ne.s32.totalorder %s164, %s165
      %p177 = scmp.eq.s32.totalorder %s24, 7
      %p178 = por %p176, %p177
      %p180 = scmp.ne.s32.totalorder %s165, %s179
      %p181 = scmp.eq.s32.totalorder %s24, 0
      %p182 = por %p180, %p181
      %s184 = sadd.s32 %s183, 1
      %p187 = scmp.eq.s32.totalorder %s18, 7
      %p188 = scmp.ne.s32.totalorder %s183, %s185
      %p189 = scmp.eq.s32.totalorder %s18, 0
      %p190 = por %p188, %p189
      %p191 = scmp.ne.s32.totalorder %s183, %s185
      %p192 = scmp.eq.s32.totalorder %s23, 7
      %p193 = por %p191, %p192
      %p194 = scmp.ne.s32.totalorder %s185, %s186
      %p195 = scmp.eq.s32.totalorder %s23, 0
      %p196 = por %p194, %p195
      %p197 = scmp.ne.s32.totalorder %s185, %s186
      %p198 = scmp.eq.s32.totalorder %s24, 7
      %p199 = por %p197, %p198
      %p201 = scmp.ne.s32.totalorder %s186, %s200
      %p202 = scmp.eq.s32.totalorder %s24, 0
      %p203 = por %p201, %p202
      %p204 = scmp.le.s32.totalorder 1, %s18
      %p205 = scmp.lt.s32.totalorder %s18, 9
      %p206 = pnand %p204, %p205
      %p207 = pneg %p206
      // Predicated region
      $region9: #{forward.1} parent=5 // pred_check
        _
      $region10: #{forward.1} parent=5 // pred_check_branch
        %209 = sbr.rel (%p206) target = $region12
      $region11: #{forward.1} parent=5 // pred_region
        %s210 = ssub.s32 %s18, 1
        // Predicated region
        $region13: #{forward.1} parent=11 // pred_check
          %p211 = pneg %p91
        $region14: #{forward.1} parent=11 // pred_check_branch
          %213 = sbr.rel (%p211) target = $region16
        $region15: #{forward.1} parent=11 // pred_region
          _
        $region16: #{forward.1} parent=11 // pred_fallthru
          _
        // Predicated region
        $region17: #{forward.1} parent=11 // pred_check
          %p214 = pneg %p112
        $region18: #{forward.1} parent=11 // pred_check_branch
          %216 = sbr.rel (%p214) target = $region20
        $region19: #{forward.1} parent=11 // pred_region
          _
        $region20: #{forward.1} parent=11 // pred_fallthru
          _
        // Predicated region
        $region21: #{forward.1} parent=11 // pred_check
          %p217 = pneg %p133
        $region22: #{forward.1} parent=11 // pred_check_branch
          %219 = sbr.rel (%p217) target = $region24
        $region23: #{forward.1} parent=11 // pred_region
          _
        $region24: #{forward.1} parent=11 // pred_fallthru
          _
        // Predicated region
        $region25: #{forward.1} parent=11 // pred_check
          %p220 = pneg %p154
        $region26: #{forward.1} parent=11 // pred_check_branch
          %222 = sbr.rel (%p220) target = $region28
        $region27: #{forward.1} parent=11 // pred_region
          _
        $region28: #{forward.1} parent=11 // pred_fallthru
          _
        // Predicated region
        $region29: #{forward.1} parent=11 // pred_check
          %p223 = pneg %p175
        $region30: #{forward.1} parent=11 // pred_check_branch
          %225 = sbr.rel (%p223) target = $region32
        $region31: #{forward.1} parent=11 // pred_region
          _
        $region32: #{forward.1} parent=11 // pred_fallthru
          _
      $region12: #{forward.1} parent=5 // pred_fallthru
        _
      %p226 = scmp.lt.s32.totalorder %s18, 8
      // Predicated region
      $region33: #{forward.1} parent=5 // pred_check
        %p227 = pneg %p226
      $region34: #{forward.1} parent=5 // pred_check_branch
        %229 = sbr.rel (%p227) target = $region36
      $region35: #{forward.1} parent=5 // pred_region
        // Predicated region
        $region37: #{forward.1} parent=35 // pred_check
          %p230 = pneg %p38
        $region38: #{forward.1} parent=35 // pred_check_branch
          %232 = sbr.rel (%p230) target = $region40
        $region39: #{forward.1} parent=35 // pred_region
          %s233 = smul.u32 114, %s18
          %p234 = scmp.lt.s32.totalorder %s233, 911
          %s235 = scalar_select %p234, %s233, 911
          %s236 = smul.addr %s235, 2
          %s237 = scalar_lea.vmem %s0, %s236
          %s238 = smul.u32 114, %s18
        $region40: #{forward.1} parent=35 // pred_fallthru
          _
        // Predicated region
        $region41: #{forward.1} parent=35 // pred_check
          %p239 = pneg %p64
        $region42: #{forward.1} parent=35 // pred_check_branch
          %241 = sbr.rel (%p239) target = $region44
        $region43: #{forward.1} parent=35 // pred_region
          %s242 = sand.u32 %s54, 1
          %s243 = scalar_lea.sflag [#allocation5], %s242
          %s244 = sand.u32 %s54, 1
          %s245 = smul.addr %s244, 11856
          %s246 = scalar_lea.vmem [#allocation4], %s245
          %s247 = smul.u32 114, %s18
          %249 = vsyncadd %s243, 0
          %s250 = smul.addr %s247, 8
          %s251 = scalar_lea.hbm %s1, %s250
          %s252 = sshll.u32 %s251, 4
          %s253 = int_to_ptr.hbm [resolvable:$true] %s252
          %s254 = sshll.u32 %s246, 4
          %s255 = int_to_ptr.vmem [resolvable:$true] %s254
          %260 = dma.hbm_to_vmem [thread:$0]  %s253, 189696, %s255, %s243, 116736, 14592, 912
        $region44: #{forward.1} parent=35 // pred_fallthru
          _
      $region36: #{forward.1} parent=5 // pred_fallthru
        _
      %p261 = scmp.le.s32.totalorder 1, %s18
      %p262 = scmp.lt.s32.totalorder %s18, 9
      %p263 = pnand %p261, %p262
      %p264 = pneg %p263
      // Predicated region
      $region45: #{forward.1} parent=5 // pred_check
        _
      $region46: #{forward.1} parent=5 // pred_check_branch
        %266 = sbr.rel (%p263) target = $region48
      $region47: #{forward.1} parent=5 // pred_region
        %s267 = ssub.s32 %s18, 1
        %s268 = sand.u32 %s57, 1
        %s269 = scalar_lea.sflag [#allocation5], %s268
        %s270 = sand.u32 %s57, 1
        %s271 = smul.addr %s270, 11856
        %s272 = scalar_lea.vmem [#allocation4], %s271
        // Predicated region
        $region49: #{forward.1} parent=47 // pred_check
          %p273 = pneg %p70
        $region50: #{forward.1} parent=47 // pred_check_branch
          %275 = sbr.rel (%p273) target = $region52
        $region51: #{forward.1} parent=47 // pred_region
          %277 = dma.done %s269, 189696
        $region52: #{forward.1} parent=47 // pred_fallthru
          _
        %s278 = smul.u32 114, %s23
        %p279 = scmp.lt.s32.totalorder %s278, 911
        %s280 = scalar_select %p279, %s278, 911
        %s281 = smul.addr %s280, 2
        %s282 = scalar_lea.vmem %s0, %s281
        %p283 = pneg %p44
        %p284 = pneg %p41
        %s285 = sand.u32 %s57, 1
        %s286 = scalar_lea.sflag [#allocation5], %s285
        %s287 = sand.u32 %s57, 1
        %s288 = smul.addr %s287, 11856
        %s289 = scalar_lea.vmem [#allocation4], %s288
        %p290 = pneg %p70
        %p291 = pneg %p67
        %p292 = pneg %p91
        %p293 = pneg %p88
        %p294 = pneg %p112
        %p295 = pneg %p109
        %p296 = pneg %p133
        %p297 = pneg %p130
        %p298 = pneg %p154
        %p299 = pneg %p151
        %p300 = pneg %p175
        %p301 = pneg %p172
        %p302 = pneg %p196
        %p303 = pneg %p193
        %s304 = smul.u32 114, %s23
        %p305 = scmp.lt.s32.totalorder %s304, 911
        %s306 = scalar_select %p305, %s304, 911
        %s307 = smul.addr %s306, 2
        %s308 = scalar_lea.vmem %s0, %s307
        %s309 = smul.u32 114, %s23
        %s310 = smul.u32 114, %s23
        %p311 = scmp.eq.s32.totalorder %s23, 0
        // Predicated region
        $region53: #{forward.1} parent=47 // pred_check
          %p312 = pneg %p311
        $region54: #{forward.1} parent=47 // pred_check_branch
          %314 = sbr.rel (%p312) target = $region56
        $region55: #{forward.1} parent=47 // pred_region
          %vm315 = vcmask 812032
          %316 = vst.msk [vmem:[#allocation2] sm:$0x3] %vm315, 0.0
        $region56: #{forward.1} parent=47 // pred_fallthru
          _
        %v317 = vld [vmem:[#allocation2] sm:$0x3]
        %v318 = vld [vmem:[%s308] sm:$0xff]
        %v319 = vld [vmem:[%s308 + $0x8] sm:$0xff]
        %v320 = vld [vmem:[%s308 + $0x10] sm:$0xff]
        %v321 = vld [vmem:[%s308 + $0x18] sm:$0xff]
        %v322 = vld [vmem:[%s308 + $0x20] sm:$0xff]
        %v323 = vld [vmem:[%s308 + $0x28] sm:$0xff]
        %v324 = vld [vmem:[%s308 + $0x30] sm:$0xff]
        %v325 = vld [vmem:[%s308 + $0x38] sm:$0xff]
        %v326 = vld [vmem:[%s308 + $0x40] sm:$0xff]
        %v327 = vld [vmem:[%s308 + $0x48] sm:$0xff]
        %v328 = vld [vmem:[%s308 + $0x50] sm:$0xff]
        %v329 = vld [vmem:[%s308 + $0x58] sm:$0xff]
        %v330 = vld [vmem:[%s308 + $0x60] sm:$0xff]
        %v331 = vld [vmem:[%s308 + $0x68] sm:$0xff]
        %v332 = vld [vmem:[%s308 + $0x70] sm:$0xff]
        %v333 = vld [vmem:[%s308 + $0x78] sm:$0xff]
        %v334 = vld [vmem:[%s308 + $0x80] sm:$0xff]
        %v335 = vld [vmem:[%s308 + $0x88] sm:$0xff]
        %v336 = vld [vmem:[%s308 + $0x90] sm:$0xff]
        %v337 = vld [vmem:[%s308 + $0x98] sm:$0xff]
        %v338 = vld [vmem:[%s308 + $0xa0] sm:$0xff]
        %v339 = vld [vmem:[%s308 + $0xa8] sm:$0xff]
        %v340 = vld [vmem:[%s308 + $0xb0] sm:$0xff]
        %v341 = vld [vmem:[%s308 + $0xb8] sm:$0xff]
        %v342 = vld [vmem:[%s308 + $0xc0] sm:$0xff]
        %v343 = vld [vmem:[%s308 + $0xc8] sm:$0xff]
        %v344 = vld [vmem:[%s308 + $0xd0] sm:$0xff]
        %v345 = vld [vmem:[%s308 + $0xd8] sm:$0xff]
        %v346 = vld [vmem:[%s308 + $0xe0] sm:$0xf]
        %v347 = vld [vmem:[%s272] sm:$0xff]
        %v348 = vld [vmem:[%s272 + $0x8] sm:$0xff]
        %v349 = vld [vmem:[%s272 + $0x10] sm:$0xff]
        %v350 = vld [vmem:[%s272 + $0x18] sm:$0xff]
        %v351 = vld [vmem:[%s272 + $0x20] sm:$0xff]
        %v352 = vld [vmem:[%s272 + $0x28] sm:$0xff]
        %v353 = vld [vmem:[%s272 + $0x30] sm:$0xff]
        %v354 = vld [vmem:[%s272 + $0x38] sm:$0xff]
        %v355 = vld [vmem:[%s272 + $0x40] sm:$0xff]
        %v356 = vld [vmem:[%s272 + $0x48] sm:$0xff]
        %v357 = vld [vmem:[%s272 + $0x50] sm:$0xff]
        %v358 = vld [vmem:[%s272 + $0x58] sm:$0xff]
        %v359 = vld [vmem:[%s272 + $0x60] sm:$0xff]
        %v360 = vld [vmem:[%s272 + $0x68] sm:$0xff]
        %v361 = vld [vmem:[%s272 + $0x70] sm:$0xff]
        %v362 = vld [vmem:[%s272 + $0x78] sm:$0xff]
        %v363 = vld [vmem:[%s272 + $0x80] sm:$0xff]
        %v364 = vld [vmem:[%s272 + $0x88] sm:$0xff]
        %v365 = vld [vmem:[%s272 + $0x90] sm:$0xff]
        %v366 = vld [vmem:[%s272 + $0x98] sm:$0xff]
        %v367 = vld [vmem:[%s272 + $0xa0] sm:$0xff]
        %v368 = vld [vmem:[%s272 + $0xa8] sm:$0xff]
        %v369 = vld [vmem:[%s272 + $0xb0] sm:$0xff]
        %v370 = vld [vmem:[%s272 + $0xb8] sm:$0xff]
        %v371 = vld [vmem:[%s272 + $0xc0] sm:$0xff]
        %v372 = vld [vmem:[%s272 + $0xc8] sm:$0xff]
        %v373 = vld [vmem:[%s272 + $0xd0] sm:$0xff]
        %v374 = vld [vmem:[%s272 + $0xd8] sm:$0xff]
        %v375 = vld [vmem:[%s272 + $0xe0] sm:$0xff]
        %v376 = vld [vmem:[%s272 + $0xe8] sm:$0xff]
        %v377 = vld [vmem:[%s272 + $0xf0] sm:$0xff]
        %v378 = vld [vmem:[%s272 + $0xf8] sm:$0xff]
        %v379 = vld [vmem:[%s272 + $0x100] sm:$0xff]
        %v380 = vld [vmem:[%s272 + $0x108] sm:$0xff]
        %v381 = vld [vmem:[%s272 + $0x110] sm:$0xff]
        %v382 = vld [vmem:[%s272 + $0x118] sm:$0xff]
        %v383 = vld [vmem:[%s272 + $0x120] sm:$0xff]
        %v384 = vld [vmem:[%s272 + $0x128] sm:$0xff]
        %v385 = vld [vmem:[%s272 + $0x130] sm:$0xff]
        %v386 = vld [vmem:[%s272 + $0x138] sm:$0xff]
        %v387 = vld [vmem:[%s272 + $0x140] sm:$0xff]
        %v388 = vld [vmem:[%s272 + $0x148] sm:$0xff]
        %v389 = vld [vmem:[%s272 + $0x150] sm:$0xff]
        %v390 = vld [vmem:[%s272 + $0x158] sm:$0xff]
        %v391 = vld [vmem:[%s272 + $0x160] sm:$0xff]
        %v392 = vld [vmem:[%s272 + $0x168] sm:$0xff]
        %v393 = vld [vmem:[%s272 + $0x170] sm:$0xff]
        %v394 = vld [vmem:[%s272 + $0x178] sm:$0xff]
        %v395 = vld [vmem:[%s272 + $0x180] sm:$0xff]
        %v396 = vld [vmem:[%s272 + $0x188] sm:$0xff]
        %v397 = vld [vmem:[%s272 + $0x190] sm:$0xff]
        %v398 = vld [vmem:[%s272 + $0x198] sm:$0xff]
        %v399 = vld [vmem:[%s272 + $0x1a0] sm:$0xff]
        %v400 = vld [vmem:[%s272 + $0x1a8] sm:$0xff]
        %v401 = vld [vmem:[%s272 + $0x1b0] sm:$0xff]
        %v402 = vld [vmem:[%s272 + $0x1b8] sm:$0xff]
        %v403 = vld [vmem:[%s272 + $0x1c0] sm:$0xff]
        %v404 = vld [vmem:[%s272 + $0x1c8] sm:$0xff]
        %v405 = vld [vmem:[%s272 + $0x1d0] sm:$0xff]
        %v406 = vld [vmem:[%s272 + $0x1d8] sm:$0xff]
        %v407 = vld [vmem:[%s272 + $0x1e0] sm:$0xff]
        %v408 = vld [vmem:[%s272 + $0x1e8] sm:$0xff]
        %v409 = vld [vmem:[%s272 + $0x1f0] sm:$0xff]
        %v410 = vld [vmem:[%s272 + $0x1f8] sm:$0xff]
        %v411 = vld [vmem:[%s272 + $0x200] sm:$0xff]
        %v412 = vld [vmem:[%s272 + $0x208] sm:$0xff]
        %v413 = vld [vmem:[%s272 + $0x210] sm:$0xff]
        %v414 = vld [vmem:[%s272 + $0x218] sm:$0xff]
        %v415 = vld [vmem:[%s272 + $0x220] sm:$0xff]
        %v416 = vld [vmem:[%s272 + $0x228] sm:$0xff]
        %v417 = vld [vmem:[%s272 + $0x230] sm:$0xff]
        %v418 = vld [vmem:[%s272 + $0x238] sm:$0xff]
        %v419 = vld [vmem:[%s272 + $0x240] sm:$0xff]
        %v420 = vld [vmem:[%s272 + $0x248] sm:$0xff]
        %v421 = vld [vmem:[%s272 + $0x250] sm:$0xff]
        %v422 = vld [vmem:[%s272 + $0x258] sm:$0xff]
        %v423 = vld [vmem:[%s272 + $0x260] sm:$0xff]
        %v424 = vld [vmem:[%s272 + $0x268] sm:$0xff]
        %v425 = vld [vmem:[%s272 + $0x270] sm:$0xff]
        %v426 = vld [vmem:[%s272 + $0x278] sm:$0xff]
        %v427 = vld [vmem:[%s272 + $0x280] sm:$0xff]
        %v428 = vld [vmem:[%s272 + $0x288] sm:$0xff]
        %v429 = vld [vmem:[%s272 + $0x290] sm:$0xff]
        %v430 = vld [vmem:[%s272 + $0x298] sm:$0xff]
        %v431 = vld [vmem:[%s272 + $0x2a0] sm:$0xff]
        %v432 = vld [vmem:[%s272 + $0x2a8] sm:$0xff]
        %v433 = vld [vmem:[%s272 + $0x2b0] sm:$0xff]
        %v434 = vld [vmem:[%s272 + $0x2b8] sm:$0xff]
        %v435 = vld [vmem:[%s272 + $0x2c0] sm:$0xff]
        %v436 = vld [vmem:[%s272 + $0x2c8] sm:$0xff]
        %v437 = vld [vmem:[%s272 + $0x2d0] sm:$0xff]
        %v438 = vld [vmem:[%s272 + $0x2d8] sm:$0xff]
        %v439 = vld [vmem:[%s272 + $0x2e0] sm:$0xff]
        %v440 = vld [vmem:[%s272 + $0x2e8] sm:$0xff]
        %v441 = vld [vmem:[%s272 + $0x2f0] sm:$0xff]
        %v442 = vld [vmem:[%s272 + $0x2f8] sm:$0xff]
        %v443 = vld [vmem:[%s272 + $0x300] sm:$0xff]
        %v444 = vld [vmem:[%s272 + $0x308] sm:$0xff]
        %v445 = vld [vmem:[%s272 + $0x310] sm:$0xff]
        %v446 = vld [vmem:[%s272 + $0x318] sm:$0xff]
        %v447 = vld [vmem:[%s272 + $0x320] sm:$0xff]
        %v448 = vld [vmem:[%s272 + $0x328] sm:$0xff]
        %v449 = vld [vmem:[%s272 + $0x330] sm:$0xff]
        %v450 = vld [vmem:[%s272 + $0x338] sm:$0xff]
        %v451 = vld [vmem:[%s272 + $0x340] sm:$0xff]
        %v452 = vld [vmem:[%s272 + $0x348] sm:$0xff]
        %v453 = vld [vmem:[%s272 + $0x350] sm:$0xff]
        %v454 = vld [vmem:[%s272 + $0x358] sm:$0xff]
        %v455 = vld [vmem:[%s272 + $0x360] sm:$0xff]
        %v456 = vld [vmem:[%s272 + $0x368] sm:$0xff]
        %v457 = vld [vmem:[%s272 + $0x370] sm:$0xff]
        %v458 = vld [vmem:[%s272 + $0x378] sm:$0xff]
        %v459 = vld [vmem:[%s272 + $0x380] sm:$0xff]
        %v460 = vld [vmem:[%s272 + $0x388] sm:$0xff]
        %v461 = vld [vmem:[%s272 + $0x390] sm:$0xff]
        %v462 = vld [vmem:[%s272 + $0x398] sm:$0xff]
        %v463 = vld [vmem:[%s272 + $0x3a0] sm:$0xff]
        %v464 = vld [vmem:[%s272 + $0x3a8] sm:$0xff]
        %v465 = vld [vmem:[%s272 + $0x3b0] sm:$0xff]
        %v466 = vld [vmem:[%s272 + $0x3b8] sm:$0xff]
        %v467 = vld [vmem:[%s272 + $0x3c0] sm:$0xff]
        %v468 = vld [vmem:[%s272 + $0x3c8] sm:$0xff]
        %v469 = vld [vmem:[%s272 + $0x3d0] sm:$0xff]
        %v470 = vld [vmem:[%s272 + $0x3d8] sm:$0xff]
        %v471 = vld [vmem:[%s272 + $0x3e0] sm:$0xff]
        %v472 = vld [vmem:[%s272 + $0x3e8] sm:$0xff]
        %v473 = vld [vmem:[%s272 + $0x3f0] sm:$0xff]
        %v474 = vld [vmem:[%s272 + $0x3f8] sm:$0xff]
        %v475 = vld [vmem:[%s272 + $0x400] sm:$0xff]
        %v476 = vld [vmem:[%s272 + $0x408] sm:$0xff]
        %v477 = vld [vmem:[%s272 + $0x410] sm:$0xff]
        %v478 = vld [vmem:[%s272 + $0x418] sm:$0xff]
        %v479 = vld [vmem:[%s272 + $0x420] sm:$0xff]
        %v480 = vld [vmem:[%s272 + $0x428] sm:$0xff]
        %v481 = vld [vmem:[%s272 + $0x430] sm:$0xff]
        %v482 = vld [vmem:[%s272 + $0x438] sm:$0xff]
        %v483 = vld [vmem:[%s272 + $0x440] sm:$0xff]
        %v484 = vld [vmem:[%s272 + $0x448] sm:$0xff]
        %v485 = vld [vmem:[%s272 + $0x450] sm:$0xff]
        %v486 = vld [vmem:[%s272 + $0x458] sm:$0xff]
        %v487 = vld [vmem:[%s272 + $0x460] sm:$0xff]
        %v488 = vld [vmem:[%s272 + $0x468] sm:$0xff]
        %v489 = vld [vmem:[%s272 + $0x470] sm:$0xff]
        %v490 = vld [vmem:[%s272 + $0x478] sm:$0xff]
        %v491 = vld [vmem:[%s272 + $0x480] sm:$0xff]
        %v492 = vld [vmem:[%s272 + $0x488] sm:$0xff]
        %v493 = vld [vmem:[%s272 + $0x490] sm:$0xff]
        %v494 = vld [vmem:[%s272 + $0x498] sm:$0xff]
        %v495 = vld [vmem:[%s272 + $0x4a0] sm:$0xff]
        %v496 = vld [vmem:[%s272 + $0x4a8] sm:$0xff]
        %v497 = vld [vmem:[%s272 + $0x4b0] sm:$0xff]
        %v498 = vld [vmem:[%s272 + $0x4b8] sm:$0xff]
        %v499 = vld [vmem:[%s272 + $0x4c0] sm:$0xff]
        %v500 = vld [vmem:[%s272 + $0x4c8] sm:$0xff]
        %v501 = vld [vmem:[%s272 + $0x4d0] sm:$0xff]
        %v502 = vld [vmem:[%s272 + $0x4d8] sm:$0xff]
        %v503 = vld [vmem:[%s272 + $0x4e0] sm:$0xff]
        %v504 = vld [vmem:[%s272 + $0x4e8] sm:$0xff]
        %v505 = vld [vmem:[%s272 + $0x4f0] sm:$0xff]
        %v506 = vld [vmem:[%s272 + $0x4f8] sm:$0xff]
        %v507 = vld [vmem:[%s272 + $0x500] sm:$0xff]
        %v508 = vld [vmem:[%s272 + $0x508] sm:$0xff]
        %v509 = vld [vmem:[%s272 + $0x510] sm:$0xff]
        %v510 = vld [vmem:[%s272 + $0x518] sm:$0xff]
        %v511 = vld [vmem:[%s272 + $0x520] sm:$0xff]
        %v512 = vld [vmem:[%s272 + $0x528] sm:$0xff]
        %v513 = vld [vmem:[%s272 + $0x530] sm:$0xff]
        %v514 = vld [vmem:[%s272 + $0x538] sm:$0xff]
        %v515 = vld [vmem:[%s272 + $0x540] sm:$0xff]
        %v516 = vld [vmem:[%s272 + $0x548] sm:$0xff]
        %v517 = vld [vmem:[%s272 + $0x550] sm:$0xff]
        %v518 = vld [vmem:[%s272 + $0x558] sm:$0xff]
        %v519 = vld [vmem:[%s272 + $0x560] sm:$0xff]
        %v520 = vld [vmem:[%s272 + $0x568] sm:$0xff]
        %v521 = vld [vmem:[%s272 + $0x570] sm:$0xff]
        %v522 = vld [vmem:[%s272 + $0x578] sm:$0xff]
        %v523 = vld [vmem:[%s272 + $0x580] sm:$0xff]
        %v524 = vld [vmem:[%s272 + $0x588] sm:$0xff]
        %v525 = vld [vmem:[%s272 + $0x590] sm:$0xff]
        %v526 = vld [vmem:[%s272 + $0x598] sm:$0xff]
        %v527 = vld [vmem:[%s272 + $0x5a0] sm:$0xff]
        %v528 = vld [vmem:[%s272 + $0x5a8] sm:$0xff]
        %v529 = vld [vmem:[%s272 + $0x5b0] sm:$0xff]
        %v530 = vld [vmem:[%s272 + $0x5b8] sm:$0xff]
        %v531 = vld [vmem:[%s272 + $0x5c0] sm:$0xff]
        %v532 = vld [vmem:[%s272 + $0x5c8] sm:$0xff]
        %v533 = vld [vmem:[%s272 + $0x5d0] sm:$0xff]
        %v534 = vld [vmem:[%s272 + $0x5d8] sm:$0xff]
        %v535 = vld [vmem:[%s272 + $0x5e0] sm:$0xff]
        %v536 = vld [vmem:[%s272 + $0x5e8] sm:$0xff]
        %v537 = vld [vmem:[%s272 + $0x5f0] sm:$0xff]
        %v538 = vld [vmem:[%s272 + $0x5f8] sm:$0xff]
        %v539 = vld [vmem:[%s272 + $0x600] sm:$0xff]
        %v540 = vld [vmem:[%s272 + $0x608] sm:$0xff]
        %v541 = vld [vmem:[%s272 + $0x610] sm:$0xff]
        %v542 = vld [vmem:[%s272 + $0x618] sm:$0xff]
        %v543 = vld [vmem:[%s272 + $0x620] sm:$0xff]
        %v544 = vld [vmem:[%s272 + $0x628] sm:$0xff]
        %v545 = vld [vmem:[%s272 + $0x630] sm:$0xff]
        %v546 = vld [vmem:[%s272 + $0x638] sm:$0xff]
        %v547 = vld [vmem:[%s272 + $0x640] sm:$0xff]
        %v548 = vld [vmem:[%s272 + $0x648] sm:$0xff]
        %v549 = vld [vmem:[%s272 + $0x650] sm:$0xff]
        %v550 = vld [vmem:[%s272 + $0x658] sm:$0xff]
        %v551 = vld [vmem:[%s272 + $0x660] sm:$0xff]
        %v552 = vld [vmem:[%s272 + $0x668] sm:$0xff]
        %v553 = vld [vmem:[%s272 + $0x670] sm:$0xff]
        %v554 = vld [vmem:[%s272 + $0x678] sm:$0xff]
        %v555 = vld [vmem:[%s272 + $0x680] sm:$0xff]
        %v556 = vld [vmem:[%s272 + $0x688] sm:$0xff]
        %v557 = vld [vmem:[%s272 + $0x690] sm:$0xff]
        %v558 = vld [vmem:[%s272 + $0x698] sm:$0xff]
        %v559 = vld [vmem:[%s272 + $0x6a0] sm:$0xff]
        %v560 = vld [vmem:[%s272 + $0x6a8] sm:$0xff]
        %v561 = vld [vmem:[%s272 + $0x6b0] sm:$0xff]
        %v562 = vld [vmem:[%s272 + $0x6b8] sm:$0xff]
        %v563 = vld [vmem:[%s272 + $0x6c0] sm:$0xff]
        %v564 = vld [vmem:[%s272 + $0x6c8] sm:$0xff]
        %v565 = vld [vmem:[%s272 + $0x6d0] sm:$0xff]
        %v566 = vld [vmem:[%s272 + $0x6d8] sm:$0xff]
        %v567 = vld [vmem:[%s272 + $0x6e0] sm:$0xff]
        %v568 = vld [vmem:[%s272 + $0x6e8] sm:$0xff]
        %v569 = vld [vmem:[%s272 + $0x6f0] sm:$0xff]
        %v570 = vld [vmem:[%s272 + $0x6f8] sm:$0xff]
        %v571 = vld [vmem:[%s272 + $0x700] sm:$0xff]
        %v572 = vld [vmem:[%s272 + $0x708] sm:$0xff]
        %v573 = vld [vmem:[%s272 + $0x710] sm:$0xff]
        %v574 = vld [vmem:[%s272 + $0x718] sm:$0xff]
        %v575 = vld [vmem:[%s272 + $0x720] sm:$0xff]
        %v576 = vld [vmem:[%s272 + $0x728] sm:$0xff]
        %v577 = vld [vmem:[%s272 + $0x730] sm:$0xff]
        %v578 = vld [vmem:[%s272 + $0x738] sm:$0xff]
        %v579 = vld [vmem:[%s272 + $0x740] sm:$0xff]
        %v580 = vld [vmem:[%s272 + $0x748] sm:$0xff]
        %v581 = vld [vmem:[%s272 + $0x750] sm:$0xff]
        %v582 = vld [vmem:[%s272 + $0x758] sm:$0xff]
        %v583 = vld [vmem:[%s272 + $0x760] sm:$0xff]
        %v584 = vld [vmem:[%s272 + $0x768] sm:$0xff]
        %v585 = vld [vmem:[%s272 + $0x770] sm:$0xff]
        %v586 = vld [vmem:[%s272 + $0x778] sm:$0xff]
        %v587 = vld [vmem:[%s272 + $0x780] sm:$0xff]
        %v588 = vld [vmem:[%s272 + $0x788] sm:$0xff]
        %v589 = vld [vmem:[%s272 + $0x790] sm:$0xff]
        %v590 = vld [vmem:[%s272 + $0x798] sm:$0xff]
        %v591 = vld [vmem:[%s272 + $0x7a0] sm:$0xff]
        %v592 = vld [vmem:[%s272 + $0x7a8] sm:$0xff]
        %v593 = vld [vmem:[%s272 + $0x7b0] sm:$0xff]
        %v594 = vld [vmem:[%s272 + $0x7b8] sm:$0xff]
        %v595 = vld [vmem:[%s272 + $0x7c0] sm:$0xff]
        %v596 = vld [vmem:[%s272 + $0x7c8] sm:$0xff]
        %v597 = vld [vmem:[%s272 + $0x7d0] sm:$0xff]
        %v598 = vld [vmem:[%s272 + $0x7d8] sm:$0xff]
        %v599 = vld [vmem:[%s272 + $0x7e0] sm:$0xff]
        %v600 = vld [vmem:[%s272 + $0x7e8] sm:$0xff]
        %v601 = vld [vmem:[%s272 + $0x7f0] sm:$0xff]
        %v602 = vld [vmem:[%s272 + $0x7f8] sm:$0xff]
        %v603 = vld [vmem:[%s272 + $0x800] sm:$0xff]
        %v604 = vld [vmem:[%s272 + $0x808] sm:$0xff]
        %v605 = vld [vmem:[%s272 + $0x810] sm:$0xff]
        %v606 = vld [vmem:[%s272 + $0x818] sm:$0xff]
        %v607 = vld [vmem:[%s272 + $0x820] sm:$0xff]
        %v608 = vld [vmem:[%s272 + $0x828] sm:$0xff]
        %v609 = vld [vmem:[%s272 + $0x830] sm:$0xff]
        %v610 = vld [vmem:[%s272 + $0x838] sm:$0xff]
        %v611 = vld [vmem:[%s272 + $0x840] sm:$0xff]
        %v612 = vld [vmem:[%s272 + $0x848] sm:$0xff]
        %v613 = vld [vmem:[%s272 + $0x850] sm:$0xff]
        %v614 = vld [vmem:[%s272 + $0x858] sm:$0xff]
        %v615 = vld [vmem:[%s272 + $0x860] sm:$0xff]
        %v616 = vld [vmem:[%s272 + $0x868] sm:$0xff]
        %v617 = vld [vmem:[%s272 + $0x870] sm:$0xff]
        %v618 = vld [vmem:[%s272 + $0x878] sm:$0xff]
        %v619 = vld [vmem:[%s272 + $0x880] sm:$0xff]
        %v620 = vld [vmem:[%s272 + $0x888] sm:$0xff]
        %v621 = vld [vmem:[%s272 + $0x890] sm:$0xff]
        %v622 = vld [vmem:[%s272 + $0x898] sm:$0xff]
        %v623 = vld [vmem:[%s272 + $0x8a0] sm:$0xff]
        %v624 = vld [vmem:[%s272 + $0x8a8] sm:$0xff]
        %v625 = vld [vmem:[%s272 + $0x8b0] sm:$0xff]
        %v626 = vld [vmem:[%s272 + $0x8b8] sm:$0xff]
        %v627 = vld [vmem:[%s272 + $0x8c0] sm:$0xff]
        %v628 = vld [vmem:[%s272 + $0x8c8] sm:$0xff]
        %v629 = vld [vmem:[%s272 + $0x8d0] sm:$0xff]
        %v630 = vld [vmem:[%s272 + $0x8d8] sm:$0xff]
        %v631 = vld [vmem:[%s272 + $0x8e0] sm:$0xff]
        %v632 = vld [vmem:[%s272 + $0x8e8] sm:$0xff]
        %v633 = vld [vmem:[%s272 + $0x8f0] sm:$0xff]
        %v634 = vld [vmem:[%s272 + $0x8f8] sm:$0xff]
        %v635 = vld [vmem:[%s272 + $0x900] sm:$0xff]
        %v636 = vld [vmem:[%s272 + $0x908] sm:$0xff]
        %v637 = vld [vmem:[%s272 + $0x910] sm:$0xff]
        %v638 = vld [vmem:[%s272 + $0x918] sm:$0xff]
        %v639 = vld [vmem:[%s272 + $0x920] sm:$0xff]
        %v640 = vld [vmem:[%s272 + $0x928] sm:$0xff]
        %v641 = vld [vmem:[%s272 + $0x930] sm:$0xff]
        %v642 = vld [vmem:[%s272 + $0x938] sm:$0xff]
        %v643 = vld [vmem:[%s272 + $0x940] sm:$0xff]
        %v644 = vld [vmem:[%s272 + $0x948] sm:$0xff]
        %v645 = vld [vmem:[%s272 + $0x950] sm:$0xff]
        %v646 = vld [vmem:[%s272 + $0x958] sm:$0xff]
        %v647 = vld [vmem:[%s272 + $0x960] sm:$0xff]
        %v648 = vld [vmem:[%s272 + $0x968] sm:$0xff]
        %v649 = vld [vmem:[%s272 + $0x970] sm:$0xff]
        %v650 = vld [vmem:[%s272 + $0x978] sm:$0xff]
        %v651 = vld [vmem:[%s272 + $0x980] sm:$0xff]
        %v652 = vld [vmem:[%s272 + $0x988] sm:$0xff]
        %v653 = vld [vmem:[%s272 + $0x990] sm:$0xff]
        %v654 = vld [vmem:[%s272 + $0x998] sm:$0xff]
        %v655 = vld [vmem:[%s272 + $0x9a0] sm:$0xff]
        %v656 = vld [vmem:[%s272 + $0x9a8] sm:$0xff]
        %v657 = vld [vmem:[%s272 + $0x9b0] sm:$0xff]
        %v658 = vld [vmem:[%s272 + $0x9b8] sm:$0xff]
        %v659 = vld [vmem:[%s272 + $0x9c0] sm:$0xff]
        %v660 = vld [vmem:[%s272 + $0x9c8] sm:$0xff]
        %v661 = vld [vmem:[%s272 + $0x9d0] sm:$0xff]
        %v662 = vld [vmem:[%s272 + $0x9d8] sm:$0xff]
        %v663 = vld [vmem:[%s272 + $0x9e0] sm:$0xff]
        %v664 = vld [vmem:[%s272 + $0x9e8] sm:$0xff]
        %v665 = vld [vmem:[%s272 + $0x9f0] sm:$0xff]
        %v666 = vld [vmem:[%s272 + $0x9f8] sm:$0xff]
        %v667 = vld [vmem:[%s272 + $0xa00] sm:$0xff]
        %v668 = vld [vmem:[%s272 + $0xa08] sm:$0xff]
        %v669 = vld [vmem:[%s272 + $0xa10] sm:$0xff]
        %v670 = vld [vmem:[%s272 + $0xa18] sm:$0xff]
        %v671 = vld [vmem:[%s272 + $0xa20] sm:$0xff]
        %v672 = vld [vmem:[%s272 + $0xa28] sm:$0xff]
        %v673 = vld [vmem:[%s272 + $0xa30] sm:$0xff]
        %v674 = vld [vmem:[%s272 + $0xa38] sm:$0xff]
        %v675 = vld [vmem:[%s272 + $0xa40] sm:$0xff]
        %v676 = vld [vmem:[%s272 + $0xa48] sm:$0xff]
        %v677 = vld [vmem:[%s272 + $0xa50] sm:$0xff]
        %v678 = vld [vmem:[%s272 + $0xa58] sm:$0xff]
        %v679 = vld [vmem:[%s272 + $0xa60] sm:$0xff]
        %v680 = vld [vmem:[%s272 + $0xa68] sm:$0xff]
        %v681 = vld [vmem:[%s272 + $0xa70] sm:$0xff]
        %v682 = vld [vmem:[%s272 + $0xa78] sm:$0xff]
        %v683 = vld [vmem:[%s272 + $0xa80] sm:$0xff]
        %v684 = vld [vmem:[%s272 + $0xa88] sm:$0xff]
        %v685 = vld [vmem:[%s272 + $0xa90] sm:$0xff]
        %v686 = vld [vmem:[%s272 + $0xa98] sm:$0xff]
        %v687 = vld [vmem:[%s272 + $0xaa0] sm:$0xff]
        %v688 = vld [vmem:[%s272 + $0xaa8] sm:$0xff]
        %v689 = vld [vmem:[%s272 + $0xab0] sm:$0xff]
        %v690 = vld [vmem:[%s272 + $0xab8] sm:$0xff]
        %v691 = vld [vmem:[%s272 + $0xac0] sm:$0xff]
        %v692 = vld [vmem:[%s272 + $0xac8] sm:$0xff]
        %v693 = vld [vmem:[%s272 + $0xad0] sm:$0xff]
        %v694 = vld [vmem:[%s272 + $0xad8] sm:$0xff]
        %v695 = vld [vmem:[%s272 + $0xae0] sm:$0xff]
        %v696 = vld [vmem:[%s272 + $0xae8] sm:$0xff]
        %v697 = vld [vmem:[%s272 + $0xaf0] sm:$0xff]
        %v698 = vld [vmem:[%s272 + $0xaf8] sm:$0xff]
        %v699 = vld [vmem:[%s272 + $0xb00] sm:$0xff]
        %v700 = vld [vmem:[%s272 + $0xb08] sm:$0xff]
        %v701 = vld [vmem:[%s272 + $0xb10] sm:$0xff]
        %v702 = vld [vmem:[%s272 + $0xb18] sm:$0xff]
        %v703 = vld [vmem:[%s272 + $0xb20] sm:$0xff]
        %v704 = vld [vmem:[%s272 + $0xb28] sm:$0xff]
        %v705 = vld [vmem:[%s272 + $0xb30] sm:$0xff]
        %v706 = vld [vmem:[%s272 + $0xb38] sm:$0xff]
        %v707 = vld [vmem:[%s272 + $0xb40] sm:$0xff]
        %v708 = vld [vmem:[%s272 + $0xb48] sm:$0xff]
        %v709 = vld [vmem:[%s272 + $0xb50] sm:$0xff]
        %v710 = vld [vmem:[%s272 + $0xb58] sm:$0xff]
        %v711 = vld [vmem:[%s272 + $0xb60] sm:$0xff]
        %v712 = vld [vmem:[%s272 + $0xb68] sm:$0xff]
        %v713 = vld [vmem:[%s272 + $0xb70] sm:$0xff]
        %v714 = vld [vmem:[%s272 + $0xb78] sm:$0xff]
        %v715 = vld [vmem:[%s272 + $0xb80] sm:$0xff]
        %v716 = vld [vmem:[%s272 + $0xb88] sm:$0xff]
        %v717 = vld [vmem:[%s272 + $0xb90] sm:$0xff]
        %v718 = vld [vmem:[%s272 + $0xb98] sm:$0xff]
        %v719 = vld [vmem:[%s272 + $0xba0] sm:$0xff]
        %v720 = vld [vmem:[%s272 + $0xba8] sm:$0xff]
        %v721 = vld [vmem:[%s272 + $0xbb0] sm:$0xff]
        %v722 = vld [vmem:[%s272 + $0xbb8] sm:$0xff]
        %v723 = vld [vmem:[%s272 + $0xbc0] sm:$0xff]
        %v724 = vld [vmem:[%s272 + $0xbc8] sm:$0xff]
        %v725 = vld [vmem:[%s272 + $0xbd0] sm:$0xff]
        %v726 = vld [vmem:[%s272 + $0xbd8] sm:$0xff]
        %v727 = vld [vmem:[%s272 + $0xbe0] sm:$0xff]
        %v728 = vld [vmem:[%s272 + $0xbe8] sm:$0xff]
        %v729 = vld [vmem:[%s272 + $0xbf0] sm:$0xff]
        %v730 = vld [vmem:[%s272 + $0xbf8] sm:$0xff]
        %v731 = vld [vmem:[%s272 + $0xc00] sm:$0xff]
        %v732 = vld [vmem:[%s272 + $0xc08] sm:$0xff]
        %v733 = vld [vmem:[%s272 + $0xc10] sm:$0xff]
        %v734 = vld [vmem:[%s272 + $0xc18] sm:$0xff]
        %v735 = vld [vmem:[%s272 + $0xc20] sm:$0xff]
        %v736 = vld [vmem:[%s272 + $0xc28] sm:$0xff]
        %v737 = vld [vmem:[%s272 + $0xc30] sm:$0xff]
        %v738 = vld [vmem:[%s272 + $0xc38] sm:$0xff]
        %v739 = vld [vmem:[%s272 + $0xc40] sm:$0xff]
        %v740 = vld [vmem:[%s272 + $0xc48] sm:$0xff]
        %v741 = vld [vmem:[%s272 + $0xc50] sm:$0xff]
        %v742 = vld [vmem:[%s272 + $0xc58] sm:$0xff]
        %v743 = vld [vmem:[%s272 + $0xc60] sm:$0xff]
        %v744 = vld [vmem:[%s272 + $0xc68] sm:$0xff]
        %v745 = vld [vmem:[%s272 + $0xc70] sm:$0xff]
        %v746 = vld [vmem:[%s272 + $0xc78] sm:$0xff]
        %v747 = vld [vmem:[%s272 + $0xc80] sm:$0xff]
        %v748 = vld [vmem:[%s272 + $0xc88] sm:$0xff]
        %v749 = vld [vmem:[%s272 + $0xc90] sm:$0xff]
        %v750 = vld [vmem:[%s272 + $0xc98] sm:$0xff]
        %v751 = vld [vmem:[%s272 + $0xca0] sm:$0xff]
        %v752 = vld [vmem:[%s272 + $0xca8] sm:$0xff]
        %v753 = vld [vmem:[%s272 + $0xcb0] sm:$0xff]
        %v754 = vld [vmem:[%s272 + $0xcb8] sm:$0xff]
        %v755 = vld [vmem:[%s272 + $0xcc0] sm:$0xff]
        %v756 = vld [vmem:[%s272 + $0xcc8] sm:$0xff]
        %v757 = vld [vmem:[%s272 + $0xcd0] sm:$0xff]
        %v758 = vld [vmem:[%s272 + $0xcd8] sm:$0xff]
        %v759 = vld [vmem:[%s272 + $0xce0] sm:$0xff]
        %v760 = vld [vmem:[%s272 + $0xce8] sm:$0xff]
        %v761 = vld [vmem:[%s272 + $0xcf0] sm:$0xff]
        %v762 = vld [vmem:[%s272 + $0xcf8] sm:$0xff]
        %v763 = vld [vmem:[%s272 + $0xd00] sm:$0xff]
        %v764 = vld [vmem:[%s272 + $0xd08] sm:$0xff]
        %v765 = vld [vmem:[%s272 + $0xd10] sm:$0xff]
        %v766 = vld [vmem:[%s272 + $0xd18] sm:$0xff]
        %v767 = vld [vmem:[%s272 + $0xd20] sm:$0xff]
        %v768 = vld [vmem:[%s272 + $0xd28] sm:$0xff]
        %v769 = vld [vmem:[%s272 + $0xd30] sm:$0xff]
        %v770 = vld [vmem:[%s272 + $0xd38] sm:$0xff]
        %v771 = vld [vmem:[%s272 + $0xd40] sm:$0xff]
        %v772 = vld [vmem:[%s272 + $0xd48] sm:$0xff]
        %v773 = vld [vmem:[%s272 + $0xd50] sm:$0xff]
        %v774 = vld [vmem:[%s272 + $0xd58] sm:$0xff]
        %v775 = vld [vmem:[%s272 + $0xd60] sm:$0xff]
        %v776 = vld [vmem:[%s272 + $0xd68] sm:$0xff]
        %v777 = vld [vmem:[%s272 + $0xd70] sm:$0xff]
        %v778 = vld [vmem:[%s272 + $0xd78] sm:$0xff]
        %v779 = vld [vmem:[%s272 + $0xd80] sm:$0xff]
        %v780 = vld [vmem:[%s272 + $0xd88] sm:$0xff]
        %v781 = vld [vmem:[%s272 + $0xd90] sm:$0xff]
        %v782 = vld [vmem:[%s272 + $0xd98] sm:$0xff]
        %v783 = vld [vmem:[%s272 + $0xda0] sm:$0xff]
        %v784 = vld [vmem:[%s272 + $0xda8] sm:$0xff]
        %v785 = vld [vmem:[%s272 + $0xdb0] sm:$0xff]
        %v786 = vld [vmem:[%s272 + $0xdb8] sm:$0xff]
        %v787 = vld [vmem:[%s272 + $0xdc0] sm:$0xff]
        %v788 = vld [vmem:[%s272 + $0xdc8] sm:$0xff]
        %v789 = vld [vmem:[%s272 + $0xdd0] sm:$0xff]
        %v790 = vld [vmem:[%s272 + $0xdd8] sm:$0xff]
        %v791 = vld [vmem:[%s272 + $0xde0] sm:$0xff]
        %v792 = vld [vmem:[%s272 + $0xde8] sm:$0xff]
        %v793 = vld [vmem:[%s272 + $0xdf0] sm:$0xff]
        %v794 = vld [vmem:[%s272 + $0xdf8] sm:$0xff]
        %v795 = vld [vmem:[%s272 + $0xe00] sm:$0xff]
        %v796 = vld [vmem:[%s272 + $0xe08] sm:$0xff]
        %v797 = vld [vmem:[%s272 + $0xe10] sm:$0xff]
        %v798 = vld [vmem:[%s272 + $0xe18] sm:$0xff]
        %v799 = vld [vmem:[%s272 + $0xe20] sm:$0xff]
        %v800 = vld [vmem:[%s272 + $0xe28] sm:$0xff]
        %v801 = vld [vmem:[%s272 + $0xe30] sm:$0xff]
        %v802 = vld [vmem:[%s272 + $0xe38] sm:$0xff]
        %v803 = vld [vmem:[%s272 + $0xe40] sm:$0xff]
        %v804 = vld [vmem:[%s272 + $0xe48] sm:$0xff]
        %v805 = vld [vmem:[%s272 + $0xe50] sm:$0xff]
        %v806 = vld [vmem:[%s272 + $0xe58] sm:$0xff]
        %v807 = vld [vmem:[%s272 + $0xe60] sm:$0xff]
        %v808 = vld [vmem:[%s272 + $0xe68] sm:$0xff]
        %v809 = vld [vmem:[%s272 + $0xe70] sm:$0xff]
        %v810 = vld [vmem:[%s272 + $0xe78] sm:$0xff]
        %v811 = vld [vmem:[%s272 + $0xe80] sm:$0xff]
        %v812 = vld [vmem:[%s272 + $0xe88] sm:$0xff]
        %v813 = vld [vmem:[%s272 + $0xe90] sm:$0xff]
        %v814 = vld [vmem:[%s272 + $0xe98] sm:$0xff]
        %v815 = vld [vmem:[%s272 + $0xea0] sm:$0xff]
        %v816 = vld [vmem:[%s272 + $0xea8] sm:$0xff]
        %v817 = vld [vmem:[%s272 + $0xeb0] sm:$0xff]
        %v818 = vld [vmem:[%s272 + $0xeb8] sm:$0xff]
        %v819 = vld [vmem:[%s272 + $0xec0] sm:$0xff]
        %v820 = vld [vmem:[%s272 + $0xec8] sm:$0xff]
        %v821 = vld [vmem:[%s272 + $0xed0] sm:$0xff]
        %v822 = vld [vmem:[%s272 + $0xed8] sm:$0xff]
        %v823 = vld [vmem:[%s272 + $0xee0] sm:$0xff]
        %v824 = vld [vmem:[%s272 + $0xee8] sm:$0xff]
        %v825 = vld [vmem:[%s272 + $0xef0] sm:$0xff]
        %v826 = vld [vmem:[%s272 + $0xef8] sm:$0xff]
        %v827 = vld [vmem:[%s272 + $0xf00] sm:$0xff]
        %v828 = vld [vmem:[%s272 + $0xf08] sm:$0xff]
        %v829 = vld [vmem:[%s272 + $0xf10] sm:$0xff]
        %v830 = vld [vmem:[%s272 + $0xf18] sm:$0xff]
        %v831 = vld [vmem:[%s272 + $0xf20] sm:$0xff]
        %v832 = vld [vmem:[%s272 + $0xf28] sm:$0xff]
        %v833 = vld [vmem:[%s272 + $0xf30] sm:$0xff]
        %v834 = vld [vmem:[%s272 + $0xf38] sm:$0xff]
        %v835 = vld [vmem:[%s272 + $0xf40] sm:$0xff]
        %v836 = vld [vmem:[%s272 + $0xf48] sm:$0xff]
        %v837 = vld [vmem:[%s272 + $0xf50] sm:$0xff]
        %v838 = vld [vmem:[%s272 + $0xf58] sm:$0xff]
        %v839 = vld [vmem:[%s272 + $0xf60] sm:$0xff]
        %v840 = vld [vmem:[%s272 + $0xf68] sm:$0xff]
        %v841 = vld [vmem:[%s272 + $0xf70] sm:$0xff]
        %v842 = vld [vmem:[%s272 + $0xf78] sm:$0xff]
        %v843 = vld [vmem:[%s272 + $0xf80] sm:$0xff]
        %v844 = vld [vmem:[%s272 + $0xf88] sm:$0xff]
        %v845 = vld [vmem:[%s272 + $0xf90] sm:$0xff]
        %v846 = vld [vmem:[%s272 + $0xf98] sm:$0xff]
        %v847 = vld [vmem:[%s272 + $0xfa0] sm:$0xff]
        %v848 = vld [vmem:[%s272 + $0xfa8] sm:$0xff]
        %v849 = vld [vmem:[%s272 + $0xfb0] sm:$0xff]
        %v850 = vld [vmem:[%s272 + $0xfb8] sm:$0xff]
        %v851 = vld [vmem:[%s272 + $0xfc0] sm:$0xff]
        %v852 = vld [vmem:[%s272 + $0xfc8] sm:$0xff]
        %v853 = vld [vmem:[%s272 + $0xfd0] sm:$0xff]
        %v854 = vld [vmem:[%s272 + $0xfd8] sm:$0xff]
        %v855 = vld [vmem:[%s272 + $0xfe0] sm:$0xff]
        %v856 = vld [vmem:[%s272 + $0xfe8] sm:$0xff]
        %v857 = vld [vmem:[%s272 + $0xff0] sm:$0xff]
        %v858 = vld [vmem:[%s272 + $0xff8] sm:$0xff]
        %v859 = vld [vmem:[%s272 + $0x1000] sm:$0xff]
        %v860 = vld [vmem:[%s272 + $0x1008] sm:$0xff]
        %v861 = vld [vmem:[%s272 + $0x1010] sm:$0xff]
        %v862 = vld [vmem:[%s272 + $0x1018] sm:$0xff]
        %v863 = vld [vmem:[%s272 + $0x1020] sm:$0xff]
        %v864 = vld [vmem:[%s272 + $0x1028] sm:$0xff]
        %v865 = vld [vmem:[%s272 + $0x1030] sm:$0xff]
        %v866 = vld [vmem:[%s272 + $0x1038] sm:$0xff]
        %v867 = vld [vmem:[%s272 + $0x1040] sm:$0xff]
        %v868 = vld [vmem:[%s272 + $0x1048] sm:$0xff]
        %v869 = vld [vmem:[%s272 + $0x1050] sm:$0xff]
        %v870 = vld [vmem:[%s272 + $0x1058] sm:$0xff]
        %v871 = vld [vmem:[%s272 + $0x1060] sm:$0xff]
        %v872 = vld [vmem:[%s272 + $0x1068] sm:$0xff]
        %v873 = vld [vmem:[%s272 + $0x1070] sm:$0xff]
        %v874 = vld [vmem:[%s272 + $0x1078] sm:$0xff]
        %v875 = vld [vmem:[%s272 + $0x1080] sm:$0xff]
        %v876 = vld [vmem:[%s272 + $0x1088] sm:$0xff]
        %v877 = vld [vmem:[%s272 + $0x1090] sm:$0xff]
        %v878 = vld [vmem:[%s272 + $0x1098] sm:$0xff]
        %v879 = vld [vmem:[%s272 + $0x10a0] sm:$0xff]
        %v880 = vld [vmem:[%s272 + $0x10a8] sm:$0xff]
        %v881 = vld [vmem:[%s272 + $0x10b0] sm:$0xff]
        %v882 = vld [vmem:[%s272 + $0x10b8] sm:$0xff]
        %v883 = vld [vmem:[%s272 + $0x10c0] sm:$0xff]
        %v884 = vld [vmem:[%s272 + $0x10c8] sm:$0xff]
        %v885 = vld [vmem:[%s272 + $0x10d0] sm:$0xff]
        %v886 = vld [vmem:[%s272 + $0x10d8] sm:$0xff]
        %v887 = vld [vmem:[%s272 + $0x10e0] sm:$0xff]
        %v888 = vld [vmem:[%s272 + $0x10e8] sm:$0xff]
        %v889 = vld [vmem:[%s272 + $0x10f0] sm:$0xff]
        %v890 = vld [vmem:[%s272 + $0x10f8] sm:$0xff]
        %v891 = vld [vmem:[%s272 + $0x1100] sm:$0xff]
        %v892 = vld [vmem:[%s272 + $0x1108] sm:$0xff]
        %v893 = vld [vmem:[%s272 + $0x1110] sm:$0xff]
        %v894 = vld [vmem:[%s272 + $0x1118] sm:$0xff]
        %v895 = vld [vmem:[%s272 + $0x1120] sm:$0xff]
        %v896 = vld [vmem:[%s272 + $0x1128] sm:$0xff]
        %v897 = vld [vmem:[%s272 + $0x1130] sm:$0xff]
        %v898 = vld [vmem:[%s272 + $0x1138] sm:$0xff]
        %v899 = vld [vmem:[%s272 + $0x1140] sm:$0xff]
        %v900 = vld [vmem:[%s272 + $0x1148] sm:$0xff]
        %v901 = vld [vmem:[%s272 + $0x1150] sm:$0xff]
        %v902 = vld [vmem:[%s272 + $0x1158] sm:$0xff]
        %v903 = vld [vmem:[%s272 + $0x1160] sm:$0xff]
        %v904 = vld [vmem:[%s272 + $0x1168] sm:$0xff]
        %v905 = vld [vmem:[%s272 + $0x1170] sm:$0xff]
        %v906 = vld [vmem:[%s272 + $0x1178] sm:$0xff]
        %v907 = vld [vmem:[%s272 + $0x1180] sm:$0xff]
        %v908 = vld [vmem:[%s272 + $0x1188] sm:$0xff]
        %v909 = vld [vmem:[%s272 + $0x1190] sm:$0xff]
        %v910 = vld [vmem:[%s272 + $0x1198] sm:$0xff]
        %v911 = vld [vmem:[%s272 + $0x11a0] sm:$0xff]
        %v912 = vld [vmem:[%s272 + $0x11a8] sm:$0xff]
        %v913 = vld [vmem:[%s272 + $0x11b0] sm:$0xff]
        %v914 = vld [vmem:[%s272 + $0x11b8] sm:$0xff]
        %v915 = vld [vmem:[%s272 + $0x11c0] sm:$0xff]
        %v916 = vld [vmem:[%s272 + $0x11c8] sm:$0xff]
        %v917 = vld [vmem:[%s272 + $0x11d0] sm:$0xff]
        %v918 = vld [vmem:[%s272 + $0x11d8] sm:$0xff]
        %v919 = vld [vmem:[%s272 + $0x11e0] sm:$0xff]
        %v920 = vld [vmem:[%s272 + $0x11e8] sm:$0xff]
        %v921 = vld [vmem:[%s272 + $0x11f0] sm:$0xff]
        %v922 = vld [vmem:[%s272 + $0x11f8] sm:$0xff]
        %v923 = vld [vmem:[%s272 + $0x1200] sm:$0xff]
        %v924 = vld [vmem:[%s272 + $0x1208] sm:$0xff]
        %v925 = vld [vmem:[%s272 + $0x1210] sm:$0xff]
        %v926 = vld [vmem:[%s272 + $0x1218] sm:$0xff]
        %v927 = vld [vmem:[%s272 + $0x1220] sm:$0xff]
        %v928 = vld [vmem:[%s272 + $0x1228] sm:$0xff]
        %v929 = vld [vmem:[%s272 + $0x1230] sm:$0xff]
        %v930 = vld [vmem:[%s272 + $0x1238] sm:$0xff]
        %v931 = vld [vmem:[%s272 + $0x1240] sm:$0xff]
        %v932 = vld [vmem:[%s272 + $0x1248] sm:$0xff]
        %v933 = vld [vmem:[%s272 + $0x1250] sm:$0xff]
        %v934 = vld [vmem:[%s272 + $0x1258] sm:$0xff]
        %v935 = vld [vmem:[%s272 + $0x1260] sm:$0xff]
        %v936 = vld [vmem:[%s272 + $0x1268] sm:$0xff]
        %v937 = vld [vmem:[%s272 + $0x1270] sm:$0xff]
        %v938 = vld [vmem:[%s272 + $0x1278] sm:$0xff]
        %v939 = vld [vmem:[%s272 + $0x1280] sm:$0xff]
        %v940 = vld [vmem:[%s272 + $0x1288] sm:$0xff]
        %v941 = vld [vmem:[%s272 + $0x1290] sm:$0xff]
        %v942 = vld [vmem:[%s272 + $0x1298] sm:$0xff]
        %v943 = vld [vmem:[%s272 + $0x12a0] sm:$0xff]
        %v944 = vld [vmem:[%s272 + $0x12a8] sm:$0xff]
        %v945 = vld [vmem:[%s272 + $0x12b0] sm:$0xff]
        %v946 = vld [vmem:[%s272 + $0x12b8] sm:$0xff]
        %v947 = vld [vmem:[%s272 + $0x12c0] sm:$0xff]
        %v948 = vld [vmem:[%s272 + $0x12c8] sm:$0xff]
        %v949 = vld [vmem:[%s272 + $0x12d0] sm:$0xff]
        %v950 = vld [vmem:[%s272 + $0x12d8] sm:$0xff]
        %v951 = vld [vmem:[%s272 + $0x12e0] sm:$0xff]
        %v952 = vld [vmem:[%s272 + $0x12e8] sm:$0xff]
        %v953 = vld [vmem:[%s272 + $0x12f0] sm:$0xff]
        %v954 = vld [vmem:[%s272 + $0x12f8] sm:$0xff]
        %v955 = vld [vmem:[%s272 + $0x1300] sm:$0xff]
        %v956 = vld [vmem:[%s272 + $0x1308] sm:$0xff]
        %v957 = vld [vmem:[%s272 + $0x1310] sm:$0xff]
        %v958 = vld [vmem:[%s272 + $0x1318] sm:$0xff]
        %v959 = vld [vmem:[%s272 + $0x1320] sm:$0xff]
        %v960 = vld [vmem:[%s272 + $0x1328] sm:$0xff]
        %v961 = vld [vmem:[%s272 + $0x1330] sm:$0xff]
        %v962 = vld [vmem:[%s272 + $0x1338] sm:$0xff]
        %v963 = vld [vmem:[%s272 + $0x1340] sm:$0xff]
        %v964 = vld [vmem:[%s272 + $0x1348] sm:$0xff]
        %v965 = vld [vmem:[%s272 + $0x1350] sm:$0xff]
        %v966 = vld [vmem:[%s272 + $0x1358] sm:$0xff]
        %v967 = vld [vmem:[%s272 + $0x1360] sm:$0xff]
        %v968 = vld [vmem:[%s272 + $0x1368] sm:$0xff]
        %v969 = vld [vmem:[%s272 + $0x1370] sm:$0xff]
        %v970 = vld [vmem:[%s272 + $0x1378] sm:$0xff]
        %v971 = vld [vmem:[%s272 + $0x1380] sm:$0xff]
        %v972 = vld [vmem:[%s272 + $0x1388] sm:$0xff]
        %v973 = vld [vmem:[%s272 + $0x1390] sm:$0xff]
        %v974 = vld [vmem:[%s272 + $0x1398] sm:$0xff]
        %v975 = vld [vmem:[%s272 + $0x13a0] sm:$0xff]
        %v976 = vld [vmem:[%s272 + $0x13a8] sm:$0xff]
        %v977 = vld [vmem:[%s272 + $0x13b0] sm:$0xff]
        %v978 = vld [vmem:[%s272 + $0x13b8] sm:$0xff]
        %v979 = vld [vmem:[%s272 + $0x13c0] sm:$0xff]
        %v980 = vld [vmem:[%s272 + $0x13c8] sm:$0xff]
        %v981 = vld [vmem:[%s272 + $0x13d0] sm:$0xff]
        %v982 = vld [vmem:[%s272 + $0x13d8] sm:$0xff]
        %v983 = vld [vmem:[%s272 + $0x13e0] sm:$0xff]
        %v984 = vld [vmem:[%s272 + $0x13e8] sm:$0xff]
        %v985 = vld [vmem:[%s272 + $0x13f0] sm:$0xff]
        %v986 = vld [vmem:[%s272 + $0x13f8] sm:$0xff]
        %v987 = vld [vmem:[%s272 + $0x1400] sm:$0xff]
        %v988 = vld [vmem:[%s272 + $0x1408] sm:$0xff]
        %v989 = vld [vmem:[%s272 + $0x1410] sm:$0xff]
        %v990 = vld [vmem:[%s272 + $0x1418] sm:$0xff]
        %v991 = vld [vmem:[%s272 + $0x1420] sm:$0xff]
        %v992 = vld [vmem:[%s272 + $0x1428] sm:$0xff]
        %v993 = vld [vmem:[%s272 + $0x1430] sm:$0xff]
        %v994 = vld [vmem:[%s272 + $0x1438] sm:$0xff]
        %v995 = vld [vmem:[%s272 + $0x1440] sm:$0xff]
        %v996 = vld [vmem:[%s272 + $0x1448] sm:$0xff]
        %v997 = vld [vmem:[%s272 + $0x1450] sm:$0xff]
        %v998 = vld [vmem:[%s272 + $0x1458] sm:$0xff]
        %v999 = vld [vmem:[%s272 + $0x1460] sm:$0xff]
        %v1000 = vld [vmem:[%s272 + $0x1468] sm:$0xff]
        %v1001 = vld [vmem:[%s272 + $0x1470] sm:$0xff]
        %v1002 = vld [vmem:[%s272 + $0x1478] sm:$0xff]
        %v1003 = vld [vmem:[%s272 + $0x1480] sm:$0xff]
        %v1004 = vld [vmem:[%s272 + $0x1488] sm:$0xff]
        %v1005 = vld [vmem:[%s272 + $0x1490] sm:$0xff]
        %v1006 = vld [vmem:[%s272 + $0x1498] sm:$0xff]
        %v1007 = vld [vmem:[%s272 + $0x14a0] sm:$0xff]
        %v1008 = vld [vmem:[%s272 + $0x14a8] sm:$0xff]
        %v1009 = vld [vmem:[%s272 + $0x14b0] sm:$0xff]
        %v1010 = vld [vmem:[%s272 + $0x14b8] sm:$0xff]
        %v1011 = vld [vmem:[%s272 + $0x14c0] sm:$0xff]
        %v1012 = vld [vmem:[%s272 + $0x14c8] sm:$0xff]
        %v1013 = vld [vmem:[%s272 + $0x14d0] sm:$0xff]
        %v1014 = vld [vmem:[%s272 + $0x14d8] sm:$0xff]
        %v1015 = vld [vmem:[%s272 + $0x14e0] sm:$0xff]
        %v1016 = vld [vmem:[%s272 + $0x14e8] sm:$0xff]
        %v1017 = vld [vmem:[%s272 + $0x14f0] sm:$0xff]
        %v1018 = vld [vmem:[%s272 + $0x14f8] sm:$0xff]
        %v1019 = vld [vmem:[%s272 + $0x1500] sm:$0xff]
        %v1020 = vld [vmem:[%s272 + $0x1508] sm:$0xff]
        %v1021 = vld [vmem:[%s272 + $0x1510] sm:$0xff]
        %v1022 = vld [vmem:[%s272 + $0x1518] sm:$0xff]
        %v1023 = vld [vmem:[%s272 + $0x1520] sm:$0xff]
        %v1024 = vld [vmem:[%s272 + $0x1528] sm:$0xff]
        %v1025 = vld [vmem:[%s272 + $0x1530] sm:$0xff]
        %v1026 = vld [vmem:[%s272 + $0x1538] sm:$0xff]
        %v1027 = vld [vmem:[%s272 + $0x1540] sm:$0xff]
        %v1028 = vld [vmem:[%s272 + $0x1548] sm:$0xff]
        %v1029 = vld [vmem:[%s272 + $0x1550] sm:$0xff]
        %v1030 = vld [vmem:[%s272 + $0x1558] sm:$0xff]
        %v1031 = vld [vmem:[%s272 + $0x1560] sm:$0xff]
        %v1032 = vld [vmem:[%s272 + $0x1568] sm:$0xff]
        %v1033 = vld [vmem:[%s272 + $0x1570] sm:$0xff]
        %v1034 = vld [vmem:[%s272 + $0x1578] sm:$0xff]
        %v1035 = vld [vmem:[%s272 + $0x1580] sm:$0xff]
        %v1036 = vld [vmem:[%s272 + $0x1588] sm:$0xff]
        %v1037 = vld [vmem:[%s272 + $0x1590] sm:$0xff]
        %v1038 = vld [vmem:[%s272 + $0x1598] sm:$0xff]
        %v1039 = vld [vmem:[%s272 + $0x15a0] sm:$0xff]
        %v1040 = vld [vmem:[%s272 + $0x15a8] sm:$0xff]
        %v1041 = vld [vmem:[%s272 + $0x15b0] sm:$0xff]
        %v1042 = vld [vmem:[%s272 + $0x15b8] sm:$0xff]
        %v1043 = vld [vmem:[%s272 + $0x15c0] sm:$0xff]
        %v1044 = vld [vmem:[%s272 + $0x15c8] sm:$0xff]
        %v1045 = vld [vmem:[%s272 + $0x15d0] sm:$0xff]
        %v1046 = vld [vmem:[%s272 + $0x15d8] sm:$0xff]
        %v1047 = vld [vmem:[%s272 + $0x15e0] sm:$0xff]
        %v1048 = vld [vmem:[%s272 + $0x15e8] sm:$0xff]
        %v1049 = vld [vmem:[%s272 + $0x15f0] sm:$0xff]
        %v1050 = vld [vmem:[%s272 + $0x15f8] sm:$0xff]
        %v1051 = vld [vmem:[%s272 + $0x1600] sm:$0xff]
        %v1052 = vld [vmem:[%s272 + $0x1608] sm:$0xff]
        %v1053 = vld [vmem:[%s272 + $0x1610] sm:$0xff]
        %v1054 = vld [vmem:[%s272 + $0x1618] sm:$0xff]
        %v1055 = vld [vmem:[%s272 + $0x1620] sm:$0xff]
        %v1056 = vld [vmem:[%s272 + $0x1628] sm:$0xff]
        %v1057 = vld [vmem:[%s272 + $0x1630] sm:$0xff]
        %v1058 = vld [vmem:[%s272 + $0x1638] sm:$0xff]
        %v1059 = vld [vmem:[%s272 + $0x1640] sm:$0xff]
        %v1060 = vld [vmem:[%s272 + $0x1648] sm:$0xff]
        %v1061 = vld [vmem:[%s272 + $0x1650] sm:$0xff]
        %v1062 = vld [vmem:[%s272 + $0x1658] sm:$0xff]
        %v1063 = vld [vmem:[%s272 + $0x1660] sm:$0xff]
        %v1064 = vld [vmem:[%s272 + $0x1668] sm:$0xff]
        %v1065 = vld [vmem:[%s272 + $0x1670] sm:$0xff]
        %v1066 = vld [vmem:[%s272 + $0x1678] sm:$0xff]
        %v1067 = vld [vmem:[%s272 + $0x1680] sm:$0xff]
        %v1068 = vld [vmem:[%s272 + $0x1688] sm:$0xff]
        %v1069 = vld [vmem:[%s272 + $0x1690] sm:$0xff]
        %v1070 = vld [vmem:[%s272 + $0x1698] sm:$0xff]
        %v1071 = vld [vmem:[%s272 + $0x16a0] sm:$0xff]
        %v1072 = vld [vmem:[%s272 + $0x16a8] sm:$0xff]
        %v1073 = vld [vmem:[%s272 + $0x16b0] sm:$0xff]
        %v1074 = vld [vmem:[%s272 + $0x16b8] sm:$0xff]
        %v1075 = vld [vmem:[%s272 + $0x16c0] sm:$0xff]
        %v1076 = vld [vmem:[%s272 + $0x16c8] sm:$0xff]
        %v1077 = vld [vmem:[%s272 + $0x16d0] sm:$0xff]
        %v1078 = vld [vmem:[%s272 + $0x16d8] sm:$0xff]
        %v1079 = vld [vmem:[%s272 + $0x16e0] sm:$0xff]
        %v1080 = vld [vmem:[%s272 + $0x16e8] sm:$0xff]
        %v1081 = vld [vmem:[%s272 + $0x16f0] sm:$0xff]
        %v1082 = vld [vmem:[%s272 + $0x16f8] sm:$0xff]
        %v1083 = vld [vmem:[%s272 + $0x1700] sm:$0xff]
        %v1084 = vld [vmem:[%s272 + $0x1708] sm:$0xff]
        %v1085 = vld [vmem:[%s272 + $0x1710] sm:$0xff]
        %v1086 = vld [vmem:[%s272 + $0x1718] sm:$0xff]
        %v1087 = vld [vmem:[%s272 + $0x1720] sm:$0xff]
        %v1088 = vld [vmem:[%s272 + $0x1728] sm:$0xff]
        %v1089 = vld [vmem:[%s272 + $0x1730] sm:$0xff]
        %v1090 = vld [vmem:[%s272 + $0x1738] sm:$0xff]
        %v1091 = vld [vmem:[%s272 + $0x1740] sm:$0xff]
        %v1092 = vld [vmem:[%s272 + $0x1748] sm:$0xff]
        %v1093 = vld [vmem:[%s272 + $0x1750] sm:$0xff]
        %v1094 = vld [vmem:[%s272 + $0x1758] sm:$0xff]
        %v1095 = vld [vmem:[%s272 + $0x1760] sm:$0xff]
        %v1096 = vld [vmem:[%s272 + $0x1768] sm:$0xff]
        %v1097 = vld [vmem:[%s272 + $0x1770] sm:$0xff]
        %v1098 = vld [vmem:[%s272 + $0x1778] sm:$0xff]
        %v1099 = vld [vmem:[%s272 + $0x1780] sm:$0xff]
        %v1100 = vld [vmem:[%s272 + $0x1788] sm:$0xff]
        %v1101 = vld [vmem:[%s272 + $0x1790] sm:$0xff]
        %v1102 = vld [vmem:[%s272 + $0x1798] sm:$0xff]
        %v1103 = vld [vmem:[%s272 + $0x17a0] sm:$0xff]
        %v1104 = vld [vmem:[%s272 + $0x17a8] sm:$0xff]
        %v1105 = vld [vmem:[%s272 + $0x17b0] sm:$0xff]
        %v1106 = vld [vmem:[%s272 + $0x17b8] sm:$0xff]
        %v1107 = vld [vmem:[%s272 + $0x17c0] sm:$0xff]
        %v1108 = vld [vmem:[%s272 + $0x17c8] sm:$0xff]
        %v1109 = vld [vmem:[%s272 + $0x17d0] sm:$0xff]
        %v1110 = vld [vmem:[%s272 + $0x17d8] sm:$0xff]
        %v1111 = vld [vmem:[%s272 + $0x17e0] sm:$0xff]
        %v1112 = vld [vmem:[%s272 + $0x17e8] sm:$0xff]
        %v1113 = vld [vmem:[%s272 + $0x17f0] sm:$0xff]
        %v1114 = vld [vmem:[%s272 + $0x17f8] sm:$0xff]
        %v1115 = vld [vmem:[%s272 + $0x1800] sm:$0xff]
        %v1116 = vld [vmem:[%s272 + $0x1808] sm:$0xff]
        %v1117 = vld [vmem:[%s272 + $0x1810] sm:$0xff]
        %v1118 = vld [vmem:[%s272 + $0x1818] sm:$0xff]
        %v1119 = vld [vmem:[%s272 + $0x1820] sm:$0xff]
        %v1120 = vld [vmem:[%s272 + $0x1828] sm:$0xff]
        %v1121 = vld [vmem:[%s272 + $0x1830] sm:$0xff]
        %v1122 = vld [vmem:[%s272 + $0x1838] sm:$0xff]
        %v1123 = vld [vmem:[%s272 + $0x1840] sm:$0xff]
        %v1124 = vld [vmem:[%s272 + $0x1848] sm:$0xff]
        %v1125 = vld [vmem:[%s272 + $0x1850] sm:$0xff]
        %v1126 = vld [vmem:[%s272 + $0x1858] sm:$0xff]
        %v1127 = vld [vmem:[%s272 + $0x1860] sm:$0xff]
        %v1128 = vld [vmem:[%s272 + $0x1868] sm:$0xff]
        %v1129 = vld [vmem:[%s272 + $0x1870] sm:$0xff]
        %v1130 = vld [vmem:[%s272 + $0x1878] sm:$0xff]
        %v1131 = vld [vmem:[%s272 + $0x1880] sm:$0xff]
        %v1132 = vld [vmem:[%s272 + $0x1888] sm:$0xff]
        %v1133 = vld [vmem:[%s272 + $0x1890] sm:$0xff]
        %v1134 = vld [vmem:[%s272 + $0x1898] sm:$0xff]
        %v1135 = vld [vmem:[%s272 + $0x18a0] sm:$0xff]
        %v1136 = vld [vmem:[%s272 + $0x18a8] sm:$0xff]
        %v1137 = vld [vmem:[%s272 + $0x18b0] sm:$0xff]
        %v1138 = vld [vmem:[%s272 + $0x18b8] sm:$0xff]
        %v1139 = vld [vmem:[%s272 + $0x18c0] sm:$0xff]
        %v1140 = vld [vmem:[%s272 + $0x18c8] sm:$0xff]
        %v1141 = vld [vmem:[%s272 + $0x18d0] sm:$0xff]
        %v1142 = vld [vmem:[%s272 + $0x18d8] sm:$0xff]
        %v1143 = vld [vmem:[%s272 + $0x18e0] sm:$0xff]
        %v1144 = vld [vmem:[%s272 + $0x18e8] sm:$0xff]
        %v1145 = vld [vmem:[%s272 + $0x18f0] sm:$0xff]
        %v1146 = vld [vmem:[%s272 + $0x18f8] sm:$0xff]
        %v1147 = vld [vmem:[%s272 + $0x1900] sm:$0xff]
        %v1148 = vld [vmem:[%s272 + $0x1908] sm:$0xff]
        %v1149 = vld [vmem:[%s272 + $0x1910] sm:$0xff]
        %v1150 = vld [vmem:[%s272 + $0x1918] sm:$0xff]
        %v1151 = vld [vmem:[%s272 + $0x1920] sm:$0xff]
        %v1152 = vld [vmem:[%s272 + $0x1928] sm:$0xff]
        %v1153 = vld [vmem:[%s272 + $0x1930] sm:$0xff]
        %v1154 = vld [vmem:[%s272 + $0x1938] sm:$0xff]
        %v1155 = vld [vmem:[%s272 + $0x1940] sm:$0xff]
        %v1156 = vld [vmem:[%s272 + $0x1948] sm:$0xff]
        %v1157 = vld [vmem:[%s272 + $0x1950] sm:$0xff]
        %v1158 = vld [vmem:[%s272 + $0x1958] sm:$0xff]
        %v1159 = vld [vmem:[%s272 + $0x1960] sm:$0xff]
        %v1160 = vld [vmem:[%s272 + $0x1968] sm:$0xff]
        %v1161 = vld [vmem:[%s272 + $0x1970] sm:$0xff]
        %v1162 = vld [vmem:[%s272 + $0x1978] sm:$0xff]
        %v1163 = vld [vmem:[%s272 + $0x1980] sm:$0xff]
        %v1164 = vld [vmem:[%s272 + $0x1988] sm:$0xff]
        %v1165 = vld [vmem:[%s272 + $0x1990] sm:$0xff]
        %v1166 = vld [vmem:[%s272 + $0x1998] sm:$0xff]
        %v1167 = vld [vmem:[%s272 + $0x19a0] sm:$0xff]
        %v1168 = vld [vmem:[%s272 + $0x19a8] sm:$0xff]
        %v1169 = vld [vmem:[%s272 + $0x19b0] sm:$0xff]
        %v1170 = vld [vmem:[%s272 + $0x19b8] sm:$0xff]
        %v1171 = vld [vmem:[%s272 + $0x19c0] sm:$0xff]
        %v1172 = vld [vmem:[%s272 + $0x19c8] sm:$0xff]
        %v1173 = vld [vmem:[%s272 + $0x19d0] sm:$0xff]
        %v1174 = vld [vmem:[%s272 + $0x19d8] sm:$0xff]
        %v1175 = vld [vmem:[%s272 + $0x19e0] sm:$0xff]
        %v1176 = vld [vmem:[%s272 + $0x19e8] sm:$0xff]
        %v1177 = vld [vmem:[%s272 + $0x19f0] sm:$0xff]
        %v1178 = vld [vmem:[%s272 + $0x19f8] sm:$0xff]
        %v1179 = vld [vmem:[%s272 + $0x1a00] sm:$0xff]
        %v1180 = vld [vmem:[%s272 + $0x1a08] sm:$0xff]
        %v1181 = vld [vmem:[%s272 + $0x1a10] sm:$0xff]
        %v1182 = vld [vmem:[%s272 + $0x1a18] sm:$0xff]
        %v1183 = vld [vmem:[%s272 + $0x1a20] sm:$0xff]
        %v1184 = vld [vmem:[%s272 + $0x1a28] sm:$0xff]
        %v1185 = vld [vmem:[%s272 + $0x1a30] sm:$0xff]
        %v1186 = vld [vmem:[%s272 + $0x1a38] sm:$0xff]
        %v1187 = vld [vmem:[%s272 + $0x1a40] sm:$0xff]
        %v1188 = vld [vmem:[%s272 + $0x1a48] sm:$0xff]
        %v1189 = vld [vmem:[%s272 + $0x1a50] sm:$0xff]
        %v1190 = vld [vmem:[%s272 + $0x1a58] sm:$0xff]
        %v1191 = vld [vmem:[%s272 + $0x1a60] sm:$0xff]
        %v1192 = vld [vmem:[%s272 + $0x1a68] sm:$0xff]
        %v1193 = vld [vmem:[%s272 + $0x1a70] sm:$0xff]
        %v1194 = vld [vmem:[%s272 + $0x1a78] sm:$0xff]
        %v1195 = vld [vmem:[%s272 + $0x1a80] sm:$0xff]
        %v1196 = vld [vmem:[%s272 + $0x1a88] sm:$0xff]
        %v1197 = vld [vmem:[%s272 + $0x1a90] sm:$0xff]
        %v1198 = vld [vmem:[%s272 + $0x1a98] sm:$0xff]
        %v1199 = vld [vmem:[%s272 + $0x1aa0] sm:$0xff]
        %v1200 = vld [vmem:[%s272 + $0x1aa8] sm:$0xff]
        %v1201 = vld [vmem:[%s272 + $0x1ab0] sm:$0xff]
        %v1202 = vld [vmem:[%s272 + $0x1ab8] sm:$0xff]
        %v1203 = vld [vmem:[%s272 + $0x1ac0] sm:$0xff]
        %v1204 = vld [vmem:[%s272 + $0x1ac8] sm:$0xff]
        %v1205 = vld [vmem:[%s272 + $0x1ad0] sm:$0xff]
        %v1206 = vld [vmem:[%s272 + $0x1ad8] sm:$0xff]
        %v1207 = vld [vmem:[%s272 + $0x1ae0] sm:$0xff]
        %v1208 = vld [vmem:[%s272 + $0x1ae8] sm:$0xff]
        %v1209 = vld [vmem:[%s272 + $0x1af0] sm:$0xff]
        %v1210 = vld [vmem:[%s272 + $0x1af8] sm:$0xff]
        %v1211 = vld [vmem:[%s272 + $0x1b00] sm:$0xff]
        %v1212 = vld [vmem:[%s272 + $0x1b08] sm:$0xff]
        %v1213 = vld [vmem:[%s272 + $0x1b10] sm:$0xff]
        %v1214 = vld [vmem:[%s272 + $0x1b18] sm:$0xff]
        %v1215 = vld [vmem:[%s272 + $0x1b20] sm:$0xff]
        %v1216 = vld [vmem:[%s272 + $0x1b28] sm:$0xff]
        %v1217 = vld [vmem:[%s272 + $0x1b30] sm:$0xff]
        %v1218 = vld [vmem:[%s272 + $0x1b38] sm:$0xff]
        %v1219 = vld [vmem:[%s272 + $0x1b40] sm:$0xff]
        %v1220 = vld [vmem:[%s272 + $0x1b48] sm:$0xff]
        %v1221 = vld [vmem:[%s272 + $0x1b50] sm:$0xff]
        %v1222 = vld [vmem:[%s272 + $0x1b58] sm:$0xff]
        %v1223 = vld [vmem:[%s272 + $0x1b60] sm:$0xff]
        %v1224 = vld [vmem:[%s272 + $0x1b68] sm:$0xff]
        %v1225 = vld [vmem:[%s272 + $0x1b70] sm:$0xff]
        %v1226 = vld [vmem:[%s272 + $0x1b78] sm:$0xff]
        %v1227 = vld [vmem:[%s272 + $0x1b80] sm:$0xff]
        %v1228 = vld [vmem:[%s272 + $0x1b88] sm:$0xff]
        %v1229 = vld [vmem:[%s272 + $0x1b90] sm:$0xff]
        %v1230 = vld [vmem:[%s272 + $0x1b98] sm:$0xff]
        %v1231 = vld [vmem:[%s272 + $0x1ba0] sm:$0xff]
        %v1232 = vld [vmem:[%s272 + $0x1ba8] sm:$0xff]
        %v1233 = vld [vmem:[%s272 + $0x1bb0] sm:$0xff]
        %v1234 = vld [vmem:[%s272 + $0x1bb8] sm:$0xff]
        %v1235 = vld [vmem:[%s272 + $0x1bc0] sm:$0xff]
        %v1236 = vld [vmem:[%s272 + $0x1bc8] sm:$0xff]
        %v1237 = vld [vmem:[%s272 + $0x1bd0] sm:$0xff]
        %v1238 = vld [vmem:[%s272 + $0x1bd8] sm:$0xff]
        %v1239 = vld [vmem:[%s272 + $0x1be0] sm:$0xff]
        %v1240 = vld [vmem:[%s272 + $0x1be8] sm:$0xff]
        %v1241 = vld [vmem:[%s272 + $0x1bf0] sm:$0xff]
        %v1242 = vld [vmem:[%s272 + $0x1bf8] sm:$0xff]
        %v1243 = vld [vmem:[%s272 + $0x1c00] sm:$0xff]
        %v1244 = vld [vmem:[%s272 + $0x1c08] sm:$0xff]
        %v1245 = vld [vmem:[%s272 + $0x1c10] sm:$0xff]
        %v1246 = vld [vmem:[%s272 + $0x1c18] sm:$0xff]
        %v1247 = vld [vmem:[%s272 + $0x1c20] sm:$0xff]
        %v1248 = vld [vmem:[%s272 + $0x1c28] sm:$0xff]
        %v1249 = vld [vmem:[%s272 + $0x1c30] sm:$0xff]
        %v1250 = vld [vmem:[%s272 + $0x1c38] sm:$0xff]
        %v1251 = vld [vmem:[%s272 + $0x1c40] sm:$0xff]
        %v1252 = vld [vmem:[%s272 + $0x1c48] sm:$0xff]
        %v1253 = vld [vmem:[%s272 + $0x1c50] sm:$0xff]
        %v1254 = vld [vmem:[%s272 + $0x1c58] sm:$0xff]
        %v1255 = vld [vmem:[%s272 + $0x1c60] sm:$0xff]
        %v1256 = vld [vmem:[%s272 + $0x1c68] sm:$0xff]
        %v1257 = vld [vmem:[%s272 + $0x1c70] sm:$0xff]
        %v1258 = vld [vmem:[%s272 + $0x1c78] sm:$0xff]
        %v1259 = vld [vmem:[%s272 + $0x1c80] sm:$0xff]
        %v1260 = vld [vmem:[%s272 + $0x1c88] sm:$0xff]
        %v1261 = vld [vmem:[%s272 + $0x1c90] sm:$0xff]
        %v1262 = vld [vmem:[%s272 + $0x1c98] sm:$0xff]
        %v1263 = vld [vmem:[%s272 + $0x1ca0] sm:$0xff]
        %v1264 = vld [vmem:[%s272 + $0x1ca8] sm:$0xff]
        %v1265 = vld [vmem:[%s272 + $0x1cb0] sm:$0xff]
        %v1266 = vld [vmem:[%s272 + $0x1cb8] sm:$0xff]
        %v1267 = vld [vmem:[%s272 + $0x1cc0] sm:$0xff]
        %v1268 = vld [vmem:[%s272 + $0x1cc8] sm:$0xff]
        %v1269 = vld [vmem:[%s272 + $0x1cd0] sm:$0xff]
        %v1270 = vld [vmem:[%s272 + $0x1cd8] sm:$0xff]
        %v1271 = vld [vmem:[%s272 + $0x1ce0] sm:$0xff]
        %v1272 = vld [vmem:[%s272 + $0x1ce8] sm:$0xff]
        %v1273 = vld [vmem:[%s272 + $0x1cf0] sm:$0xff]
        %v1274 = vld [vmem:[%s272 + $0x1cf8] sm:$0xff]
        %v1275 = vld [vmem:[%s272 + $0x1d00] sm:$0xff]
        %v1276 = vld [vmem:[%s272 + $0x1d08] sm:$0xff]
        %v1277 = vld [vmem:[%s272 + $0x1d10] sm:$0xff]
        %v1278 = vld [vmem:[%s272 + $0x1d18] sm:$0xff]
        %v1279 = vld [vmem:[%s272 + $0x1d20] sm:$0xff]
        %v1280 = vld [vmem:[%s272 + $0x1d28] sm:$0xff]
        %v1281 = vld [vmem:[%s272 + $0x1d30] sm:$0xff]
        %v1282 = vld [vmem:[%s272 + $0x1d38] sm:$0xff]
        %v1283 = vld [vmem:[%s272 + $0x1d40] sm:$0xff]
        %v1284 = vld [vmem:[%s272 + $0x1d48] sm:$0xff]
        %v1285 = vld [vmem:[%s272 + $0x1d50] sm:$0xff]
        %v1286 = vld [vmem:[%s272 + $0x1d58] sm:$0xff]
        %v1287 = vld [vmem:[%s272 + $0x1d60] sm:$0xff]
        %v1288 = vld [vmem:[%s272 + $0x1d68] sm:$0xff]
        %v1289 = vld [vmem:[%s272 + $0x1d70] sm:$0xff]
        %v1290 = vld [vmem:[%s272 + $0x1d78] sm:$0xff]
        %v1291 = vld [vmem:[%s272 + $0x1d80] sm:$0xff]
        %v1292 = vld [vmem:[%s272 + $0x1d88] sm:$0xff]
        %v1293 = vld [vmem:[%s272 + $0x1d90] sm:$0xff]
        %v1294 = vld [vmem:[%s272 + $0x1d98] sm:$0xff]
        %v1295 = vld [vmem:[%s272 + $0x1da0] sm:$0xff]
        %v1296 = vld [vmem:[%s272 + $0x1da8] sm:$0xff]
        %v1297 = vld [vmem:[%s272 + $0x1db0] sm:$0xff]
        %v1298 = vld [vmem:[%s272 + $0x1db8] sm:$0xff]
        %v1299 = vld [vmem:[%s272 + $0x1dc0] sm:$0xff]
        %v1300 = vld [vmem:[%s272 + $0x1dc8] sm:$0xff]
        %v1301 = vld [vmem:[%s272 + $0x1dd0] sm:$0xff]
        %v1302 = vld [vmem:[%s272 + $0x1dd8] sm:$0xff]
        %v1303 = vld [vmem:[%s272 + $0x1de0] sm:$0xff]
        %v1304 = vld [vmem:[%s272 + $0x1de8] sm:$0xff]
        %v1305 = vld [vmem:[%s272 + $0x1df0] sm:$0xff]
        %v1306 = vld [vmem:[%s272 + $0x1df8] sm:$0xff]
        %v1307 = vld [vmem:[%s272 + $0x1e00] sm:$0xff]
        %v1308 = vld [vmem:[%s272 + $0x1e08] sm:$0xff]
        %v1309 = vld [vmem:[%s272 + $0x1e10] sm:$0xff]
        %v1310 = vld [vmem:[%s272 + $0x1e18] sm:$0xff]
        %v1311 = vld [vmem:[%s272 + $0x1e20] sm:$0xff]
        %v1312 = vld [vmem:[%s272 + $0x1e28] sm:$0xff]
        %v1313 = vld [vmem:[%s272 + $0x1e30] sm:$0xff]
        %v1314 = vld [vmem:[%s272 + $0x1e38] sm:$0xff]
        %v1315 = vld [vmem:[%s272 + $0x1e40] sm:$0xff]
        %v1316 = vld [vmem:[%s272 + $0x1e48] sm:$0xff]
        %v1317 = vld [vmem:[%s272 + $0x1e50] sm:$0xff]
        %v1318 = vld [vmem:[%s272 + $0x1e58] sm:$0xff]
        %v1319 = vld [vmem:[%s272 + $0x1e60] sm:$0xff]
        %v1320 = vld [vmem:[%s272 + $0x1e68] sm:$0xff]
        %v1321 = vld [vmem:[%s272 + $0x1e70] sm:$0xff]
        %v1322 = vld [vmem:[%s272 + $0x1e78] sm:$0xff]
        %v1323 = vld [vmem:[%s272 + $0x1e80] sm:$0xff]
        %v1324 = vld [vmem:[%s272 + $0x1e88] sm:$0xff]
        %v1325 = vld [vmem:[%s272 + $0x1e90] sm:$0xff]
        %v1326 = vld [vmem:[%s272 + $0x1e98] sm:$0xff]
        %v1327 = vld [vmem:[%s272 + $0x1ea0] sm:$0xff]
        %v1328 = vld [vmem:[%s272 + $0x1ea8] sm:$0xff]
        %v1329 = vld [vmem:[%s272 + $0x1eb0] sm:$0xff]
        %v1330 = vld [vmem:[%s272 + $0x1eb8] sm:$0xff]
        %v1331 = vld [vmem:[%s272 + $0x1ec0] sm:$0xff]
        %v1332 = vld [vmem:[%s272 + $0x1ec8] sm:$0xff]
        %v1333 = vld [vmem:[%s272 + $0x1ed0] sm:$0xff]
        %v1334 = vld [vmem:[%s272 + $0x1ed8] sm:$0xff]
        %v1335 = vld [vmem:[%s272 + $0x1ee0] sm:$0xff]
        %v1336 = vld [vmem:[%s272 + $0x1ee8] sm:$0xff]
        %v1337 = vld [vmem:[%s272 + $0x1ef0] sm:$0xff]
        %v1338 = vld [vmem:[%s272 + $0x1ef8] sm:$0xff]
        %v1339 = vld [vmem:[%s272 + $0x1f00] sm:$0xff]
        %v1340 = vld [vmem:[%s272 + $0x1f08] sm:$0xff]
        %v1341 = vld [vmem:[%s272 + $0x1f10] sm:$0xff]
        %v1342 = vld [vmem:[%s272 + $0x1f18] sm:$0xff]
        %v1343 = vld [vmem:[%s272 + $0x1f20] sm:$0xff]
        %v1344 = vld [vmem:[%s272 + $0x1f28] sm:$0xff]
        %v1345 = vld [vmem:[%s272 + $0x1f30] sm:$0xff]
        %v1346 = vld [vmem:[%s272 + $0x1f38] sm:$0xff]
        %v1347 = vld [vmem:[%s272 + $0x1f40] sm:$0xff]
        %v1348 = vld [vmem:[%s272 + $0x1f48] sm:$0xff]
        %v1349 = vld [vmem:[%s272 + $0x1f50] sm:$0xff]
        %v1350 = vld [vmem:[%s272 + $0x1f58] sm:$0xff]
        %v1351 = vld [vmem:[%s272 + $0x1f60] sm:$0xff]
        %v1352 = vld [vmem:[%s272 + $0x1f68] sm:$0xff]
        %v1353 = vld [vmem:[%s272 + $0x1f70] sm:$0xff]
        %v1354 = vld [vmem:[%s272 + $0x1f78] sm:$0xff]
        %v1355 = vld [vmem:[%s272 + $0x1f80] sm:$0xff]
        %v1356 = vld [vmem:[%s272 + $0x1f88] sm:$0xff]
        %v1357 = vld [vmem:[%s272 + $0x1f90] sm:$0xff]
        %v1358 = vld [vmem:[%s272 + $0x1f98] sm:$0xff]
        %v1359 = vld [vmem:[%s272 + $0x1fa0] sm:$0xff]
        %v1360 = vld [vmem:[%s272 + $0x1fa8] sm:$0xff]
        %v1361 = vld [vmem:[%s272 + $0x1fb0] sm:$0xff]
        %v1362 = vld [vmem:[%s272 + $0x1fb8] sm:$0xff]
        %v1363 = vld [vmem:[%s272 + $0x1fc0] sm:$0xff]
        %v1364 = vld [vmem:[%s272 + $0x1fc8] sm:$0xff]
        %v1365 = vld [vmem:[%s272 + $0x1fd0] sm:$0xff]
        %v1366 = vld [vmem:[%s272 + $0x1fd8] sm:$0xff]
        %v1367 = vld [vmem:[%s272 + $0x1fe0] sm:$0xff]
        %v1368 = vld [vmem:[%s272 + $0x1fe8] sm:$0xff]
        %v1369 = vld [vmem:[%s272 + $0x1ff0] sm:$0xff]
        %v1370 = vld [vmem:[%s272 + $0x1ff8] sm:$0xff]
        %v1371 = vld [vmem:[%s272 + $0x2000] sm:$0xff]
        %v1372 = vld [vmem:[%s272 + $0x2008] sm:$0xff]
        %v1373 = vld [vmem:[%s272 + $0x2010] sm:$0xff]
        %v1374 = vld [vmem:[%s272 + $0x2018] sm:$0xff]
        %v1375 = vld [vmem:[%s272 + $0x2020] sm:$0xff]
        %v1376 = vld [vmem:[%s272 + $0x2028] sm:$0xff]
        %v1377 = vld [vmem:[%s272 + $0x2030] sm:$0xff]
        %v1378 = vld [vmem:[%s272 + $0x2038] sm:$0xff]
        %v1379 = vld [vmem:[%s272 + $0x2040] sm:$0xff]
        %v1380 = vld [vmem:[%s272 + $0x2048] sm:$0xff]
        %v1381 = vld [vmem:[%s272 + $0x2050] sm:$0xff]
        %v1382 = vld [vmem:[%s272 + $0x2058] sm:$0xff]
        %v1383 = vld [vmem:[%s272 + $0x2060] sm:$0xff]
        %v1384 = vld [vmem:[%s272 + $0x2068] sm:$0xff]
        %v1385 = vld [vmem:[%s272 + $0x2070] sm:$0xff]
        %v1386 = vld [vmem:[%s272 + $0x2078] sm:$0xff]
        %v1387 = vld [vmem:[%s272 + $0x2080] sm:$0xff]
        %v1388 = vld [vmem:[%s272 + $0x2088] sm:$0xff]
        %v1389 = vld [vmem:[%s272 + $0x2090] sm:$0xff]
        %v1390 = vld [vmem:[%s272 + $0x2098] sm:$0xff]
        %v1391 = vld [vmem:[%s272 + $0x20a0] sm:$0xff]
        %v1392 = vld [vmem:[%s272 + $0x20a8] sm:$0xff]
        %v1393 = vld [vmem:[%s272 + $0x20b0] sm:$0xff]
        %v1394 = vld [vmem:[%s272 + $0x20b8] sm:$0xff]
        %v1395 = vld [vmem:[%s272 + $0x20c0] sm:$0xff]
        %v1396 = vld [vmem:[%s272 + $0x20c8] sm:$0xff]
        %v1397 = vld [vmem:[%s272 + $0x20d0] sm:$0xff]
        %v1398 = vld [vmem:[%s272 + $0x20d8] sm:$0xff]
        %v1399 = vld [vmem:[%s272 + $0x20e0] sm:$0xff]
        %v1400 = vld [vmem:[%s272 + $0x20e8] sm:$0xff]
        %v1401 = vld [vmem:[%s272 + $0x20f0] sm:$0xff]
        %v1402 = vld [vmem:[%s272 + $0x20f8] sm:$0xff]
        %v1403 = vld [vmem:[%s272 + $0x2100] sm:$0xff]
        %v1404 = vld [vmem:[%s272 + $0x2108] sm:$0xff]
        %v1405 = vld [vmem:[%s272 + $0x2110] sm:$0xff]
        %v1406 = vld [vmem:[%s272 + $0x2118] sm:$0xff]
        %v1407 = vld [vmem:[%s272 + $0x2120] sm:$0xff]
        %v1408 = vld [vmem:[%s272 + $0x2128] sm:$0xff]
        %v1409 = vld [vmem:[%s272 + $0x2130] sm:$0xff]
        %v1410 = vld [vmem:[%s272 + $0x2138] sm:$0xff]
        %v1411 = vld [vmem:[%s272 + $0x2140] sm:$0xff]
        %v1412 = vld [vmem:[%s272 + $0x2148] sm:$0xff]
        %v1413 = vld [vmem:[%s272 + $0x2150] sm:$0xff]
        %v1414 = vld [vmem:[%s272 + $0x2158] sm:$0xff]
        %v1415 = vld [vmem:[%s272 + $0x2160] sm:$0xff]
        %v1416 = vld [vmem:[%s272 + $0x2168] sm:$0xff]
        %v1417 = vld [vmem:[%s272 + $0x2170] sm:$0xff]
        %v1418 = vld [vmem:[%s272 + $0x2178] sm:$0xff]
        %v1419 = vld [vmem:[%s272 + $0x2180] sm:$0xff]
        %v1420 = vld [vmem:[%s272 + $0x2188] sm:$0xff]
        %v1421 = vld [vmem:[%s272 + $0x2190] sm:$0xff]
        %v1422 = vld [vmem:[%s272 + $0x2198] sm:$0xff]
        %v1423 = vld [vmem:[%s272 + $0x21a0] sm:$0xff]
        %v1424 = vld [vmem:[%s272 + $0x21a8] sm:$0xff]
        %v1425 = vld [vmem:[%s272 + $0x21b0] sm:$0xff]
        %v1426 = vld [vmem:[%s272 + $0x21b8] sm:$0xff]
        %v1427 = vld [vmem:[%s272 + $0x21c0] sm:$0xff]
        %v1428 = vld [vmem:[%s272 + $0x21c8] sm:$0xff]
        %v1429 = vld [vmem:[%s272 + $0x21d0] sm:$0xff]
        %v1430 = vld [vmem:[%s272 + $0x21d8] sm:$0xff]
        %v1431 = vld [vmem:[%s272 + $0x21e0] sm:$0xff]
        %v1432 = vld [vmem:[%s272 + $0x21e8] sm:$0xff]
        %v1433 = vld [vmem:[%s272 + $0x21f0] sm:$0xff]
        %v1434 = vld [vmem:[%s272 + $0x21f8] sm:$0xff]
        %v1435 = vld [vmem:[%s272 + $0x2200] sm:$0xff]
        %v1436 = vld [vmem:[%s272 + $0x2208] sm:$0xff]
        %v1437 = vld [vmem:[%s272 + $0x2210] sm:$0xff]
        %v1438 = vld [vmem:[%s272 + $0x2218] sm:$0xff]
        %v1439 = vld [vmem:[%s272 + $0x2220] sm:$0xff]
        %v1440 = vld [vmem:[%s272 + $0x2228] sm:$0xff]
        %v1441 = vld [vmem:[%s272 + $0x2230] sm:$0xff]
        %v1442 = vld [vmem:[%s272 + $0x2238] sm:$0xff]
        %v1443 = vld [vmem:[%s272 + $0x2240] sm:$0xff]
        %v1444 = vld [vmem:[%s272 + $0x2248] sm:$0xff]
        %v1445 = vld [vmem:[%s272 + $0x2250] sm:$0xff]
        %v1446 = vld [vmem:[%s272 + $0x2258] sm:$0xff]
        %v1447 = vld [vmem:[%s272 + $0x2260] sm:$0xff]
        %v1448 = vld [vmem:[%s272 + $0x2268] sm:$0xff]
        %v1449 = vld [vmem:[%s272 + $0x2270] sm:$0xff]
        %v1450 = vld [vmem:[%s272 + $0x2278] sm:$0xff]
        %v1451 = vld [vmem:[%s272 + $0x2280] sm:$0xff]
        %v1452 = vld [vmem:[%s272 + $0x2288] sm:$0xff]
        %v1453 = vld [vmem:[%s272 + $0x2290] sm:$0xff]
        %v1454 = vld [vmem:[%s272 + $0x2298] sm:$0xff]
        %v1455 = vld [vmem:[%s272 + $0x22a0] sm:$0xff]
        %v1456 = vld [vmem:[%s272 + $0x22a8] sm:$0xff]
        %v1457 = vld [vmem:[%s272 + $0x22b0] sm:$0xff]
        %v1458 = vld [vmem:[%s272 + $0x22b8] sm:$0xff]
        %v1459 = vld [vmem:[%s272 + $0x22c0] sm:$0xff]
        %v1460 = vld [vmem:[%s272 + $0x22c8] sm:$0xff]
        %v1461 = vld [vmem:[%s272 + $0x22d0] sm:$0xff]
        %v1462 = vld [vmem:[%s272 + $0x22d8] sm:$0xff]
        %v1463 = vld [vmem:[%s272 + $0x22e0] sm:$0xff]
        %v1464 = vld [vmem:[%s272 + $0x22e8] sm:$0xff]
        %v1465 = vld [vmem:[%s272 + $0x22f0] sm:$0xff]
        %v1466 = vld [vmem:[%s272 + $0x22f8] sm:$0xff]
        %v1467 = vld [vmem:[%s272 + $0x2300] sm:$0xff]
        %v1468 = vld [vmem:[%s272 + $0x2308] sm:$0xff]
        %v1469 = vld [vmem:[%s272 + $0x2310] sm:$0xff]
        %v1470 = vld [vmem:[%s272 + $0x2318] sm:$0xff]
        %v1471 = vld [vmem:[%s272 + $0x2320] sm:$0xff]
        %v1472 = vld [vmem:[%s272 + $0x2328] sm:$0xff]
        %v1473 = vld [vmem:[%s272 + $0x2330] sm:$0xff]
        %v1474 = vld [vmem:[%s272 + $0x2338] sm:$0xff]
        %v1475 = vld [vmem:[%s272 + $0x2340] sm:$0xff]
        %v1476 = vld [vmem:[%s272 + $0x2348] sm:$0xff]
        %v1477 = vld [vmem:[%s272 + $0x2350] sm:$0xff]
        %v1478 = vld [vmem:[%s272 + $0x2358] sm:$0xff]
        %v1479 = vld [vmem:[%s272 + $0x2360] sm:$0xff]
        %v1480 = vld [vmem:[%s272 + $0x2368] sm:$0xff]
        %v1481 = vld [vmem:[%s272 + $0x2370] sm:$0xff]
        %v1482 = vld [vmem:[%s272 + $0x2378] sm:$0xff]
        %v1483 = vld [vmem:[%s272 + $0x2380] sm:$0xff]
        %v1484 = vld [vmem:[%s272 + $0x2388] sm:$0xff]
        %v1485 = vld [vmem:[%s272 + $0x2390] sm:$0xff]
        %v1486 = vld [vmem:[%s272 + $0x2398] sm:$0xff]
        %v1487 = vld [vmem:[%s272 + $0x23a0] sm:$0xff]
        %v1488 = vld [vmem:[%s272 + $0x23a8] sm:$0xff]
        %v1489 = vld [vmem:[%s272 + $0x23b0] sm:$0xff]
        %v1490 = vld [vmem:[%s272 + $0x23b8] sm:$0xff]
        %v1491 = vld [vmem:[%s272 + $0x23c0] sm:$0xff]
        %v1492 = vld [vmem:[%s272 + $0x23c8] sm:$0xff]
        %v1493 = vld [vmem:[%s272 + $0x23d0] sm:$0xff]
        %v1494 = vld [vmem:[%s272 + $0x23d8] sm:$0xff]
        %v1495 = vld [vmem:[%s272 + $0x23e0] sm:$0xff]
        %v1496 = vld [vmem:[%s272 + $0x23e8] sm:$0xff]
        %v1497 = vld [vmem:[%s272 + $0x23f0] sm:$0xff]
        %v1498 = vld [vmem:[%s272 + $0x23f8] sm:$0xff]
        %v1499 = vld [vmem:[%s272 + $0x2400] sm:$0xff]
        %v1500 = vld [vmem:[%s272 + $0x2408] sm:$0xff]
        %v1501 = vld [vmem:[%s272 + $0x2410] sm:$0xff]
        %v1502 = vld [vmem:[%s272 + $0x2418] sm:$0xff]
        %v1503 = vld [vmem:[%s272 + $0x2420] sm:$0xff]
        %v1504 = vld [vmem:[%s272 + $0x2428] sm:$0xff]
        %v1505 = vld [vmem:[%s272 + $0x2430] sm:$0xff]
        %v1506 = vld [vmem:[%s272 + $0x2438] sm:$0xff]
        %v1507 = vld [vmem:[%s272 + $0x2440] sm:$0xff]
        %v1508 = vld [vmem:[%s272 + $0x2448] sm:$0xff]
        %v1509 = vld [vmem:[%s272 + $0x2450] sm:$0xff]
        %v1510 = vld [vmem:[%s272 + $0x2458] sm:$0xff]
        %v1511 = vld [vmem:[%s272 + $0x2460] sm:$0xff]
        %v1512 = vld [vmem:[%s272 + $0x2468] sm:$0xff]
        %v1513 = vld [vmem:[%s272 + $0x2470] sm:$0xff]
        %v1514 = vld [vmem:[%s272 + $0x2478] sm:$0xff]
        %v1515 = vld [vmem:[%s272 + $0x2480] sm:$0xff]
        %v1516 = vld [vmem:[%s272 + $0x2488] sm:$0xff]
        %v1517 = vld [vmem:[%s272 + $0x2490] sm:$0xff]
        %v1518 = vld [vmem:[%s272 + $0x2498] sm:$0xff]
        %v1519 = vld [vmem:[%s272 + $0x24a0] sm:$0xff]
        %v1520 = vld [vmem:[%s272 + $0x24a8] sm:$0xff]
        %v1521 = vld [vmem:[%s272 + $0x24b0] sm:$0xff]
        %v1522 = vld [vmem:[%s272 + $0x24b8] sm:$0xff]
        %v1523 = vld [vmem:[%s272 + $0x24c0] sm:$0xff]
        %v1524 = vld [vmem:[%s272 + $0x24c8] sm:$0xff]
        %v1525 = vld [vmem:[%s272 + $0x24d0] sm:$0xff]
        %v1526 = vld [vmem:[%s272 + $0x24d8] sm:$0xff]
        %v1527 = vld [vmem:[%s272 + $0x24e0] sm:$0xff]
        %v1528 = vld [vmem:[%s272 + $0x24e8] sm:$0xff]
        %v1529 = vld [vmem:[%s272 + $0x24f0] sm:$0xff]
        %v1530 = vld [vmem:[%s272 + $0x24f8] sm:$0xff]
        %v1531 = vld [vmem:[%s272 + $0x2500] sm:$0xff]
        %v1532 = vld [vmem:[%s272 + $0x2508] sm:$0xff]
        %v1533 = vld [vmem:[%s272 + $0x2510] sm:$0xff]
        %v1534 = vld [vmem:[%s272 + $0x2518] sm:$0xff]
        %v1535 = vld [vmem:[%s272 + $0x2520] sm:$0xff]
        %v1536 = vld [vmem:[%s272 + $0x2528] sm:$0xff]
        %v1537 = vld [vmem:[%s272 + $0x2530] sm:$0xff]
        %v1538 = vld [vmem:[%s272 + $0x2538] sm:$0xff]
        %v1539 = vld [vmem:[%s272 + $0x2540] sm:$0xff]
        %v1540 = vld [vmem:[%s272 + $0x2548] sm:$0xff]
        %v1541 = vld [vmem:[%s272 + $0x2550] sm:$0xff]
        %v1542 = vld [vmem:[%s272 + $0x2558] sm:$0xff]
        %v1543 = vld [vmem:[%s272 + $0x2560] sm:$0xff]
        %v1544 = vld [vmem:[%s272 + $0x2568] sm:$0xff]
        %v1545 = vld [vmem:[%s272 + $0x2570] sm:$0xff]
        %v1546 = vld [vmem:[%s272 + $0x2578] sm:$0xff]
        %v1547 = vld [vmem:[%s272 + $0x2580] sm:$0xff]
        %v1548 = vld [vmem:[%s272 + $0x2588] sm:$0xff]
        %v1549 = vld [vmem:[%s272 + $0x2590] sm:$0xff]
        %v1550 = vld [vmem:[%s272 + $0x2598] sm:$0xff]
        %v1551 = vld [vmem:[%s272 + $0x25a0] sm:$0xff]
        %v1552 = vld [vmem:[%s272 + $0x25a8] sm:$0xff]
        %v1553 = vld [vmem:[%s272 + $0x25b0] sm:$0xff]
        %v1554 = vld [vmem:[%s272 + $0x25b8] sm:$0xff]
        %v1555 = vld [vmem:[%s272 + $0x25c0] sm:$0xff]
        %v1556 = vld [vmem:[%s272 + $0x25c8] sm:$0xff]
        %v1557 = vld [vmem:[%s272 + $0x25d0] sm:$0xff]
        %v1558 = vld [vmem:[%s272 + $0x25d8] sm:$0xff]
        %v1559 = vld [vmem:[%s272 + $0x25e0] sm:$0xff]
        %v1560 = vld [vmem:[%s272 + $0x25e8] sm:$0xff]
        %v1561 = vld [vmem:[%s272 + $0x25f0] sm:$0xff]
        %v1562 = vld [vmem:[%s272 + $0x25f8] sm:$0xff]
        %v1563 = vld [vmem:[%s272 + $0x2600] sm:$0xff]
        %v1564 = vld [vmem:[%s272 + $0x2608] sm:$0xff]
        %v1565 = vld [vmem:[%s272 + $0x2610] sm:$0xff]
        %v1566 = vld [vmem:[%s272 + $0x2618] sm:$0xff]
        %v1567 = vld [vmem:[%s272 + $0x2620] sm:$0xff]
        %v1568 = vld [vmem:[%s272 + $0x2628] sm:$0xff]
        %v1569 = vld [vmem:[%s272 + $0x2630] sm:$0xff]
        %v1570 = vld [vmem:[%s272 + $0x2638] sm:$0xff]
        %v1571 = vld [vmem:[%s272 + $0x2640] sm:$0xff]
        %v1572 = vld [vmem:[%s272 + $0x2648] sm:$0xff]
        %v1573 = vld [vmem:[%s272 + $0x2650] sm:$0xff]
        %v1574 = vld [vmem:[%s272 + $0x2658] sm:$0xff]
        %v1575 = vld [vmem:[%s272 + $0x2660] sm:$0xff]
        %v1576 = vld [vmem:[%s272 + $0x2668] sm:$0xff]
        %v1577 = vld [vmem:[%s272 + $0x2670] sm:$0xff]
        %v1578 = vld [vmem:[%s272 + $0x2678] sm:$0xff]
        %v1579 = vld [vmem:[%s272 + $0x2680] sm:$0xff]
        %v1580 = vld [vmem:[%s272 + $0x2688] sm:$0xff]
        %v1581 = vld [vmem:[%s272 + $0x2690] sm:$0xff]
        %v1582 = vld [vmem:[%s272 + $0x2698] sm:$0xff]
        %v1583 = vld [vmem:[%s272 + $0x26a0] sm:$0xff]
        %v1584 = vld [vmem:[%s272 + $0x26a8] sm:$0xff]
        %v1585 = vld [vmem:[%s272 + $0x26b0] sm:$0xff]
        %v1586 = vld [vmem:[%s272 + $0x26b8] sm:$0xff]
        %v1587 = vld [vmem:[%s272 + $0x26c0] sm:$0xff]
        %v1588 = vld [vmem:[%s272 + $0x26c8] sm:$0xff]
        %v1589 = vld [vmem:[%s272 + $0x26d0] sm:$0xff]
        %v1590 = vld [vmem:[%s272 + $0x26d8] sm:$0xff]
        %v1591 = vld [vmem:[%s272 + $0x26e0] sm:$0xff]
        %v1592 = vld [vmem:[%s272 + $0x26e8] sm:$0xff]
        %v1593 = vld [vmem:[%s272 + $0x26f0] sm:$0xff]
        %v1594 = vld [vmem:[%s272 + $0x26f8] sm:$0xff]
        %v1595 = vld [vmem:[%s272 + $0x2700] sm:$0xff]
        %v1596 = vld [vmem:[%s272 + $0x2708] sm:$0xff]
        %v1597 = vld [vmem:[%s272 + $0x2710] sm:$0xff]
        %v1598 = vld [vmem:[%s272 + $0x2718] sm:$0xff]
        %v1599 = vld [vmem:[%s272 + $0x2720] sm:$0xff]
        %v1600 = vld [vmem:[%s272 + $0x2728] sm:$0xff]
        %v1601 = vld [vmem:[%s272 + $0x2730] sm:$0xff]
        %v1602 = vld [vmem:[%s272 + $0x2738] sm:$0xff]
        %v1603 = vld [vmem:[%s272 + $0x2740] sm:$0xff]
        %v1604 = vld [vmem:[%s272 + $0x2748] sm:$0xff]
        %v1605 = vld [vmem:[%s272 + $0x2750] sm:$0xff]
        %v1606 = vld [vmem:[%s272 + $0x2758] sm:$0xff]
        %v1607 = vld [vmem:[%s272 + $0x2760] sm:$0xff]
        %v1608 = vld [vmem:[%s272 + $0x2768] sm:$0xff]
        %v1609 = vld [vmem:[%s272 + $0x2770] sm:$0xff]
        %v1610 = vld [vmem:[%s272 + $0x2778] sm:$0xff]
        %v1611 = vld [vmem:[%s272 + $0x2780] sm:$0xff]
        %v1612 = vld [vmem:[%s272 + $0x2788] sm:$0xff]
        %v1613 = vld [vmem:[%s272 + $0x2790] sm:$0xff]
        %v1614 = vld [vmem:[%s272 + $0x2798] sm:$0xff]
        %v1615 = vld [vmem:[%s272 + $0x27a0] sm:$0xff]
        %v1616 = vld [vmem:[%s272 + $0x27a8] sm:$0xff]
        %v1617 = vld [vmem:[%s272 + $0x27b0] sm:$0xff]
        %v1618 = vld [vmem:[%s272 + $0x27b8] sm:$0xff]
        %v1619 = vld [vmem:[%s272 + $0x27c0] sm:$0xff]
        %v1620 = vld [vmem:[%s272 + $0x27c8] sm:$0xff]
        %v1621 = vld [vmem:[%s272 + $0x27d0] sm:$0xff]
        %v1622 = vld [vmem:[%s272 + $0x27d8] sm:$0xff]
        %v1623 = vld [vmem:[%s272 + $0x27e0] sm:$0xff]
        %v1624 = vld [vmem:[%s272 + $0x27e8] sm:$0xff]
        %v1625 = vld [vmem:[%s272 + $0x27f0] sm:$0xff]
        %v1626 = vld [vmem:[%s272 + $0x27f8] sm:$0xff]
        %v1627 = vld [vmem:[%s272 + $0x2800] sm:$0xff]
        %v1628 = vld [vmem:[%s272 + $0x2808] sm:$0xff]
        %v1629 = vld [vmem:[%s272 + $0x2810] sm:$0xff]
        %v1630 = vld [vmem:[%s272 + $0x2818] sm:$0xff]
        %v1631 = vld [vmem:[%s272 + $0x2820] sm:$0xff]
        %v1632 = vld [vmem:[%s272 + $0x2828] sm:$0xff]
        %v1633 = vld [vmem:[%s272 + $0x2830] sm:$0xff]
        %v1634 = vld [vmem:[%s272 + $0x2838] sm:$0xff]
        %v1635 = vld [vmem:[%s272 + $0x2840] sm:$0xff]
        %v1636 = vld [vmem:[%s272 + $0x2848] sm:$0xff]
        %v1637 = vld [vmem:[%s272 + $0x2850] sm:$0xff]
        %v1638 = vld [vmem:[%s272 + $0x2858] sm:$0xff]
        %v1639 = vld [vmem:[%s272 + $0x2860] sm:$0xff]
        %v1640 = vld [vmem:[%s272 + $0x2868] sm:$0xff]
        %v1641 = vld [vmem:[%s272 + $0x2870] sm:$0xff]
        %v1642 = vld [vmem:[%s272 + $0x2878] sm:$0xff]
        %v1643 = vld [vmem:[%s272 + $0x2880] sm:$0xff]
        %v1644 = vld [vmem:[%s272 + $0x2888] sm:$0xff]
        %v1645 = vld [vmem:[%s272 + $0x2890] sm:$0xff]
        %v1646 = vld [vmem:[%s272 + $0x2898] sm:$0xff]
        %v1647 = vld [vmem:[%s272 + $0x28a0] sm:$0xff]
        %v1648 = vld [vmem:[%s272 + $0x28a8] sm:$0xff]
        %v1649 = vld [vmem:[%s272 + $0x28b0] sm:$0xff]
        %v1650 = vld [vmem:[%s272 + $0x28b8] sm:$0xff]
        %v1651 = vld [vmem:[%s272 + $0x28c0] sm:$0xff]
        %v1652 = vld [vmem:[%s272 + $0x28c8] sm:$0xff]
        %v1653 = vld [vmem:[%s272 + $0x28d0] sm:$0xff]
        %v1654 = vld [vmem:[%s272 + $0x28d8] sm:$0xff]
        %v1655 = vld [vmem:[%s272 + $0x28e0] sm:$0xff]
        %v1656 = vld [vmem:[%s272 + $0x28e8] sm:$0xff]
        %v1657 = vld [vmem:[%s272 + $0x28f0] sm:$0xff]
        %v1658 = vld [vmem:[%s272 + $0x28f8] sm:$0xff]
        %v1659 = vld [vmem:[%s272 + $0x2900] sm:$0xff]
        %v1660 = vld [vmem:[%s272 + $0x2908] sm:$0xff]
        %v1661 = vld [vmem:[%s272 + $0x2910] sm:$0xff]
        %v1662 = vld [vmem:[%s272 + $0x2918] sm:$0xff]
        %v1663 = vld [vmem:[%s272 + $0x2920] sm:$0xff]
        %v1664 = vld [vmem:[%s272 + $0x2928] sm:$0xff]
        %v1665 = vld [vmem:[%s272 + $0x2930] sm:$0xff]
        %v1666 = vld [vmem:[%s272 + $0x2938] sm:$0xff]
        %v1667 = vld [vmem:[%s272 + $0x2940] sm:$0xff]
        %v1668 = vld [vmem:[%s272 + $0x2948] sm:$0xff]
        %v1669 = vld [vmem:[%s272 + $0x2950] sm:$0xff]
        %v1670 = vld [vmem:[%s272 + $0x2958] sm:$0xff]
        %v1671 = vld [vmem:[%s272 + $0x2960] sm:$0xff]
        %v1672 = vld [vmem:[%s272 + $0x2968] sm:$0xff]
        %v1673 = vld [vmem:[%s272 + $0x2970] sm:$0xff]
        %v1674 = vld [vmem:[%s272 + $0x2978] sm:$0xff]
        %v1675 = vld [vmem:[%s272 + $0x2980] sm:$0xff]
        %v1676 = vld [vmem:[%s272 + $0x2988] sm:$0xff]
        %v1677 = vld [vmem:[%s272 + $0x2990] sm:$0xff]
        %v1678 = vld [vmem:[%s272 + $0x2998] sm:$0xff]
        %v1679 = vld [vmem:[%s272 + $0x29a0] sm:$0xff]
        %v1680 = vld [vmem:[%s272 + $0x29a8] sm:$0xff]
        %v1681 = vld [vmem:[%s272 + $0x29b0] sm:$0xff]
        %v1682 = vld [vmem:[%s272 + $0x29b8] sm:$0xff]
        %v1683 = vld [vmem:[%s272 + $0x29c0] sm:$0xff]
        %v1684 = vld [vmem:[%s272 + $0x29c8] sm:$0xff]
        %v1685 = vld [vmem:[%s272 + $0x29d0] sm:$0xff]
        %v1686 = vld [vmem:[%s272 + $0x29d8] sm:$0xff]
        %v1687 = vld [vmem:[%s272 + $0x29e0] sm:$0xff]
        %v1688 = vld [vmem:[%s272 + $0x29e8] sm:$0xff]
        %v1689 = vld [vmem:[%s272 + $0x29f0] sm:$0xff]
        %v1690 = vld [vmem:[%s272 + $0x29f8] sm:$0xff]
        %v1691 = vld [vmem:[%s272 + $0x2a00] sm:$0xff]
        %v1692 = vld [vmem:[%s272 + $0x2a08] sm:$0xff]
        %v1693 = vld [vmem:[%s272 + $0x2a10] sm:$0xff]
        %v1694 = vld [vmem:[%s272 + $0x2a18] sm:$0xff]
        %v1695 = vld [vmem:[%s272 + $0x2a20] sm:$0xff]
        %v1696 = vld [vmem:[%s272 + $0x2a28] sm:$0xff]
        %v1697 = vld [vmem:[%s272 + $0x2a30] sm:$0xff]
        %v1698 = vld [vmem:[%s272 + $0x2a38] sm:$0xff]
        %v1699 = vld [vmem:[%s272 + $0x2a40] sm:$0xff]
        %v1700 = vld [vmem:[%s272 + $0x2a48] sm:$0xff]
        %v1701 = vld [vmem:[%s272 + $0x2a50] sm:$0xff]
        %v1702 = vld [vmem:[%s272 + $0x2a58] sm:$0xff]
        %v1703 = vld [vmem:[%s272 + $0x2a60] sm:$0xff]
        %v1704 = vld [vmem:[%s272 + $0x2a68] sm:$0xff]
        %v1705 = vld [vmem:[%s272 + $0x2a70] sm:$0xff]
        %v1706 = vld [vmem:[%s272 + $0x2a78] sm:$0xff]
        %v1707 = vld [vmem:[%s272 + $0x2a80] sm:$0xff]
        %v1708 = vld [vmem:[%s272 + $0x2a88] sm:$0xff]
        %v1709 = vld [vmem:[%s272 + $0x2a90] sm:$0xff]
        %v1710 = vld [vmem:[%s272 + $0x2a98] sm:$0xff]
        %v1711 = vld [vmem:[%s272 + $0x2aa0] sm:$0xff]
        %v1712 = vld [vmem:[%s272 + $0x2aa8] sm:$0xff]
        %v1713 = vld [vmem:[%s272 + $0x2ab0] sm:$0xff]
        %v1714 = vld [vmem:[%s272 + $0x2ab8] sm:$0xff]
        %v1715 = vld [vmem:[%s272 + $0x2ac0] sm:$0xf]
        %v1716 = vld [vmem:[%s272 + $0x2ac8] sm:$0xf]
        %v1717 = vld [vmem:[%s272 + $0x2ad0] sm:$0xf]
        %v1718 = vld [vmem:[%s272 + $0x2ad8] sm:$0xf]
        %v1719 = vld [vmem:[%s272 + $0x2ae0] sm:$0xf]
        %v1720 = vld [vmem:[%s272 + $0x2ae8] sm:$0xf]
        %v1721 = vld [vmem:[%s272 + $0x2af0] sm:$0xf]
        %v1722 = vld [vmem:[%s272 + $0x2af8] sm:$0xf]
        %v1723 = vld [vmem:[%s272 + $0x2b00] sm:$0xf]
        %v1724 = vld [vmem:[%s272 + $0x2b08] sm:$0xf]
        %v1725 = vld [vmem:[%s272 + $0x2b10] sm:$0xf]
        %v1726 = vld [vmem:[%s272 + $0x2b18] sm:$0xf]
        %v1727 = vld [vmem:[%s272 + $0x2b20] sm:$0xf]
        %v1728 = vld [vmem:[%s272 + $0x2b28] sm:$0xf]
        %v1729 = vld [vmem:[%s272 + $0x2b30] sm:$0xf]
        %v1730 = vld [vmem:[%s272 + $0x2b38] sm:$0xf]
        %v1731 = vld [vmem:[%s272 + $0x2b40] sm:$0xf]
        %v1732 = vld [vmem:[%s272 + $0x2b48] sm:$0xf]
        %v1733 = vld [vmem:[%s272 + $0x2b50] sm:$0xf]
        %v1734 = vld [vmem:[%s272 + $0x2b58] sm:$0xf]
        %v1735 = vld [vmem:[%s272 + $0x2b60] sm:$0xf]
        %v1736 = vld [vmem:[%s272 + $0x2b68] sm:$0xf]
        %v1737 = vld [vmem:[%s272 + $0x2b70] sm:$0xf]
        %v1738 = vld [vmem:[%s272 + $0x2b78] sm:$0xf]
        %v1739 = vld [vmem:[%s272 + $0x2b80] sm:$0xf]
        %v1740 = vld [vmem:[%s272 + $0x2b88] sm:$0xf]
        %v1741 = vld [vmem:[%s272 + $0x2b90] sm:$0xf]
        %v1742 = vld [vmem:[%s272 + $0x2b98] sm:$0xf]
        %v1743 = vld [vmem:[%s272 + $0x2ba0] sm:$0xf]
        %v1744 = vld [vmem:[%s272 + $0x2ba8] sm:$0xf]
        %v1745 = vld [vmem:[%s272 + $0x2bb0] sm:$0xf]
        %v1746 = vld [vmem:[%s272 + $0x2bb8] sm:$0xf]
        %v1747 = vld [vmem:[%s272 + $0x2bc0] sm:$0xf]
        %v1748 = vld [vmem:[%s272 + $0x2bc8] sm:$0xf]
        %v1749 = vld [vmem:[%s272 + $0x2bd0] sm:$0xf]
        %v1750 = vld [vmem:[%s272 + $0x2bd8] sm:$0xf]
        %v1751 = vld [vmem:[%s272 + $0x2be0] sm:$0xf]
        %v1752 = vld [vmem:[%s272 + $0x2be8] sm:$0xf]
        %v1753 = vld [vmem:[%s272 + $0x2bf0] sm:$0xf]
        %v1754 = vld [vmem:[%s272 + $0x2bf8] sm:$0xf]
        %v1755 = vld [vmem:[%s272 + $0x2c00] sm:$0xf]
        %v1756 = vld [vmem:[%s272 + $0x2c08] sm:$0xf]
        %v1757 = vld [vmem:[%s272 + $0x2c10] sm:$0xf]
        %v1758 = vld [vmem:[%s272 + $0x2c18] sm:$0xf]
        %v1759 = vld [vmem:[%s272 + $0x2c20] sm:$0xf]
        %v1760 = vld [vmem:[%s272 + $0x2c28] sm:$0xf]
        %v1761 = vld [vmem:[%s272 + $0x2c30] sm:$0xf]
        %v1762 = vld [vmem:[%s272 + $0x2c38] sm:$0xf]
        %v1763 = vld [vmem:[%s272 + $0x2c40] sm:$0xf]
        %v1764 = vld [vmem:[%s272 + $0x2c48] sm:$0xf]
        %v1765 = vld [vmem:[%s272 + $0x2c50] sm:$0xf]
        %v1766 = vld [vmem:[%s272 + $0x2c58] sm:$0xf]
        %v1767 = vld [vmem:[%s272 + $0x2c60] sm:$0xf]
        %v1768 = vld [vmem:[%s272 + $0x2c68] sm:$0xf]
        %v1769 = vld [vmem:[%s272 + $0x2c70] sm:$0xf]
        %v1770 = vld [vmem:[%s272 + $0x2c78] sm:$0xf]
        %v1771 = vld [vmem:[%s272 + $0x2c80] sm:$0xf]
        %v1772 = vld [vmem:[%s272 + $0x2c88] sm:$0xf]
        %v1773 = vld [vmem:[%s272 + $0x2c90] sm:$0xf]
        %v1774 = vld [vmem:[%s272 + $0x2c98] sm:$0xf]
        %v1775 = vld [vmem:[%s272 + $0x2ca0] sm:$0xf]
        %v1776 = vld [vmem:[%s272 + $0x2ca8] sm:$0xf]
        %v1777 = vld [vmem:[%s272 + $0x2cb0] sm:$0xf]
        %v1778 = vld [vmem:[%s272 + $0x2cb8] sm:$0xf]
        %v1779 = vld [vmem:[%s272 + $0x2cc0] sm:$0xf]
        %v1780 = vld [vmem:[%s272 + $0x2cc8] sm:$0xf]
        %v1781 = vld [vmem:[%s272 + $0x2cd0] sm:$0xf]
        %v1782 = vld [vmem:[%s272 + $0x2cd8] sm:$0xf]
        %v1783 = vld [vmem:[%s272 + $0x2ce0] sm:$0xf]
        %v1784 = vld [vmem:[%s272 + $0x2ce8] sm:$0xf]
        %v1785 = vld [vmem:[%s272 + $0x2cf0] sm:$0xf]
        %v1786 = vld [vmem:[%s272 + $0x2cf8] sm:$0xf]
        %v1787 = vld [vmem:[%s272 + $0x2d00] sm:$0xf]
        %v1788 = vld [vmem:[%s272 + $0x2d08] sm:$0xf]
        %v1789 = vld [vmem:[%s272 + $0x2d10] sm:$0xf]
        %v1790 = vld [vmem:[%s272 + $0x2d18] sm:$0xf]
        %v1791 = vld [vmem:[%s272 + $0x2d20] sm:$0xf]
        %v1792 = vld [vmem:[%s272 + $0x2d28] sm:$0xf]
        %v1793 = vld [vmem:[%s272 + $0x2d30] sm:$0xf]
        %v1794 = vld [vmem:[%s272 + $0x2d38] sm:$0xf]
        %v1795 = vld [vmem:[%s272 + $0x2d40] sm:$0xf]
        %v1796 = vld [vmem:[%s272 + $0x2d48] sm:$0xf]
        %v1797 = vld [vmem:[%s272 + $0x2d50] sm:$0xf]
        %v1798 = vld [vmem:[%s272 + $0x2d58] sm:$0xf]
        %v1799 = vld [vmem:[%s272 + $0x2d60] sm:$0xf]
        %v1800 = vld [vmem:[%s272 + $0x2d68] sm:$0xf]
        %v1801 = vld [vmem:[%s272 + $0x2d70] sm:$0xf]
        %v1802 = vld [vmem:[%s272 + $0x2d78] sm:$0xf]
        %v1803 = vld [vmem:[%s272 + $0x2d80] sm:$0xf]
        %v1804 = vld [vmem:[%s272 + $0x2d88] sm:$0xf]
        %v1805 = vld [vmem:[%s272 + $0x2d90] sm:$0xf]
        %v1806 = vld [vmem:[%s272 + $0x2d98] sm:$0xf]
        %v1807 = vld [vmem:[%s272 + $0x2da0] sm:$0xf]
        %v1808 = vld [vmem:[%s272 + $0x2da8] sm:$0xf]
        %v1809 = vld [vmem:[%s272 + $0x2db0] sm:$0xf]
        %v1810 = vld [vmem:[%s272 + $0x2db8] sm:$0xf]
        %v1811 = vld [vmem:[%s272 + $0x2dc0] sm:$0xf]
        %v1812 = vld [vmem:[%s272 + $0x2dc8] sm:$0xf]
        %v1813 = vld [vmem:[%s272 + $0x2dd0] sm:$0xf]
        %v1814 = vld [vmem:[%s272 + $0x2dd8] sm:$0xf]
        %v1815 = vld [vmem:[%s272 + $0x2de0] sm:$0xf]
        %v1816 = vld [vmem:[%s272 + $0x2de8] sm:$0xf]
        %v1817 = vld [vmem:[%s272 + $0x2df0] sm:$0xf]
        %v1818 = vld [vmem:[%s272 + $0x2df8] sm:$0xf]
        %v1819 = vld [vmem:[%s272 + $0x2e00] sm:$0xf]
        %v1820 = vld [vmem:[%s272 + $0x2e08] sm:$0xf]
        %v1821 = vld [vmem:[%s272 + $0x2e10] sm:$0xf]
        %v1822 = vld [vmem:[%s272 + $0x2e18] sm:$0xf]
        %v1823 = vld [vmem:[%s272 + $0x2e20] sm:$0xf]
        %v1824 = vld [vmem:[%s272 + $0x2e28] sm:$0xf]
        %v1825 = vld [vmem:[%s272 + $0x2e30] sm:$0xf]
        %v1826 = vld [vmem:[%s272 + $0x2e38] sm:$0xf]
        %v1827 = vld [vmem:[%s272 + $0x2e40] sm:$0xf]
        %v1828 = vld [vmem:[%s272 + $0x2e48] sm:$0xf]
        %1858 = vst [vmem:[#allocation1] ss:$4 sm:$0xff] %v318
        %s1859 = scalar_lea.vmem [#allocation1], 32
        %1860 = vst [vmem:[%s1859] ss:$4 sm:$0xff] %v319
        %v1861 = vld.sshfl [vmem:[#allocation1] sm:$0xff pattern:$0x73625140]
        %v1862 = vld.sshfl [vmem:[#allocation1 + $0x8] sm:$0xff pattern:$0x73625140]
        %v1863 = vld.sshfl [vmem:[#allocation1 + $0x10] sm:$0xff pattern:$0x73625140]
        %v1864 = vld.sshfl [vmem:[#allocation1 + $0x18] sm:$0xff pattern:$0x73625140]
        %v1865 = vld.sshfl [vmem:[#allocation1 + $0x20] sm:$0xff pattern:$0x73625140]
        %v1866 = vld.sshfl [vmem:[#allocation1 + $0x28] sm:$0xff pattern:$0x73625140]
        %v1867 = vld.sshfl [vmem:[#allocation1 + $0x30] sm:$0xff pattern:$0x73625140]
        %v1868 = vld.sshfl [vmem:[#allocation1 + $0x38] sm:$0xff pattern:$0x73625140]
        %1869 = vst [vmem:[#allocation1] ss:$4 sm:$0xff] %v320
        %1870 = vst [vmem:[%s1859] ss:$4 sm:$0xff] %v321
        %v1871 = vld.sshfl [vmem:[#allocation1] sm:$0xff pattern:$0x73625140]
        %v1872 = vld.sshfl [vmem:[#allocation1 + $0x8] sm:$0xff pattern:$0x73625140]
        %v1873 = vld.sshfl [vmem:[#allocation1 + $0x10] sm:$0xff pattern:$0x73625140]
        %v1874 = vld.sshfl [vmem:[#allocation1 + $0x18] sm:$0xff pattern:$0x73625140]
        %v1875 = vld.sshfl [vmem:[#allocation1 + $0x20] sm:$0xff pattern:$0x73625140]
        %v1876 = vld.sshfl [vmem:[#allocation1 + $0x28] sm:$0xff pattern:$0x73625140]
        %v1877 = vld.sshfl [vmem:[#allocation1 + $0x30] sm:$0xff pattern:$0x73625140]
        %v1878 = vld.sshfl [vmem:[#allocation1 + $0x38] sm:$0xff pattern:$0x73625140]
        %1879 = vst [vmem:[#allocation1] ss:$4 sm:$0xff] %v322
        %1880 = vst [vmem:[%s1859] ss:$4 sm:$0xff] %v323
        %v1881 = vld.sshfl [vmem:[#allocation1] sm:$0xff pattern:$0x73625140]
        %v1882 = vld.sshfl [vmem:[#allocation1 + $0x8] sm:$0xff pattern:$0x73625140]
        %v1883 = vld.sshfl [vmem:[#allocation1 + $0x10] sm:$0xff pattern:$0x73625140]
        %v1884 = vld.sshfl [vmem:[#allocation1 + $0x18] sm:$0xff pattern:$0x73625140]
        %v1885 = vld.sshfl [vmem:[#allocation1 + $0x20] sm:$0xff pattern:$0x73625140]
        %v1886 = vld.sshfl [vmem:[#allocation1 + $0x28] sm:$0xff pattern:$0x73625140]
        %v1887 = vld.sshfl [vmem:[#allocation1 + $0x30] sm:$0xff pattern:$0x73625140]
        %v1888 = vld.sshfl [vmem:[#allocation1 + $0x38] sm:$0xff pattern:$0x73625140]
        %1889 = vst [vmem:[#allocation1] ss:$4 sm:$0xff] %v324
        %1890 = vst [vmem:[%s1859] ss:$4 sm:$0xff] %v325
        %v1891 = vld.sshfl [vmem:[#allocation1] sm:$0xff pattern:$0x73625140]
        %v1892 = vld.sshfl [vmem:[#allocation1 + $0x8] sm:$0xff pattern:$0x73625140]
        %v1893 = vld.sshfl [vmem:[#allocation1 + $0x10] sm:$0xff pattern:$0x73625140]
        %v1894 = vld.sshfl [vmem:[#allocation1 + $0x18] sm:$0xff pattern:$0x73625140]
        %v1895 = vld.sshfl [vmem:[#allocation1 + $0x20] sm:$0xff pattern:$0x73625140]
        %v1896 = vld.sshfl [vmem:[#allocation1 + $0x28] sm:$0xff pattern:$0x73625140]
        %v1897 = vld.sshfl [vmem:[#allocation1 + $0x30] sm:$0xff pattern:$0x73625140]
        %v1898 = vld.sshfl [vmem:[#allocation1 + $0x38] sm:$0xff pattern:$0x73625140]
        %1899 = vst [vmem:[#allocation1] ss:$4 sm:$0xff] %v326
        %1900 = vst [vmem:[%s1859] ss:$4 sm:$0xff] %v327
        %v1901 = vld.sshfl [vmem:[#allocation1] sm:$0xff pattern:$0x73625140]
        %v1902 = vld.sshfl [vmem:[#allocation1 + $0x8] sm:$0xff pattern:$0x73625140]
        %v1903 = vld.sshfl [vmem:[#allocation1 + $0x10] sm:$0xff pattern:$0x73625140]
        %v1904 = vld.sshfl [vmem:[#allocation1 + $0x18] sm:$0xff pattern:$0x73625140]
        %v1905 = vld.sshfl [vmem:[#allocation1 + $0x20] sm:$0xff pattern:$0x73625140]
        %v1906 = vld.sshfl [vmem:[#allocation1 + $0x28] sm:$0xff pattern:$0x73625140]
        %v1907 = vld.sshfl [vmem:[#allocation1 + $0x30] sm:$0xff pattern:$0x73625140]
        %v1908 = vld.sshfl [vmem:[#allocation1 + $0x38] sm:$0xff pattern:$0x73625140]
        %1909 = vst [vmem:[#allocation1] ss:$4 sm:$0xff] %v328
        %1910 = vst [vmem:[%s1859] ss:$4 sm:$0xff] %v329
        %v1911 = vld.sshfl [vmem:[#allocation1] sm:$0xff pattern:$0x73625140]
        %v1912 = vld.sshfl [vmem:[#allocation1 + $0x8] sm:$0xff pattern:$0x73625140]
        %v1913 = vld.sshfl [vmem:[#allocation1 + $0x10] sm:$0xff pattern:$0x73625140]
        %v1914 = vld.sshfl [vmem:[#allocation1 + $0x18] sm:$0xff pattern:$0x73625140]
        %v1915 = vld.sshfl [vmem:[#allocation1 + $0x20] sm:$0xff pattern:$0x73625140]
        %v1916 = vld.sshfl [vmem:[#allocation1 + $0x28] sm:$0xff pattern:$0x73625140]
        %v1917 = vld.sshfl [vmem:[#allocation1 + $0x30] sm:$0xff pattern:$0x73625140]
        %v1918 = vld.sshfl [vmem:[#allocation1 + $0x38] sm:$0xff pattern:$0x73625140]
        %1919 = vst [vmem:[#allocation1] ss:$4 sm:$0xff] %v330
        %1920 = vst [vmem:[%s1859] ss:$4 sm:$0xff] %v331
        %v1921 = vld.sshfl [vmem:[#allocation1] sm:$0xff pattern:$0x73625140]
        %v1922 = vld.sshfl [vmem:[#allocation1 + $0x8] sm:$0xff pattern:$0x73625140]
        %v1923 = vld.sshfl [vmem:[#allocation1 + $0x10] sm:$0xff pattern:$0x73625140]
        %v1924 = vld.sshfl [vmem:[#allocation1 + $0x18] sm:$0xff pattern:$0x73625140]
        %v1925 = vld.sshfl [vmem:[#allocation1 + $0x20] sm:$0xff pattern:$0x73625140]
        %v1926 = vld.sshfl [vmem:[#allocation1 + $0x28] sm:$0xff pattern:$0x73625140]
        %v1927 = vld.sshfl [vmem:[#allocation1 + $0x30] sm:$0xff pattern:$0x73625140]
        %v1928 = vld.sshfl [vmem:[#allocation1 + $0x38] sm:$0xff pattern:$0x73625140]
        %1929 = vst [vmem:[#allocation1] ss:$4 sm:$0xff] %v332
        %1930 = vst [vmem:[%s1859] ss:$4 sm:$0xff] %v333
        %v1931 = vld.sshfl [vmem:[#allocation1] sm:$0xff pattern:$0x73625140]
        %v1932 = vld.sshfl [vmem:[#allocation1 + $0x8] sm:$0xff pattern:$0x73625140]
        %v1933 = vld.sshfl [vmem:[#allocation1 + $0x10] sm:$0xff pattern:$0x73625140]
        %v1934 = vld.sshfl [vmem:[#allocation1 + $0x18] sm:$0xff pattern:$0x73625140]
        %v1935 = vld.sshfl [vmem:[#allocation1 + $0x20] sm:$0xff pattern:$0x73625140]
        %v1936 = vld.sshfl [vmem:[#allocation1 + $0x28] sm:$0xff pattern:$0x73625140]
        %v1937 = vld.sshfl [vmem:[#allocation1 + $0x30] sm:$0xff pattern:$0x73625140]
        %v1938 = vld.sshfl [vmem:[#allocation1 + $0x38] sm:$0xff pattern:$0x73625140]
        %1939 = vst [vmem:[#allocation1] ss:$4 sm:$0xff] %v334
        %1940 = vst [vmem:[%s1859] ss:$4 sm:$0xff] %v335
        %v1941 = vld.sshfl [vmem:[#allocation1] sm:$0xff pattern:$0x73625140]
        %v1942 = vld.sshfl [vmem:[#allocation1 + $0x8] sm:$0xff pattern:$0x73625140]
        %v1943 = vld.sshfl [vmem:[#allocation1 + $0x10] sm:$0xff pattern:$0x73625140]
        %v1944 = vld.sshfl [vmem:[#allocation1 + $0x18] sm:$0xff pattern:$0x73625140]
        %v1945 = vld.sshfl [vmem:[#allocation1 + $0x20] sm:$0xff pattern:$0x73625140]
        %v1946 = vld.sshfl [vmem:[#allocation1 + $0x28] sm:$0xff pattern:$0x73625140]
        %v1947 = vld.sshfl [vmem:[#allocation1 + $0x30] sm:$0xff pattern:$0x73625140]
        %v1948 = vld.sshfl [vmem:[#allocation1 + $0x38] sm:$0xff pattern:$0x73625140]
        %1949 = vst [vmem:[#allocation1] ss:$4 sm:$0xff] %v336
        %1950 = vst [vmem:[%s1859] ss:$4 sm:$0xff] %v337
        %v1951 = vld.sshfl [vmem:[#allocation1] sm:$0xff pattern:$0x73625140]
        %v1952 = vld.sshfl [vmem:[#allocation1 + $0x8] sm:$0xff pattern:$0x73625140]
        %v1953 = vld.sshfl [vmem:[#allocation1 + $0x10] sm:$0xff pattern:$0x73625140]
        %v1954 = vld.sshfl [vmem:[#allocation1 + $0x18] sm:$0xff pattern:$0x73625140]
        %v1955 = vld.sshfl [vmem:[#allocation1 + $0x20] sm:$0xff pattern:$0x73625140]
        %v1956 = vld.sshfl [vmem:[#allocation1 + $0x28] sm:$0xff pattern:$0x73625140]
        %v1957 = vld.sshfl [vmem:[#allocation1 + $0x30] sm:$0xff pattern:$0x73625140]
        %v1958 = vld.sshfl [vmem:[#allocation1 + $0x38] sm:$0xff pattern:$0x73625140]
        %1959 = vst [vmem:[#allocation1] ss:$4 sm:$0xff] %v338
        %1960 = vst [vmem:[%s1859] ss:$4 sm:$0xff] %v339
        %v1961 = vld.sshfl [vmem:[#allocation1] sm:$0xff pattern:$0x73625140]
        %v1962 = vld.sshfl [vmem:[#allocation1 + $0x8] sm:$0xff pattern:$0x73625140]
        %v1963 = vld.sshfl [vmem:[#allocation1 + $0x10] sm:$0xff pattern:$0x73625140]
        %v1964 = vld.sshfl [vmem:[#allocation1 + $0x18] sm:$0xff pattern:$0x73625140]
        %v1965 = vld.sshfl [vmem:[#allocation1 + $0x20] sm:$0xff pattern:$0x73625140]
        %v1966 = vld.sshfl [vmem:[#allocation1 + $0x28] sm:$0xff pattern:$0x73625140]
        %v1967 = vld.sshfl [vmem:[#allocation1 + $0x30] sm:$0xff pattern:$0x73625140]
        %v1968 = vld.sshfl [vmem:[#allocation1 + $0x38] sm:$0xff pattern:$0x73625140]
        %1969 = vst [vmem:[#allocation1] ss:$4 sm:$0xff] %v340
        %1970 = vst [vmem:[%s1859] ss:$4 sm:$0xff] %v341
        %v1971 = vld.sshfl [vmem:[#allocation1] sm:$0xff pattern:$0x73625140]
        %v1972 = vld.sshfl [vmem:[#allocation1 + $0x8] sm:$0xff pattern:$0x73625140]
        %v1973 = vld.sshfl [vmem:[#allocation1 + $0x10] sm:$0xff pattern:$0x73625140]
        %v1974 = vld.sshfl [vmem:[#allocation1 + $0x18] sm:$0xff pattern:$0x73625140]
        %v1975 = vld.sshfl [vmem:[#allocation1 + $0x20] sm:$0xff pattern:$0x73625140]
        %v1976 = vld.sshfl [vmem:[#allocation1 + $0x28] sm:$0xff pattern:$0x73625140]
        %v1977 = vld.sshfl [vmem:[#allocation1 + $0x30] sm:$0xff pattern:$0x73625140]
        %v1978 = vld.sshfl [vmem:[#allocation1 + $0x38] sm:$0xff pattern:$0x73625140]
        %1979 = vst [vmem:[#allocation1] ss:$4 sm:$0xff] %v342
        %1980 = vst [vmem:[%s1859] ss:$4 sm:$0xff] %v343
        %v1981 = vld.sshfl [vmem:[#allocation1] sm:$0xff pattern:$0x73625140]
        %v1982 = vld.sshfl [vmem:[#allocation1 + $0x8] sm:$0xff pattern:$0x73625140]
        %v1983 = vld.sshfl [vmem:[#allocation1 + $0x10] sm:$0xff pattern:$0x73625140]
        %v1984 = vld.sshfl [vmem:[#allocation1 + $0x18] sm:$0xff pattern:$0x73625140]
        %v1985 = vld.sshfl [vmem:[#allocation1 + $0x20] sm:$0xff pattern:$0x73625140]
        %v1986 = vld.sshfl [vmem:[#allocation1 + $0x28] sm:$0xff pattern:$0x73625140]
        %v1987 = vld.sshfl [vmem:[#allocation1 + $0x30] sm:$0xff pattern:$0x73625140]
        %v1988 = vld.sshfl [vmem:[#allocation1 + $0x38] sm:$0xff pattern:$0x73625140]
        %1989 = vst [vmem:[#allocation1] ss:$4 sm:$0xff] %v344
        %1990 = vst [vmem:[%s1859] ss:$4 sm:$0xff] %v345
        %v1991 = vld.sshfl [vmem:[#allocation1] sm:$0xff pattern:$0x73625140]
        %v1992 = vld.sshfl [vmem:[#allocation1 + $0x8] sm:$0xff pattern:$0x73625140]
        %v1993 = vld.sshfl [vmem:[#allocation1 + $0x10] sm:$0xff pattern:$0x73625140]
        %v1994 = vld.sshfl [vmem:[#allocation1 + $0x18] sm:$0xff pattern:$0x73625140]
        %v1995 = vld.sshfl [vmem:[#allocation1 + $0x20] sm:$0xff pattern:$0x73625140]
        %v1996 = vld.sshfl [vmem:[#allocation1 + $0x28] sm:$0xff pattern:$0x73625140]
        %v1997 = vld.sshfl [vmem:[#allocation1 + $0x30] sm:$0xff pattern:$0x73625140]
        %v1998 = vld.sshfl [vmem:[#allocation1 + $0x38] sm:$0xff pattern:$0x73625140]
        %1999 = vst [vmem:[#allocation1] ss:$4 sm:$0xff] %v346
        %v2000 = vld.sshfl [vmem:[#allocation1] sm:$0xff pattern:$0x73625140]
        %v2001 = vld.sshfl [vmem:[#allocation1 + $0x8] sm:$0xff pattern:$0x73625140]
        %2116 = vmatpush.xpose.msra.mxu0 0.0
        %2117 = vmatpush.xpose.msra.mxu0 0.0
        %2118 = vmatpush.xpose.msra.mxu0 0.0
        %2119 = vmatpush.xpose.msra.mxu0 %v1715
        %2120 = vmatpush.xpose.msra.mxu0 %v1601
        %2121 = vmatpush.xpose.msra.mxu0 %v1487
        %2122 = vmatpush.xpose.msra.mxu0 %v1373
        %2123 = vmatpush.xpose.msra.mxu0 %v1259
        %2124 = vmatpush.xpose.msra.mxu0 %v1145
        %2125 = vmatpush.xpose.msra.mxu0 %v1031
        %2126 = vmatpush.xpose.msra.mxu0 %v917
        %2127 = vmatpush.xpose.msra.mxu0 %v803
        %2128 = vmatpush.xpose.msra.mxu0 %v689
        %2129 = vmatpush.xpose.msra.mxu0 %v575
        %2130 = vmatpush.xpose.msra.mxu0 %v461
        %2131 = vmatpush.xpose.msra.mxu0 %v347
        %2132 = vmatmul.f32.gmra.mxu0 %v1861
        %v2133 = vpop.f32.mrf.mxu0
        %v2134 = vadd.f32 0.0, %v2133
        %2135 = vdwg.mxu0
        %2136 = vmatpush.xpose.msra.mxu0 0.0
        %2137 = vmatpush.xpose.msra.mxu0 0.0
        %2138 = vmatpush.xpose.msra.mxu0 0.0
        %2139 = vmatpush.xpose.msra.mxu0 %v1716
        %2140 = vmatpush.xpose.msra.mxu0 %v1602
        %2141 = vmatpush.xpose.msra.mxu0 %v1488
        %2142 = vmatpush.xpose.msra.mxu0 %v1374
        %2143 = vmatpush.xpose.msra.mxu0 %v1260
        %2144 = vmatpush.xpose.msra.mxu0 %v1146
        %2145 = vmatpush.xpose.msra.mxu0 %v1032
        %2146 = vmatpush.xpose.msra.mxu0 %v918
        %2147 = vmatpush.xpose.msra.mxu0 %v804
        %2148 = vmatpush.xpose.msra.mxu0 %v690
        %2149 = vmatpush.xpose.msra.mxu0 %v576
        %2150 = vmatpush.xpose.msra.mxu0 %v462
        %2151 = vmatpush.xpose.msra.mxu0 %v348
        %2152 = vmatmul.f32.gmra.mxu0 %v1862
        %v2153 = vpop.f32.mrf.mxu0
        %v2154 = vadd.f32 %v2134, %v2153
        %2155 = vdwg.mxu0
        %2156 = vmatpush.xpose.msra.mxu0 0.0
        %2157 = vmatpush.xpose.msra.mxu0 0.0
        %2158 = vmatpush.xpose.msra.mxu0 0.0
        %2159 = vmatpush.xpose.msra.mxu0 %v1717
        %2160 = vmatpush.xpose.msra.mxu0 %v1603
        %2161 = vmatpush.xpose.msra.mxu0 %v1489
        %2162 = vmatpush.xpose.msra.mxu0 %v1375
        %2163 = vmatpush.xpose.msra.mxu0 %v1261
        %2164 = vmatpush.xpose.msra.mxu0 %v1147
        %2165 = vmatpush.xpose.msra.mxu0 %v1033
        %2166 = vmatpush.xpose.msra.mxu0 %v919
        %2167 = vmatpush.xpose.msra.mxu0 %v805
        %2168 = vmatpush.xpose.msra.mxu0 %v691
        %2169 = vmatpush.xpose.msra.mxu0 %v577
        %2170 = vmatpush.xpose.msra.mxu0 %v463
        %2171 = vmatpush.xpose.msra.mxu0 %v349
        %2172 = vmatmul.f32.gmra.mxu0 %v1863
        %v2173 = vpop.f32.mrf.mxu0
        %v2174 = vadd.f32 %v2154, %v2173
        %2175 = vdwg.mxu0
        %2176 = vmatpush.xpose.msra.mxu0 0.0
        %2177 = vmatpush.xpose.msra.mxu0 0.0
        %2178 = vmatpush.xpose.msra.mxu0 0.0
        %2179 = vmatpush.xpose.msra.mxu0 %v1718
        %2180 = vmatpush.xpose.msra.mxu0 %v1604
        %2181 = vmatpush.xpose.msra.mxu0 %v1490
        %2182 = vmatpush.xpose.msra.mxu0 %v1376
        %2183 = vmatpush.xpose.msra.mxu0 %v1262
        %2184 = vmatpush.xpose.msra.mxu0 %v1148
        %2185 = vmatpush.xpose.msra.mxu0 %v1034
        %2186 = vmatpush.xpose.msra.mxu0 %v920
        %2187 = vmatpush.xpose.msra.mxu0 %v806
        %2188 = vmatpush.xpose.msra.mxu0 %v692
        %2189 = vmatpush.xpose.msra.mxu0 %v578
        %2190 = vmatpush.xpose.msra.mxu0 %v464
        %2191 = vmatpush.xpose.msra.mxu0 %v350
        %2192 = vmatmul.f32.gmra.mxu0 %v1864
        %v2193 = vpop.f32.mrf.mxu0
        %v2194 = vadd.f32 %v2174, %v2193
        %2195 = vdwg.mxu0
        %2196 = vmatpush.xpose.msra.mxu0 0.0
        %2197 = vmatpush.xpose.msra.mxu0 0.0
        %2198 = vmatpush.xpose.msra.mxu0 0.0
        %2199 = vmatpush.xpose.msra.mxu0 %v1719
        %2200 = vmatpush.xpose.msra.mxu0 %v1605
        %2201 = vmatpush.xpose.msra.mxu0 %v1491
        %2202 = vmatpush.xpose.msra.mxu0 %v1377
        %2203 = vmatpush.xpose.msra.mxu0 %v1263
        %2204 = vmatpush.xpose.msra.mxu0 %v1149
        %2205 = vmatpush.xpose.msra.mxu0 %v1035
        %2206 = vmatpush.xpose.msra.mxu0 %v921
        %2207 = vmatpush.xpose.msra.mxu0 %v807
        %2208 = vmatpush.xpose.msra.mxu0 %v693
        %2209 = vmatpush.xpose.msra.mxu0 %v579
        %2210 = vmatpush.xpose.msra.mxu0 %v465
        %2211 = vmatpush.xpose.msra.mxu0 %v351
        %2212 = vmatmul.f32.gmra.mxu0 %v1865
        %v2213 = vpop.f32.mrf.mxu0
        %v2214 = vadd.f32 %v2194, %v2213
        %2215 = vdwg.mxu0
        %2216 = vmatpush.xpose.msra.mxu0 0.0
        %2217 = vmatpush.xpose.msra.mxu0 0.0
        %2218 = vmatpush.xpose.msra.mxu0 0.0
        %2219 = vmatpush.xpose.msra.mxu0 %v1720
        %2220 = vmatpush.xpose.msra.mxu0 %v1606
        %2221 = vmatpush.xpose.msra.mxu0 %v1492
        %2222 = vmatpush.xpose.msra.mxu0 %v1378
        %2223 = vmatpush.xpose.msra.mxu0 %v1264
        %2224 = vmatpush.xpose.msra.mxu0 %v1150
        %2225 = vmatpush.xpose.msra.mxu0 %v1036
        %2226 = vmatpush.xpose.msra.mxu0 %v922
        %2227 = vmatpush.xpose.msra.mxu0 %v808
        %2228 = vmatpush.xpose.msra.mxu0 %v694
        %2229 = vmatpush.xpose.msra.mxu0 %v580
        %2230 = vmatpush.xpose.msra.mxu0 %v466
        %2231 = vmatpush.xpose.msra.mxu0 %v352
        %2232 = vmatmul.f32.gmra.mxu0 %v1866
        %v2233 = vpop.f32.mrf.mxu0
        %v2234 = vadd.f32 %v2214, %v2233
        %2235 = vdwg.mxu0
        %2236 = vmatpush.xpose.msra.mxu0 0.0
        %2237 = vmatpush.xpose.msra.mxu0 0.0
        %2238 = vmatpush.xpose.msra.mxu0 0.0
        %2239 = vmatpush.xpose.msra.mxu0 %v1721
        %2240 = vmatpush.xpose.msra.mxu0 %v1607
        %2241 = vmatpush.xpose.msra.mxu0 %v1493
        %2242 = vmatpush.xpose.msra.mxu0 %v1379
        %2243 = vmatpush.xpose.msra.mxu0 %v1265
        %2244 = vmatpush.xpose.msra.mxu0 %v1151
        %2245 = vmatpush.xpose.msra.mxu0 %v1037
        %2246 = vmatpush.xpose.msra.mxu0 %v923
        %2247 = vmatpush.xpose.msra.mxu0 %v809
        %2248 = vmatpush.xpose.msra.mxu0 %v695
        %2249 = vmatpush.xpose.msra.mxu0 %v581
        %2250 = vmatpush.xpose.msra.mxu0 %v467
        %2251 = vmatpush.xpose.msra.mxu0 %v353
        %2252 = vmatmul.f32.gmra.mxu0 %v1867
        %v2253 = vpop.f32.mrf.mxu0
        %v2254 = vadd.f32 %v2234, %v2253
        %2255 = vdwg.mxu0
        %2256 = vmatpush.xpose.msra.mxu0 0.0
        %2257 = vmatpush.xpose.msra.mxu0 0.0
        %2258 = vmatpush.xpose.msra.mxu0 0.0
        %2259 = vmatpush.xpose.msra.mxu0 %v1722
        %2260 = vmatpush.xpose.msra.mxu0 %v1608
        %2261 = vmatpush.xpose.msra.mxu0 %v1494
        %2262 = vmatpush.xpose.msra.mxu0 %v1380
        %2263 = vmatpush.xpose.msra.mxu0 %v1266
        %2264 = vmatpush.xpose.msra.mxu0 %v1152
        %2265 = vmatpush.xpose.msra.mxu0 %v1038
        %2266 = vmatpush.xpose.msra.mxu0 %v924
        %2267 = vmatpush.xpose.msra.mxu0 %v810
        %2268 = vmatpush.xpose.msra.mxu0 %v696
        %2269 = vmatpush.xpose.msra.mxu0 %v582
        %2270 = vmatpush.xpose.msra.mxu0 %v468
        %2271 = vmatpush.xpose.msra.mxu0 %v354
        %2272 = vmatmul.f32.gmra.mxu0 %v1868
        %v2273 = vpop.f32.mrf.mxu0
        %v2274 = vadd.f32 %v2254, %v2273
        %2275 = vdwg.mxu0
        %2276 = vmatpush.xpose.msra.mxu0 0.0
        %2277 = vmatpush.xpose.msra.mxu0 0.0
        %2278 = vmatpush.xpose.msra.mxu0 0.0
        %2279 = vmatpush.xpose.msra.mxu0 %v1723
        %2280 = vmatpush.xpose.msra.mxu0 %v1609
        %2281 = vmatpush.xpose.msra.mxu0 %v1495
        %2282 = vmatpush.xpose.msra.mxu0 %v1381
        %2283 = vmatpush.xpose.msra.mxu0 %v1267
        %2284 = vmatpush.xpose.msra.mxu0 %v1153
        %2285 = vmatpush.xpose.msra.mxu0 %v1039
        %2286 = vmatpush.xpose.msra.mxu0 %v925
        %2287 = vmatpush.xpose.msra.mxu0 %v811
        %2288 = vmatpush.xpose.msra.mxu0 %v697
        %2289 = vmatpush.xpose.msra.mxu0 %v583
        %2290 = vmatpush.xpose.msra.mxu0 %v469
        %2291 = vmatpush.xpose.msra.mxu0 %v355
        %2292 = vmatmul.f32.gmra.mxu0 %v1871
        %v2293 = vpop.f32.mrf.mxu0
        %v2294 = vadd.f32 %v2274, %v2293
        %2295 = vdwg.mxu0
        %2296 = vmatpush.xpose.msra.mxu0 0.0
        %2297 = vmatpush.xpose.msra.mxu0 0.0
        %2298 = vmatpush.xpose.msra.mxu0 0.0
        %2299 = vmatpush.xpose.msra.mxu0 %v1724
        %2300 = vmatpush.xpose.msra.mxu0 %v1610
        %2301 = vmatpush.xpose.msra.mxu0 %v1496
        %2302 = vmatpush.xpose.msra.mxu0 %v1382
        %2303 = vmatpush.xpose.msra.mxu0 %v1268
        %2304 = vmatpush.xpose.msra.mxu0 %v1154
        %2305 = vmatpush.xpose.msra.mxu0 %v1040
        %2306 = vmatpush.xpose.msra.mxu0 %v926
        %2307 = vmatpush.xpose.msra.mxu0 %v812
        %2308 = vmatpush.xpose.msra.mxu0 %v698
        %2309 = vmatpush.xpose.msra.mxu0 %v584
        %2310 = vmatpush.xpose.msra.mxu0 %v470
        %2311 = vmatpush.xpose.msra.mxu0 %v356
        %2312 = vmatmul.f32.gmra.mxu0 %v1872
        %v2313 = vpop.f32.mrf.mxu0
        %v2314 = vadd.f32 %v2294, %v2313
        %2315 = vdwg.mxu0
        %2316 = vmatpush.xpose.msra.mxu0 0.0
        %2317 = vmatpush.xpose.msra.mxu0 0.0
        %2318 = vmatpush.xpose.msra.mxu0 0.0
        %2319 = vmatpush.xpose.msra.mxu0 %v1725
        %2320 = vmatpush.xpose.msra.mxu0 %v1611
        %2321 = vmatpush.xpose.msra.mxu0 %v1497
        %2322 = vmatpush.xpose.msra.mxu0 %v1383
        %2323 = vmatpush.xpose.msra.mxu0 %v1269
        %2324 = vmatpush.xpose.msra.mxu0 %v1155
        %2325 = vmatpush.xpose.msra.mxu0 %v1041
        %2326 = vmatpush.xpose.msra.mxu0 %v927
        %2327 = vmatpush.xpose.msra.mxu0 %v813
        %2328 = vmatpush.xpose.msra.mxu0 %v699
        %2329 = vmatpush.xpose.msra.mxu0 %v585
        %2330 = vmatpush.xpose.msra.mxu0 %v471
        %2331 = vmatpush.xpose.msra.mxu0 %v357
        %2332 = vmatmul.f32.gmra.mxu0 %v1873
        %v2333 = vpop.f32.mrf.mxu0
        %v2334 = vadd.f32 %v2314, %v2333
        %2335 = vdwg.mxu0
        %2336 = vmatpush.xpose.msra.mxu0 0.0
        %2337 = vmatpush.xpose.msra.mxu0 0.0
        %2338 = vmatpush.xpose.msra.mxu0 0.0
        %2339 = vmatpush.xpose.msra.mxu0 %v1726
        %2340 = vmatpush.xpose.msra.mxu0 %v1612
        %2341 = vmatpush.xpose.msra.mxu0 %v1498
        %2342 = vmatpush.xpose.msra.mxu0 %v1384
        %2343 = vmatpush.xpose.msra.mxu0 %v1270
        %2344 = vmatpush.xpose.msra.mxu0 %v1156
        %2345 = vmatpush.xpose.msra.mxu0 %v1042
        %2346 = vmatpush.xpose.msra.mxu0 %v928
        %2347 = vmatpush.xpose.msra.mxu0 %v814
        %2348 = vmatpush.xpose.msra.mxu0 %v700
        %2349 = vmatpush.xpose.msra.mxu0 %v586
        %2350 = vmatpush.xpose.msra.mxu0 %v472
        %2351 = vmatpush.xpose.msra.mxu0 %v358
        %2352 = vmatmul.f32.gmra.mxu0 %v1874
        %v2353 = vpop.f32.mrf.mxu0
        %v2354 = vadd.f32 %v2334, %v2353
        %2355 = vdwg.mxu0
        %2356 = vmatpush.xpose.msra.mxu0 0.0
        %2357 = vmatpush.xpose.msra.mxu0 0.0
        %2358 = vmatpush.xpose.msra.mxu0 0.0
        %2359 = vmatpush.xpose.msra.mxu0 %v1727
        %2360 = vmatpush.xpose.msra.mxu0 %v1613
        %2361 = vmatpush.xpose.msra.mxu0 %v1499
        %2362 = vmatpush.xpose.msra.mxu0 %v1385
        %2363 = vmatpush.xpose.msra.mxu0 %v1271
        %2364 = vmatpush.xpose.msra.mxu0 %v1157
        %2365 = vmatpush.xpose.msra.mxu0 %v1043
        %2366 = vmatpush.xpose.msra.mxu0 %v929
        %2367 = vmatpush.xpose.msra.mxu0 %v815
        %2368 = vmatpush.xpose.msra.mxu0 %v701
        %2369 = vmatpush.xpose.msra.mxu0 %v587
        %2370 = vmatpush.xpose.msra.mxu0 %v473
        %2371 = vmatpush.xpose.msra.mxu0 %v359
        %2372 = vmatmul.f32.gmra.mxu0 %v1875
        %v2373 = vpop.f32.mrf.mxu0
        %v2374 = vadd.f32 %v2354, %v2373
        %2375 = vdwg.mxu0
        %2376 = vmatpush.xpose.msra.mxu0 0.0
        %2377 = vmatpush.xpose.msra.mxu0 0.0
        %2378 = vmatpush.xpose.msra.mxu0 0.0
        %2379 = vmatpush.xpose.msra.mxu0 %v1728
        %2380 = vmatpush.xpose.msra.mxu0 %v1614
        %2381 = vmatpush.xpose.msra.mxu0 %v1500
        %2382 = vmatpush.xpose.msra.mxu0 %v1386
        %2383 = vmatpush.xpose.msra.mxu0 %v1272
        %2384 = vmatpush.xpose.msra.mxu0 %v1158
        %2385 = vmatpush.xpose.msra.mxu0 %v1044
        %2386 = vmatpush.xpose.msra.mxu0 %v930
        %2387 = vmatpush.xpose.msra.mxu0 %v816
        %2388 = vmatpush.xpose.msra.mxu0 %v702
        %2389 = vmatpush.xpose.msra.mxu0 %v588
        %2390 = vmatpush.xpose.msra.mxu0 %v474
        %2391 = vmatpush.xpose.msra.mxu0 %v360
        %2392 = vmatmul.f32.gmra.mxu0 %v1876
        %v2393 = vpop.f32.mrf.mxu0
        %v2394 = vadd.f32 %v2374, %v2393
        %2395 = vdwg.mxu0
        %2396 = vmatpush.xpose.msra.mxu0 0.0
        %2397 = vmatpush.xpose.msra.mxu0 0.0
        %2398 = vmatpush.xpose.msra.mxu0 0.0
        %2399 = vmatpush.xpose.msra.mxu0 %v1729
        %2400 = vmatpush.xpose.msra.mxu0 %v1615
        %2401 = vmatpush.xpose.msra.mxu0 %v1501
        %2402 = vmatpush.xpose.msra.mxu0 %v1387
        %2403 = vmatpush.xpose.msra.mxu0 %v1273
        %2404 = vmatpush.xpose.msra.mxu0 %v1159
        %2405 = vmatpush.xpose.msra.mxu0 %v1045
        %2406 = vmatpush.xpose.msra.mxu0 %v931
        %2407 = vmatpush.xpose.msra.mxu0 %v817
        %2408 = vmatpush.xpose.msra.mxu0 %v703
        %2409 = vmatpush.xpose.msra.mxu0 %v589
        %2410 = vmatpush.xpose.msra.mxu0 %v475
        %2411 = vmatpush.xpose.msra.mxu0 %v361
        %2412 = vmatmul.f32.gmra.mxu0 %v1877
        %v2413 = vpop.f32.mrf.mxu0
        %v2414 = vadd.f32 %v2394, %v2413
        %2415 = vdwg.mxu0
        %2416 = vmatpush.xpose.msra.mxu0 0.0
        %2417 = vmatpush.xpose.msra.mxu0 0.0
        %2418 = vmatpush.xpose.msra.mxu0 0.0
        %2419 = vmatpush.xpose.msra.mxu0 %v1730
        %2420 = vmatpush.xpose.msra.mxu0 %v1616
        %2421 = vmatpush.xpose.msra.mxu0 %v1502
        %2422 = vmatpush.xpose.msra.mxu0 %v1388
        %2423 = vmatpush.xpose.msra.mxu0 %v1274
        %2424 = vmatpush.xpose.msra.mxu0 %v1160
        %2425 = vmatpush.xpose.msra.mxu0 %v1046
        %2426 = vmatpush.xpose.msra.mxu0 %v932
        %2427 = vmatpush.xpose.msra.mxu0 %v818
        %2428 = vmatpush.xpose.msra.mxu0 %v704
        %2429 = vmatpush.xpose.msra.mxu0 %v590
        %2430 = vmatpush.xpose.msra.mxu0 %v476
        %2431 = vmatpush.xpose.msra.mxu0 %v362
        %2432 = vmatmul.f32.gmra.mxu0 %v1878
        %v2433 = vpop.f32.mrf.mxu0
        %v2434 = vadd.f32 %v2414, %v2433
        %2435 = vdwg.mxu0
        %2436 = vmatpush.xpose.msra.mxu0 0.0
        %2437 = vmatpush.xpose.msra.mxu0 0.0
        %2438 = vmatpush.xpose.msra.mxu0 0.0
        %2439 = vmatpush.xpose.msra.mxu0 %v1731
        %2440 = vmatpush.xpose.msra.mxu0 %v1617
        %2441 = vmatpush.xpose.msra.mxu0 %v1503
        %2442 = vmatpush.xpose.msra.mxu0 %v1389
        %2443 = vmatpush.xpose.msra.mxu0 %v1275
        %2444 = vmatpush.xpose.msra.mxu0 %v1161
        %2445 = vmatpush.xpose.msra.mxu0 %v1047
        %2446 = vmatpush.xpose.msra.mxu0 %v933
        %2447 = vmatpush.xpose.msra.mxu0 %v819
        %2448 = vmatpush.xpose.msra.mxu0 %v705
        %2449 = vmatpush.xpose.msra.mxu0 %v591
        %2450 = vmatpush.xpose.msra.mxu0 %v477
        %2451 = vmatpush.xpose.msra.mxu0 %v363
        %2452 = vmatmul.f32.gmra.mxu0 %v1881
        %v2453 = vpop.f32.mrf.mxu0
        %v2454 = vadd.f32 %v2434, %v2453
        %2455 = vdwg.mxu0
        %2456 = vmatpush.xpose.msra.mxu0 0.0
        %2457 = vmatpush.xpose.msra.mxu0 0.0
        %2458 = vmatpush.xpose.msra.mxu0 0.0
        %2459 = vmatpush.xpose.msra.mxu0 %v1732
        %2460 = vmatpush.xpose.msra.mxu0 %v1618
        %2461 = vmatpush.xpose.msra.mxu0 %v1504
        %2462 = vmatpush.xpose.msra.mxu0 %v1390
        %2463 = vmatpush.xpose.msra.mxu0 %v1276
        %2464 = vmatpush.xpose.msra.mxu0 %v1162
        %2465 = vmatpush.xpose.msra.mxu0 %v1048
        %2466 = vmatpush.xpose.msra.mxu0 %v934
        %2467 = vmatpush.xpose.msra.mxu0 %v820
        %2468 = vmatpush.xpose.msra.mxu0 %v706
        %2469 = vmatpush.xpose.msra.mxu0 %v592
        %2470 = vmatpush.xpose.msra.mxu0 %v478
        %2471 = vmatpush.xpose.msra.mxu0 %v364
        %2472 = vmatmul.f32.gmra.mxu0 %v1882
        %v2473 = vpop.f32.mrf.mxu0
        %v2474 = vadd.f32 %v2454, %v2473
        %2475 = vdwg.mxu0
        %2476 = vmatpush.xpose.msra.mxu0 0.0
        %2477 = vmatpush.xpose.msra.mxu0 0.0
        %2478 = vmatpush.xpose.msra.mxu0 0.0
        %2479 = vmatpush.xpose.msra.mxu0 %v1733
        %2480 = vmatpush.xpose.msra.mxu0 %v1619
        %2481 = vmatpush.xpose.msra.mxu0 %v1505
        %2482 = vmatpush.xpose.msra.mxu0 %v1391
        %2483 = vmatpush.xpose.msra.mxu0 %v1277
        %2484 = vmatpush.xpose.msra.mxu0 %v1163
        %2485 = vmatpush.xpose.msra.mxu0 %v1049
        %2486 = vmatpush.xpose.msra.mxu0 %v935
        %2487 = vmatpush.xpose.msra.mxu0 %v821
        %2488 = vmatpush.xpose.msra.mxu0 %v707
        %2489 = vmatpush.xpose.msra.mxu0 %v593
        %2490 = vmatpush.xpose.msra.mxu0 %v479
        %2491 = vmatpush.xpose.msra.mxu0 %v365
        %2492 = vmatmul.f32.gmra.mxu0 %v1883
        %v2493 = vpop.f32.mrf.mxu0
        %v2494 = vadd.f32 %v2474, %v2493
        %2495 = vdwg.mxu0
        %2496 = vmatpush.xpose.msra.mxu0 0.0
        %2497 = vmatpush.xpose.msra.mxu0 0.0
        %2498 = vmatpush.xpose.msra.mxu0 0.0
        %2499 = vmatpush.xpose.msra.mxu0 %v1734
        %2500 = vmatpush.xpose.msra.mxu0 %v1620
        %2501 = vmatpush.xpose.msra.mxu0 %v1506
        %2502 = vmatpush.xpose.msra.mxu0 %v1392
        %2503 = vmatpush.xpose.msra.mxu0 %v1278
        %2504 = vmatpush.xpose.msra.mxu0 %v1164
        %2505 = vmatpush.xpose.msra.mxu0 %v1050
        %2506 = vmatpush.xpose.msra.mxu0 %v936
        %2507 = vmatpush.xpose.msra.mxu0 %v822
        %2508 = vmatpush.xpose.msra.mxu0 %v708
        %2509 = vmatpush.xpose.msra.mxu0 %v594
        %2510 = vmatpush.xpose.msra.mxu0 %v480
        %2511 = vmatpush.xpose.msra.mxu0 %v366
        %2512 = vmatmul.f32.gmra.mxu0 %v1884
        %v2513 = vpop.f32.mrf.mxu0
        %v2514 = vadd.f32 %v2494, %v2513
        %2515 = vdwg.mxu0
        %2516 = vmatpush.xpose.msra.mxu0 0.0
        %2517 = vmatpush.xpose.msra.mxu0 0.0
        %2518 = vmatpush.xpose.msra.mxu0 0.0
        %2519 = vmatpush.xpose.msra.mxu0 %v1735
        %2520 = vmatpush.xpose.msra.mxu0 %v1621
        %2521 = vmatpush.xpose.msra.mxu0 %v1507
        %2522 = vmatpush.xpose.msra.mxu0 %v1393
        %2523 = vmatpush.xpose.msra.mxu0 %v1279
        %2524 = vmatpush.xpose.msra.mxu0 %v1165
        %2525 = vmatpush.xpose.msra.mxu0 %v1051
        %2526 = vmatpush.xpose.msra.mxu0 %v937
        %2527 = vmatpush.xpose.msra.mxu0 %v823
        %2528 = vmatpush.xpose.msra.mxu0 %v709
        %2529 = vmatpush.xpose.msra.mxu0 %v595
        %2530 = vmatpush.xpose.msra.mxu0 %v481
        %2531 = vmatpush.xpose.msra.mxu0 %v367
        %2532 = vmatmul.f32.gmra.mxu0 %v1885
        %v2533 = vpop.f32.mrf.mxu0
        %v2534 = vadd.f32 %v2514, %v2533
        %2535 = vdwg.mxu0
        %2536 = vmatpush.xpose.msra.mxu0 0.0
        %2537 = vmatpush.xpose.msra.mxu0 0.0
        %2538 = vmatpush.xpose.msra.mxu0 0.0
        %2539 = vmatpush.xpose.msra.mxu0 %v1736
        %2540 = vmatpush.xpose.msra.mxu0 %v1622
        %2541 = vmatpush.xpose.msra.mxu0 %v1508
        %2542 = vmatpush.xpose.msra.mxu0 %v1394
        %2543 = vmatpush.xpose.msra.mxu0 %v1280
        %2544 = vmatpush.xpose.msra.mxu0 %v1166
        %2545 = vmatpush.xpose.msra.mxu0 %v1052
        %2546 = vmatpush.xpose.msra.mxu0 %v938
        %2547 = vmatpush.xpose.msra.mxu0 %v824
        %2548 = vmatpush.xpose.msra.mxu0 %v710
        %2549 = vmatpush.xpose.msra.mxu0 %v596
        %2550 = vmatpush.xpose.msra.mxu0 %v482
        %2551 = vmatpush.xpose.msra.mxu0 %v368
        %2552 = vmatmul.f32.gmra.mxu0 %v1886
        %v2553 = vpop.f32.mrf.mxu0
        %v2554 = vadd.f32 %v2534, %v2553
        %2555 = vdwg.mxu0
        %2556 = vmatpush.xpose.msra.mxu0 0.0
        %2557 = vmatpush.xpose.msra.mxu0 0.0
        %2558 = vmatpush.xpose.msra.mxu0 0.0
        %2559 = vmatpush.xpose.msra.mxu0 %v1737
        %2560 = vmatpush.xpose.msra.mxu0 %v1623
        %2561 = vmatpush.xpose.msra.mxu0 %v1509
        %2562 = vmatpush.xpose.msra.mxu0 %v1395
        %2563 = vmatpush.xpose.msra.mxu0 %v1281
        %2564 = vmatpush.xpose.msra.mxu0 %v1167
        %2565 = vmatpush.xpose.msra.mxu0 %v1053
        %2566 = vmatpush.xpose.msra.mxu0 %v939
        %2567 = vmatpush.xpose.msra.mxu0 %v825
        %2568 = vmatpush.xpose.msra.mxu0 %v711
        %2569 = vmatpush.xpose.msra.mxu0 %v597
        %2570 = vmatpush.xpose.msra.mxu0 %v483
        %2571 = vmatpush.xpose.msra.mxu0 %v369
        %2572 = vmatmul.f32.gmra.mxu0 %v1887
        %v2573 = vpop.f32.mrf.mxu0
        %v2574 = vadd.f32 %v2554, %v2573
        %2575 = vdwg.mxu0
        %2576 = vmatpush.xpose.msra.mxu0 0.0
        %2577 = vmatpush.xpose.msra.mxu0 0.0
        %2578 = vmatpush.xpose.msra.mxu0 0.0
        %2579 = vmatpush.xpose.msra.mxu0 %v1738
        %2580 = vmatpush.xpose.msra.mxu0 %v1624
        %2581 = vmatpush.xpose.msra.mxu0 %v1510
        %2582 = vmatpush.xpose.msra.mxu0 %v1396
        %2583 = vmatpush.xpose.msra.mxu0 %v1282
        %2584 = vmatpush.xpose.msra.mxu0 %v1168
        %2585 = vmatpush.xpose.msra.mxu0 %v1054
        %2586 = vmatpush.xpose.msra.mxu0 %v940
        %2587 = vmatpush.xpose.msra.mxu0 %v826
        %2588 = vmatpush.xpose.msra.mxu0 %v712
        %2589 = vmatpush.xpose.msra.mxu0 %v598
        %2590 = vmatpush.xpose.msra.mxu0 %v484
        %2591 = vmatpush.xpose.msra.mxu0 %v370
        %2592 = vmatmul.f32.gmra.mxu0 %v1888
        %v2593 = vpop.f32.mrf.mxu0
        %v2594 = vadd.f32 %v2574, %v2593
        %2595 = vdwg.mxu0
        %2596 = vmatpush.xpose.msra.mxu0 0.0
        %2597 = vmatpush.xpose.msra.mxu0 0.0
        %2598 = vmatpush.xpose.msra.mxu0 0.0
        %2599 = vmatpush.xpose.msra.mxu0 %v1739
        %2600 = vmatpush.xpose.msra.mxu0 %v1625
        %2601 = vmatpush.xpose.msra.mxu0 %v1511
        %2602 = vmatpush.xpose.msra.mxu0 %v1397
        %2603 = vmatpush.xpose.msra.mxu0 %v1283
        %2604 = vmatpush.xpose.msra.mxu0 %v1169
        %2605 = vmatpush.xpose.msra.mxu0 %v1055
        %2606 = vmatpush.xpose.msra.mxu0 %v941
        %2607 = vmatpush.xpose.msra.mxu0 %v827
        %2608 = vmatpush.xpose.msra.mxu0 %v713
        %2609 = vmatpush.xpose.msra.mxu0 %v599
        %2610 = vmatpush.xpose.msra.mxu0 %v485
        %2611 = vmatpush.xpose.msra.mxu0 %v371
        %2612 = vmatmul.f32.gmra.mxu0 %v1891
        %v2613 = vpop.f32.mrf.mxu0
        %v2614 = vadd.f32 %v2594, %v2613
        %2615 = vdwg.mxu0
        %2616 = vmatpush.xpose.msra.mxu0 0.0
        %2617 = vmatpush.xpose.msra.mxu0 0.0
        %2618 = vmatpush.xpose.msra.mxu0 0.0
        %2619 = vmatpush.xpose.msra.mxu0 %v1740
        %2620 = vmatpush.xpose.msra.mxu0 %v1626
        %2621 = vmatpush.xpose.msra.mxu0 %v1512
        %2622 = vmatpush.xpose.msra.mxu0 %v1398
        %2623 = vmatpush.xpose.msra.mxu0 %v1284
        %2624 = vmatpush.xpose.msra.mxu0 %v1170
        %2625 = vmatpush.xpose.msra.mxu0 %v1056
        %2626 = vmatpush.xpose.msra.mxu0 %v942
        %2627 = vmatpush.xpose.msra.mxu0 %v828
        %2628 = vmatpush.xpose.msra.mxu0 %v714
        %2629 = vmatpush.xpose.msra.mxu0 %v600
        %2630 = vmatpush.xpose.msra.mxu0 %v486
        %2631 = vmatpush.xpose.msra.mxu0 %v372
        %2632 = vmatmul.f32.gmra.mxu0 %v1892
        %v2633 = vpop.f32.mrf.mxu0
        %v2634 = vadd.f32 %v2614, %v2633
        %2635 = vdwg.mxu0
        %2636 = vmatpush.xpose.msra.mxu0 0.0
        %2637 = vmatpush.xpose.msra.mxu0 0.0
        %2638 = vmatpush.xpose.msra.mxu0 0.0
        %2639 = vmatpush.xpose.msra.mxu0 %v1741
        %2640 = vmatpush.xpose.msra.mxu0 %v1627
        %2641 = vmatpush.xpose.msra.mxu0 %v1513
        %2642 = vmatpush.xpose.msra.mxu0 %v1399
        %2643 = vmatpush.xpose.msra.mxu0 %v1285
        %2644 = vmatpush.xpose.msra.mxu0 %v1171
        %2645 = vmatpush.xpose.msra.mxu0 %v1057
        %2646 = vmatpush.xpose.msra.mxu0 %v943
        %2647 = vmatpush.xpose.msra.mxu0 %v829
        %2648 = vmatpush.xpose.msra.mxu0 %v715
        %2649 = vmatpush.xpose.msra.mxu0 %v601
        %2650 = vmatpush.xpose.msra.mxu0 %v487
        %2651 = vmatpush.xpose.msra.mxu0 %v373
        %2652 = vmatmul.f32.gmra.mxu0 %v1893
        %v2653 = vpop.f32.mrf.mxu0
        %v2654 = vadd.f32 %v2634, %v2653
        %2655 = vdwg.mxu0
        %2656 = vmatpush.xpose.msra.mxu0 0.0
        %2657 = vmatpush.xpose.msra.mxu0 0.0
        %2658 = vmatpush.xpose.msra.mxu0 0.0
        %2659 = vmatpush.xpose.msra.mxu0 %v1742
        %2660 = vmatpush.xpose.msra.mxu0 %v1628
        %2661 = vmatpush.xpose.msra.mxu0 %v1514
        %2662 = vmatpush.xpose.msra.mxu0 %v1400
        %2663 = vmatpush.xpose.msra.mxu0 %v1286
        %2664 = vmatpush.xpose.msra.mxu0 %v1172
        %2665 = vmatpush.xpose.msra.mxu0 %v1058
        %2666 = vmatpush.xpose.msra.mxu0 %v944
        %2667 = vmatpush.xpose.msra.mxu0 %v830
        %2668 = vmatpush.xpose.msra.mxu0 %v716
        %2669 = vmatpush.xpose.msra.mxu0 %v602
        %2670 = vmatpush.xpose.msra.mxu0 %v488
        %2671 = vmatpush.xpose.msra.mxu0 %v374
        %2672 = vmatmul.f32.gmra.mxu0 %v1894
        %v2673 = vpop.f32.mrf.mxu0
        %v2674 = vadd.f32 %v2654, %v2673
        %2675 = vdwg.mxu0
        %2676 = vmatpush.xpose.msra.mxu0 0.0
        %2677 = vmatpush.xpose.msra.mxu0 0.0
        %2678 = vmatpush.xpose.msra.mxu0 0.0
        %2679 = vmatpush.xpose.msra.mxu0 %v1743
        %2680 = vmatpush.xpose.msra.mxu0 %v1629
        %2681 = vmatpush.xpose.msra.mxu0 %v1515
        %2682 = vmatpush.xpose.msra.mxu0 %v1401
        %2683 = vmatpush.xpose.msra.mxu0 %v1287
        %2684 = vmatpush.xpose.msra.mxu0 %v1173
        %2685 = vmatpush.xpose.msra.mxu0 %v1059
        %2686 = vmatpush.xpose.msra.mxu0 %v945
        %2687 = vmatpush.xpose.msra.mxu0 %v831
        %2688 = vmatpush.xpose.msra.mxu0 %v717
        %2689 = vmatpush.xpose.msra.mxu0 %v603
        %2690 = vmatpush.xpose.msra.mxu0 %v489
        %2691 = vmatpush.xpose.msra.mxu0 %v375
        %2692 = vmatmul.f32.gmra.mxu0 %v1895
        %v2693 = vpop.f32.mrf.mxu0
        %v2694 = vadd.f32 %v2674, %v2693
        %2695 = vdwg.mxu0
        %2696 = vmatpush.xpose.msra.mxu0 0.0
        %2697 = vmatpush.xpose.msra.mxu0 0.0
        %2698 = vmatpush.xpose.msra.mxu0 0.0
        %2699 = vmatpush.xpose.msra.mxu0 %v1744
        %2700 = vmatpush.xpose.msra.mxu0 %v1630
        %2701 = vmatpush.xpose.msra.mxu0 %v1516
        %2702 = vmatpush.xpose.msra.mxu0 %v1402
        %2703 = vmatpush.xpose.msra.mxu0 %v1288
        %2704 = vmatpush.xpose.msra.mxu0 %v1174
        %2705 = vmatpush.xpose.msra.mxu0 %v1060
        %2706 = vmatpush.xpose.msra.mxu0 %v946
        %2707 = vmatpush.xpose.msra.mxu0 %v832
        %2708 = vmatpush.xpose.msra.mxu0 %v718
        %2709 = vmatpush.xpose.msra.mxu0 %v604
        %2710 = vmatpush.xpose.msra.mxu0 %v490
        %2711 = vmatpush.xpose.msra.mxu0 %v376
        %2712 = vmatmul.f32.gmra.mxu0 %v1896
        %v2713 = vpop.f32.mrf.mxu0
        %v2714 = vadd.f32 %v2694, %v2713
        %2715 = vdwg.mxu0
        %2716 = vmatpush.xpose.msra.mxu0 0.0
        %2717 = vmatpush.xpose.msra.mxu0 0.0
        %2718 = vmatpush.xpose.msra.mxu0 0.0
        %2719 = vmatpush.xpose.msra.mxu0 %v1745
        %2720 = vmatpush.xpose.msra.mxu0 %v1631
        %2721 = vmatpush.xpose.msra.mxu0 %v1517
        %2722 = vmatpush.xpose.msra.mxu0 %v1403
        %2723 = vmatpush.xpose.msra.mxu0 %v1289
        %2724 = vmatpush.xpose.msra.mxu0 %v1175
        %2725 = vmatpush.xpose.msra.mxu0 %v1061
        %2726 = vmatpush.xpose.msra.mxu0 %v947
        %2727 = vmatpush.xpose.msra.mxu0 %v833
        %2728 = vmatpush.xpose.msra.mxu0 %v719
        %2729 = vmatpush.xpose.msra.mxu0 %v605
        %2730 = vmatpush.xpose.msra.mxu0 %v491
        %2731 = vmatpush.xpose.msra.mxu0 %v377
        %2732 = vmatmul.f32.gmra.mxu0 %v1897
        %v2733 = vpop.f32.mrf.mxu0
        %v2734 = vadd.f32 %v2714, %v2733
        %2735 = vdwg.mxu0
        %2736 = vmatpush.xpose.msra.mxu0 0.0
        %2737 = vmatpush.xpose.msra.mxu0 0.0
        %2738 = vmatpush.xpose.msra.mxu0 0.0
        %2739 = vmatpush.xpose.msra.mxu0 %v1746
        %2740 = vmatpush.xpose.msra.mxu0 %v1632
        %2741 = vmatpush.xpose.msra.mxu0 %v1518
        %2742 = vmatpush.xpose.msra.mxu0 %v1404
        %2743 = vmatpush.xpose.msra.mxu0 %v1290
        %2744 = vmatpush.xpose.msra.mxu0 %v1176
        %2745 = vmatpush.xpose.msra.mxu0 %v1062
        %2746 = vmatpush.xpose.msra.mxu0 %v948
        %2747 = vmatpush.xpose.msra.mxu0 %v834
        %2748 = vmatpush.xpose.msra.mxu0 %v720
        %2749 = vmatpush.xpose.msra.mxu0 %v606
        %2750 = vmatpush.xpose.msra.mxu0 %v492
        %2751 = vmatpush.xpose.msra.mxu0 %v378
        %2752 = vmatmul.f32.gmra.mxu0 %v1898
        %v2753 = vpop.f32.mrf.mxu0
        %v2754 = vadd.f32 %v2734, %v2753
        %2755 = vdwg.mxu0
        %2756 = vmatpush.xpose.msra.mxu0 0.0
        %2757 = vmatpush.xpose.msra.mxu0 0.0
        %2758 = vmatpush.xpose.msra.mxu0 0.0
        %2759 = vmatpush.xpose.msra.mxu0 %v1747
        %2760 = vmatpush.xpose.msra.mxu0 %v1633
        %2761 = vmatpush.xpose.msra.mxu0 %v1519
        %2762 = vmatpush.xpose.msra.mxu0 %v1405
        %2763 = vmatpush.xpose.msra.mxu0 %v1291
        %2764 = vmatpush.xpose.msra.mxu0 %v1177
        %2765 = vmatpush.xpose.msra.mxu0 %v1063
        %2766 = vmatpush.xpose.msra.mxu0 %v949
        %2767 = vmatpush.xpose.msra.mxu0 %v835
        %2768 = vmatpush.xpose.msra.mxu0 %v721
        %2769 = vmatpush.xpose.msra.mxu0 %v607
        %2770 = vmatpush.xpose.msra.mxu0 %v493
        %2771 = vmatpush.xpose.msra.mxu0 %v379
        %2772 = vmatmul.f32.gmra.mxu0 %v1901
        %v2773 = vpop.f32.mrf.mxu0
        %v2774 = vadd.f32 %v2754, %v2773
        %2775 = vdwg.mxu0
        %2776 = vmatpush.xpose.msra.mxu0 0.0
        %2777 = vmatpush.xpose.msra.mxu0 0.0
        %2778 = vmatpush.xpose.msra.mxu0 0.0
        %2779 = vmatpush.xpose.msra.mxu0 %v1748
        %2780 = vmatpush.xpose.msra.mxu0 %v1634
        %2781 = vmatpush.xpose.msra.mxu0 %v1520
        %2782 = vmatpush.xpose.msra.mxu0 %v1406
        %2783 = vmatpush.xpose.msra.mxu0 %v1292
        %2784 = vmatpush.xpose.msra.mxu0 %v1178
        %2785 = vmatpush.xpose.msra.mxu0 %v1064
        %2786 = vmatpush.xpose.msra.mxu0 %v950
        %2787 = vmatpush.xpose.msra.mxu0 %v836
        %2788 = vmatpush.xpose.msra.mxu0 %v722
        %2789 = vmatpush.xpose.msra.mxu0 %v608
        %2790 = vmatpush.xpose.msra.mxu0 %v494
        %2791 = vmatpush.xpose.msra.mxu0 %v380
        %2792 = vmatmul.f32.gmra.mxu0 %v1902
        %v2793 = vpop.f32.mrf.mxu0
        %v2794 = vadd.f32 %v2774, %v2793
        %2795 = vdwg.mxu0
        %2796 = vmatpush.xpose.msra.mxu0 0.0
        %2797 = vmatpush.xpose.msra.mxu0 0.0
        %2798 = vmatpush.xpose.msra.mxu0 0.0
        %2799 = vmatpush.xpose.msra.mxu0 %v1749
        %2800 = vmatpush.xpose.msra.mxu0 %v1635
        %2801 = vmatpush.xpose.msra.mxu0 %v1521
        %2802 = vmatpush.xpose.msra.mxu0 %v1407
        %2803 = vmatpush.xpose.msra.mxu0 %v1293
        %2804 = vmatpush.xpose.msra.mxu0 %v1179
        %2805 = vmatpush.xpose.msra.mxu0 %v1065
        %2806 = vmatpush.xpose.msra.mxu0 %v951
        %2807 = vmatpush.xpose.msra.mxu0 %v837
        %2808 = vmatpush.xpose.msra.mxu0 %v723
        %2809 = vmatpush.xpose.msra.mxu0 %v609
        %2810 = vmatpush.xpose.msra.mxu0 %v495
        %2811 = vmatpush.xpose.msra.mxu0 %v381
        %2812 = vmatmul.f32.gmra.mxu0 %v1903
        %v2813 = vpop.f32.mrf.mxu0
        %v2814 = vadd.f32 %v2794, %v2813
        %2815 = vdwg.mxu0
        %2816 = vmatpush.xpose.msra.mxu0 0.0
        %2817 = vmatpush.xpose.msra.mxu0 0.0
        %2818 = vmatpush.xpose.msra.mxu0 0.0
        %2819 = vmatpush.xpose.msra.mxu0 %v1750
        %2820 = vmatpush.xpose.msra.mxu0 %v1636
        %2821 = vmatpush.xpose.msra.mxu0 %v1522
        %2822 = vmatpush.xpose.msra.mxu0 %v1408
        %2823 = vmatpush.xpose.msra.mxu0 %v1294
        %2824 = vmatpush.xpose.msra.mxu0 %v1180
        %2825 = vmatpush.xpose.msra.mxu0 %v1066
        %2826 = vmatpush.xpose.msra.mxu0 %v952
        %2827 = vmatpush.xpose.msra.mxu0 %v838
        %2828 = vmatpush.xpose.msra.mxu0 %v724
        %2829 = vmatpush.xpose.msra.mxu0 %v610
        %2830 = vmatpush.xpose.msra.mxu0 %v496
        %2831 = vmatpush.xpose.msra.mxu0 %v382
        %2832 = vmatmul.f32.gmra.mxu0 %v1904
        %v2833 = vpop.f32.mrf.mxu0
        %v2834 = vadd.f32 %v2814, %v2833
        %2835 = vdwg.mxu0
        %2836 = vmatpush.xpose.msra.mxu0 0.0
        %2837 = vmatpush.xpose.msra.mxu0 0.0
        %2838 = vmatpush.xpose.msra.mxu0 0.0
        %2839 = vmatpush.xpose.msra.mxu0 %v1751
        %2840 = vmatpush.xpose.msra.mxu0 %v1637
        %2841 = vmatpush.xpose.msra.mxu0 %v1523
        %2842 = vmatpush.xpose.msra.mxu0 %v1409
        %2843 = vmatpush.xpose.msra.mxu0 %v1295
        %2844 = vmatpush.xpose.msra.mxu0 %v1181
        %2845 = vmatpush.xpose.msra.mxu0 %v1067
        %2846 = vmatpush.xpose.msra.mxu0 %v953
        %2847 = vmatpush.xpose.msra.mxu0 %v839
        %2848 = vmatpush.xpose.msra.mxu0 %v725
        %2849 = vmatpush.xpose.msra.mxu0 %v611
        %2850 = vmatpush.xpose.msra.mxu0 %v497
        %2851 = vmatpush.xpose.msra.mxu0 %v383
        %2852 = vmatmul.f32.gmra.mxu0 %v1905
        %v2853 = vpop.f32.mrf.mxu0
        %v2854 = vadd.f32 %v2834, %v2853
        %2855 = vdwg.mxu0
        %2856 = vmatpush.xpose.msra.mxu0 0.0
        %2857 = vmatpush.xpose.msra.mxu0 0.0
        %2858 = vmatpush.xpose.msra.mxu0 0.0
        %2859 = vmatpush.xpose.msra.mxu0 %v1752
        %2860 = vmatpush.xpose.msra.mxu0 %v1638
        %2861 = vmatpush.xpose.msra.mxu0 %v1524
        %2862 = vmatpush.xpose.msra.mxu0 %v1410
        %2863 = vmatpush.xpose.msra.mxu0 %v1296
        %2864 = vmatpush.xpose.msra.mxu0 %v1182
        %2865 = vmatpush.xpose.msra.mxu0 %v1068
        %2866 = vmatpush.xpose.msra.mxu0 %v954
        %2867 = vmatpush.xpose.msra.mxu0 %v840
        %2868 = vmatpush.xpose.msra.mxu0 %v726
        %2869 = vmatpush.xpose.msra.mxu0 %v612
        %2870 = vmatpush.xpose.msra.mxu0 %v498
        %2871 = vmatpush.xpose.msra.mxu0 %v384
        %2872 = vmatmul.f32.gmra.mxu0 %v1906
        %v2873 = vpop.f32.mrf.mxu0
        %v2874 = vadd.f32 %v2854, %v2873
        %2875 = vdwg.mxu0
        %2876 = vmatpush.xpose.msra.mxu0 0.0
        %2877 = vmatpush.xpose.msra.mxu0 0.0
        %2878 = vmatpush.xpose.msra.mxu0 0.0
        %2879 = vmatpush.xpose.msra.mxu0 %v1753
        %2880 = vmatpush.xpose.msra.mxu0 %v1639
        %2881 = vmatpush.xpose.msra.mxu0 %v1525
        %2882 = vmatpush.xpose.msra.mxu0 %v1411
        %2883 = vmatpush.xpose.msra.mxu0 %v1297
        %2884 = vmatpush.xpose.msra.mxu0 %v1183
        %2885 = vmatpush.xpose.msra.mxu0 %v1069
        %2886 = vmatpush.xpose.msra.mxu0 %v955
        %2887 = vmatpush.xpose.msra.mxu0 %v841
        %2888 = vmatpush.xpose.msra.mxu0 %v727
        %2889 = vmatpush.xpose.msra.mxu0 %v613
        %2890 = vmatpush.xpose.msra.mxu0 %v499
        %2891 = vmatpush.xpose.msra.mxu0 %v385
        %2892 = vmatmul.f32.gmra.mxu0 %v1907
        %v2893 = vpop.f32.mrf.mxu0
        %v2894 = vadd.f32 %v2874, %v2893
        %2895 = vdwg.mxu0
        %2896 = vmatpush.xpose.msra.mxu0 0.0
        %2897 = vmatpush.xpose.msra.mxu0 0.0
        %2898 = vmatpush.xpose.msra.mxu0 0.0
        %2899 = vmatpush.xpose.msra.mxu0 %v1754
        %2900 = vmatpush.xpose.msra.mxu0 %v1640
        %2901 = vmatpush.xpose.msra.mxu0 %v1526
        %2902 = vmatpush.xpose.msra.mxu0 %v1412
        %2903 = vmatpush.xpose.msra.mxu0 %v1298
        %2904 = vmatpush.xpose.msra.mxu0 %v1184
        %2905 = vmatpush.xpose.msra.mxu0 %v1070
        %2906 = vmatpush.xpose.msra.mxu0 %v956
        %2907 = vmatpush.xpose.msra.mxu0 %v842
        %2908 = vmatpush.xpose.msra.mxu0 %v728
        %2909 = vmatpush.xpose.msra.mxu0 %v614
        %2910 = vmatpush.xpose.msra.mxu0 %v500
        %2911 = vmatpush.xpose.msra.mxu0 %v386
        %2912 = vmatmul.f32.gmra.mxu0 %v1908
        %v2913 = vpop.f32.mrf.mxu0
        %v2914 = vadd.f32 %v2894, %v2913
        %2915 = vdwg.mxu0
        %2916 = vmatpush.xpose.msra.mxu0 0.0
        %2917 = vmatpush.xpose.msra.mxu0 0.0
        %2918 = vmatpush.xpose.msra.mxu0 0.0
        %2919 = vmatpush.xpose.msra.mxu0 %v1755
        %2920 = vmatpush.xpose.msra.mxu0 %v1641
        %2921 = vmatpush.xpose.msra.mxu0 %v1527
        %2922 = vmatpush.xpose.msra.mxu0 %v1413
        %2923 = vmatpush.xpose.msra.mxu0 %v1299
        %2924 = vmatpush.xpose.msra.mxu0 %v1185
        %2925 = vmatpush.xpose.msra.mxu0 %v1071
        %2926 = vmatpush.xpose.msra.mxu0 %v957
        %2927 = vmatpush.xpose.msra.mxu0 %v843
        %2928 = vmatpush.xpose.msra.mxu0 %v729
        %2929 = vmatpush.xpose.msra.mxu0 %v615
        %2930 = vmatpush.xpose.msra.mxu0 %v501
        %2931 = vmatpush.xpose.msra.mxu0 %v387
        %2932 = vmatmul.f32.gmra.mxu0 %v1911
        %v2933 = vpop.f32.mrf.mxu0
        %v2934 = vadd.f32 %v2914, %v2933
        %2935 = vdwg.mxu0
        %2936 = vmatpush.xpose.msra.mxu0 0.0
        %2937 = vmatpush.xpose.msra.mxu0 0.0
        %2938 = vmatpush.xpose.msra.mxu0 0.0
        %2939 = vmatpush.xpose.msra.mxu0 %v1756
        %2940 = vmatpush.xpose.msra.mxu0 %v1642
        %2941 = vmatpush.xpose.msra.mxu0 %v1528
        %2942 = vmatpush.xpose.msra.mxu0 %v1414
        %2943 = vmatpush.xpose.msra.mxu0 %v1300
        %2944 = vmatpush.xpose.msra.mxu0 %v1186
        %2945 = vmatpush.xpose.msra.mxu0 %v1072
        %2946 = vmatpush.xpose.msra.mxu0 %v958
        %2947 = vmatpush.xpose.msra.mxu0 %v844
        %2948 = vmatpush.xpose.msra.mxu0 %v730
        %2949 = vmatpush.xpose.msra.mxu0 %v616
        %2950 = vmatpush.xpose.msra.mxu0 %v502
        %2951 = vmatpush.xpose.msra.mxu0 %v388
        %2952 = vmatmul.f32.gmra.mxu0 %v1912
        %v2953 = vpop.f32.mrf.mxu0
        %v2954 = vadd.f32 %v2934, %v2953
        %2955 = vdwg.mxu0
        %2956 = vmatpush.xpose.msra.mxu0 0.0
        %2957 = vmatpush.xpose.msra.mxu0 0.0
        %2958 = vmatpush.xpose.msra.mxu0 0.0
        %2959 = vmatpush.xpose.msra.mxu0 %v1757
        %2960 = vmatpush.xpose.msra.mxu0 %v1643
        %2961 = vmatpush.xpose.msra.mxu0 %v1529
        %2962 = vmatpush.xpose.msra.mxu0 %v1415
        %2963 = vmatpush.xpose.msra.mxu0 %v1301
        %2964 = vmatpush.xpose.msra.mxu0 %v1187
        %2965 = vmatpush.xpose.msra.mxu0 %v1073
        %2966 = vmatpush.xpose.msra.mxu0 %v959
        %2967 = vmatpush.xpose.msra.mxu0 %v845
        %2968 = vmatpush.xpose.msra.mxu0 %v731
        %2969 = vmatpush.xpose.msra.mxu0 %v617
        %2970 = vmatpush.xpose.msra.mxu0 %v503
        %2971 = vmatpush.xpose.msra.mxu0 %v389
        %2972 = vmatmul.f32.gmra.mxu0 %v1913
        %v2973 = vpop.f32.mrf.mxu0
        %v2974 = vadd.f32 %v2954, %v2973
        %2975 = vdwg.mxu0
        %2976 = vmatpush.xpose.msra.mxu0 0.0
        %2977 = vmatpush.xpose.msra.mxu0 0.0
        %2978 = vmatpush.xpose.msra.mxu0 0.0
        %2979 = vmatpush.xpose.msra.mxu0 %v1758
        %2980 = vmatpush.xpose.msra.mxu0 %v1644
        %2981 = vmatpush.xpose.msra.mxu0 %v1530
        %2982 = vmatpush.xpose.msra.mxu0 %v1416
        %2983 = vmatpush.xpose.msra.mxu0 %v1302
        %2984 = vmatpush.xpose.msra.mxu0 %v1188
        %2985 = vmatpush.xpose.msra.mxu0 %v1074
        %2986 = vmatpush.xpose.msra.mxu0 %v960
        %2987 = vmatpush.xpose.msra.mxu0 %v846
        %2988 = vmatpush.xpose.msra.mxu0 %v732
        %2989 = vmatpush.xpose.msra.mxu0 %v618
        %2990 = vmatpush.xpose.msra.mxu0 %v504
        %2991 = vmatpush.xpose.msra.mxu0 %v390
        %2992 = vmatmul.f32.gmra.mxu0 %v1914
        %v2993 = vpop.f32.mrf.mxu0
        %v2994 = vadd.f32 %v2974, %v2993
        %2995 = vdwg.mxu0
        %2996 = vmatpush.xpose.msra.mxu0 0.0
        %2997 = vmatpush.xpose.msra.mxu0 0.0
        %2998 = vmatpush.xpose.msra.mxu0 0.0
        %2999 = vmatpush.xpose.msra.mxu0 %v1759
        %3000 = vmatpush.xpose.msra.mxu0 %v1645
        %3001 = vmatpush.xpose.msra.mxu0 %v1531
        %3002 = vmatpush.xpose.msra.mxu0 %v1417
        %3003 = vmatpush.xpose.msra.mxu0 %v1303
        %3004 = vmatpush.xpose.msra.mxu0 %v1189
        %3005 = vmatpush.xpose.msra.mxu0 %v1075
        %3006 = vmatpush.xpose.msra.mxu0 %v961
        %3007 = vmatpush.xpose.msra.mxu0 %v847
        %3008 = vmatpush.xpose.msra.mxu0 %v733
        %3009 = vmatpush.xpose.msra.mxu0 %v619
        %3010 = vmatpush.xpose.msra.mxu0 %v505
        %3011 = vmatpush.xpose.msra.mxu0 %v391
        %3012 = vmatmul.f32.gmra.mxu0 %v1915
        %v3013 = vpop.f32.mrf.mxu0
        %v3014 = vadd.f32 %v2994, %v3013
        %3015 = vdwg.mxu0
        %3016 = vmatpush.xpose.msra.mxu0 0.0
        %3017 = vmatpush.xpose.msra.mxu0 0.0
        %3018 = vmatpush.xpose.msra.mxu0 0.0
        %3019 = vmatpush.xpose.msra.mxu0 %v1760
        %3020 = vmatpush.xpose.msra.mxu0 %v1646
        %3021 = vmatpush.xpose.msra.mxu0 %v1532
        %3022 = vmatpush.xpose.msra.mxu0 %v1418
        %3023 = vmatpush.xpose.msra.mxu0 %v1304
        %3024 = vmatpush.xpose.msra.mxu0 %v1190
        %3025 = vmatpush.xpose.msra.mxu0 %v1076
        %3026 = vmatpush.xpose.msra.mxu0 %v962
        %3027 = vmatpush.xpose.msra.mxu0 %v848
        %3028 = vmatpush.xpose.msra.mxu0 %v734
        %3029 = vmatpush.xpose.msra.mxu0 %v620
        %3030 = vmatpush.xpose.msra.mxu0 %v506
        %3031 = vmatpush.xpose.msra.mxu0 %v392
        %3032 = vmatmul.f32.gmra.mxu0 %v1916
        %v3033 = vpop.f32.mrf.mxu0
        %v3034 = vadd.f32 %v3014, %v3033
        %3035 = vdwg.mxu0
        %3036 = vmatpush.xpose.msra.mxu0 0.0
        %3037 = vmatpush.xpose.msra.mxu0 0.0
        %3038 = vmatpush.xpose.msra.mxu0 0.0
        %3039 = vmatpush.xpose.msra.mxu0 %v1761
        %3040 = vmatpush.xpose.msra.mxu0 %v1647
        %3041 = vmatpush.xpose.msra.mxu0 %v1533
        %3042 = vmatpush.xpose.msra.mxu0 %v1419
        %3043 = vmatpush.xpose.msra.mxu0 %v1305
        %3044 = vmatpush.xpose.msra.mxu0 %v1191
        %3045 = vmatpush.xpose.msra.mxu0 %v1077
        %3046 = vmatpush.xpose.msra.mxu0 %v963
        %3047 = vmatpush.xpose.msra.mxu0 %v849
        %3048 = vmatpush.xpose.msra.mxu0 %v735
        %3049 = vmatpush.xpose.msra.mxu0 %v621
        %3050 = vmatpush.xpose.msra.mxu0 %v507
        %3051 = vmatpush.xpose.msra.mxu0 %v393
        %3052 = vmatmul.f32.gmra.mxu0 %v1917
        %v3053 = vpop.f32.mrf.mxu0
        %v3054 = vadd.f32 %v3034, %v3053
        %3055 = vdwg.mxu0
        %3056 = vmatpush.xpose.msra.mxu0 0.0
        %3057 = vmatpush.xpose.msra.mxu0 0.0
        %3058 = vmatpush.xpose.msra.mxu0 0.0
        %3059 = vmatpush.xpose.msra.mxu0 %v1762
        %3060 = vmatpush.xpose.msra.mxu0 %v1648
        %3061 = vmatpush.xpose.msra.mxu0 %v1534
        %3062 = vmatpush.xpose.msra.mxu0 %v1420
        %3063 = vmatpush.xpose.msra.mxu0 %v1306
        %3064 = vmatpush.xpose.msra.mxu0 %v1192
        %3065 = vmatpush.xpose.msra.mxu0 %v1078
        %3066 = vmatpush.xpose.msra.mxu0 %v964
        %3067 = vmatpush.xpose.msra.mxu0 %v850
        %3068 = vmatpush.xpose.msra.mxu0 %v736
        %3069 = vmatpush.xpose.msra.mxu0 %v622
        %3070 = vmatpush.xpose.msra.mxu0 %v508
        %3071 = vmatpush.xpose.msra.mxu0 %v394
        %3072 = vmatmul.f32.gmra.mxu0 %v1918
        %v3073 = vpop.f32.mrf.mxu0
        %v3074 = vadd.f32 %v3054, %v3073
        %3075 = vdwg.mxu0
        %3076 = vmatpush.xpose.msra.mxu0 0.0
        %3077 = vmatpush.xpose.msra.mxu0 0.0
        %3078 = vmatpush.xpose.msra.mxu0 0.0
        %3079 = vmatpush.xpose.msra.mxu0 %v1763
        %3080 = vmatpush.xpose.msra.mxu0 %v1649
        %3081 = vmatpush.xpose.msra.mxu0 %v1535
        %3082 = vmatpush.xpose.msra.mxu0 %v1421
        %3083 = vmatpush.xpose.msra.mxu0 %v1307
        %3084 = vmatpush.xpose.msra.mxu0 %v1193
        %3085 = vmatpush.xpose.msra.mxu0 %v1079
        %3086 = vmatpush.xpose.msra.mxu0 %v965
        %3087 = vmatpush.xpose.msra.mxu0 %v851
        %3088 = vmatpush.xpose.msra.mxu0 %v737
        %3089 = vmatpush.xpose.msra.mxu0 %v623
        %3090 = vmatpush.xpose.msra.mxu0 %v509
        %3091 = vmatpush.xpose.msra.mxu0 %v395
        %3092 = vmatmul.f32.gmra.mxu0 %v1921
        %v3093 = vpop.f32.mrf.mxu0
        %v3094 = vadd.f32 %v3074, %v3093
        %3095 = vdwg.mxu0
        %3096 = vmatpush.xpose.msra.mxu0 0.0
        %3097 = vmatpush.xpose.msra.mxu0 0.0
        %3098 = vmatpush.xpose.msra.mxu0 0.0
        %3099 = vmatpush.xpose.msra.mxu0 %v1764
        %3100 = vmatpush.xpose.msra.mxu0 %v1650
        %3101 = vmatpush.xpose.msra.mxu0 %v1536
        %3102 = vmatpush.xpose.msra.mxu0 %v1422
        %3103 = vmatpush.xpose.msra.mxu0 %v1308
        %3104 = vmatpush.xpose.msra.mxu0 %v1194
        %3105 = vmatpush.xpose.msra.mxu0 %v1080
        %3106 = vmatpush.xpose.msra.mxu0 %v966
        %3107 = vmatpush.xpose.msra.mxu0 %v852
        %3108 = vmatpush.xpose.msra.mxu0 %v738
        %3109 = vmatpush.xpose.msra.mxu0 %v624
        %3110 = vmatpush.xpose.msra.mxu0 %v510
        %3111 = vmatpush.xpose.msra.mxu0 %v396
        %3112 = vmatmul.f32.gmra.mxu0 %v1922
        %v3113 = vpop.f32.mrf.mxu0
        %v3114 = vadd.f32 %v3094, %v3113
        %3115 = vdwg.mxu0
        %3116 = vmatpush.xpose.msra.mxu0 0.0
        %3117 = vmatpush.xpose.msra.mxu0 0.0
        %3118 = vmatpush.xpose.msra.mxu0 0.0
        %3119 = vmatpush.xpose.msra.mxu0 %v1765
        %3120 = vmatpush.xpose.msra.mxu0 %v1651
        %3121 = vmatpush.xpose.msra.mxu0 %v1537
        %3122 = vmatpush.xpose.msra.mxu0 %v1423
        %3123 = vmatpush.xpose.msra.mxu0 %v1309
        %3124 = vmatpush.xpose.msra.mxu0 %v1195
        %3125 = vmatpush.xpose.msra.mxu0 %v1081
        %3126 = vmatpush.xpose.msra.mxu0 %v967
        %3127 = vmatpush.xpose.msra.mxu0 %v853
        %3128 = vmatpush.xpose.msra.mxu0 %v739
        %3129 = vmatpush.xpose.msra.mxu0 %v625
        %3130 = vmatpush.xpose.msra.mxu0 %v511
        %3131 = vmatpush.xpose.msra.mxu0 %v397
        %3132 = vmatmul.f32.gmra.mxu0 %v1923
        %v3133 = vpop.f32.mrf.mxu0
        %v3134 = vadd.f32 %v3114, %v3133
        %3135 = vdwg.mxu0
        %3136 = vmatpush.xpose.msra.mxu0 0.0
        %3137 = vmatpush.xpose.msra.mxu0 0.0
        %3138 = vmatpush.xpose.msra.mxu0 0.0
        %3139 = vmatpush.xpose.msra.mxu0 %v1766
        %3140 = vmatpush.xpose.msra.mxu0 %v1652
        %3141 = vmatpush.xpose.msra.mxu0 %v1538
        %3142 = vmatpush.xpose.msra.mxu0 %v1424
        %3143 = vmatpush.xpose.msra.mxu0 %v1310
        %3144 = vmatpush.xpose.msra.mxu0 %v1196
        %3145 = vmatpush.xpose.msra.mxu0 %v1082
        %3146 = vmatpush.xpose.msra.mxu0 %v968
        %3147 = vmatpush.xpose.msra.mxu0 %v854
        %3148 = vmatpush.xpose.msra.mxu0 %v740
        %3149 = vmatpush.xpose.msra.mxu0 %v626
        %3150 = vmatpush.xpose.msra.mxu0 %v512
        %3151 = vmatpush.xpose.msra.mxu0 %v398
        %3152 = vmatmul.f32.gmra.mxu0 %v1924
        %v3153 = vpop.f32.mrf.mxu0
        %v3154 = vadd.f32 %v3134, %v3153
        %3155 = vdwg.mxu0
        %3156 = vmatpush.xpose.msra.mxu0 0.0
        %3157 = vmatpush.xpose.msra.mxu0 0.0
        %3158 = vmatpush.xpose.msra.mxu0 0.0
        %3159 = vmatpush.xpose.msra.mxu0 %v1767
        %3160 = vmatpush.xpose.msra.mxu0 %v1653
        %3161 = vmatpush.xpose.msra.mxu0 %v1539
        %3162 = vmatpush.xpose.msra.mxu0 %v1425
        %3163 = vmatpush.xpose.msra.mxu0 %v1311
        %3164 = vmatpush.xpose.msra.mxu0 %v1197
        %3165 = vmatpush.xpose.msra.mxu0 %v1083
        %3166 = vmatpush.xpose.msra.mxu0 %v969
        %3167 = vmatpush.xpose.msra.mxu0 %v855
        %3168 = vmatpush.xpose.msra.mxu0 %v741
        %3169 = vmatpush.xpose.msra.mxu0 %v627
        %3170 = vmatpush.xpose.msra.mxu0 %v513
        %3171 = vmatpush.xpose.msra.mxu0 %v399
        %3172 = vmatmul.f32.gmra.mxu0 %v1925
        %v3173 = vpop.f32.mrf.mxu0
        %v3174 = vadd.f32 %v3154, %v3173
        %3175 = vdwg.mxu0
        %3176 = vmatpush.xpose.msra.mxu0 0.0
        %3177 = vmatpush.xpose.msra.mxu0 0.0
        %3178 = vmatpush.xpose.msra.mxu0 0.0
        %3179 = vmatpush.xpose.msra.mxu0 %v1768
        %3180 = vmatpush.xpose.msra.mxu0 %v1654
        %3181 = vmatpush.xpose.msra.mxu0 %v1540
        %3182 = vmatpush.xpose.msra.mxu0 %v1426
        %3183 = vmatpush.xpose.msra.mxu0 %v1312
        %3184 = vmatpush.xpose.msra.mxu0 %v1198
        %3185 = vmatpush.xpose.msra.mxu0 %v1084
        %3186 = vmatpush.xpose.msra.mxu0 %v970
        %3187 = vmatpush.xpose.msra.mxu0 %v856
        %3188 = vmatpush.xpose.msra.mxu0 %v742
        %3189 = vmatpush.xpose.msra.mxu0 %v628
        %3190 = vmatpush.xpose.msra.mxu0 %v514
        %3191 = vmatpush.xpose.msra.mxu0 %v400
        %3192 = vmatmul.f32.gmra.mxu0 %v1926
        %v3193 = vpop.f32.mrf.mxu0
        %v3194 = vadd.f32 %v3174, %v3193
        %3195 = vdwg.mxu0
        %3196 = vmatpush.xpose.msra.mxu0 0.0
        %3197 = vmatpush.xpose.msra.mxu0 0.0
        %3198 = vmatpush.xpose.msra.mxu0 0.0
        %3199 = vmatpush.xpose.msra.mxu0 %v1769
        %3200 = vmatpush.xpose.msra.mxu0 %v1655
        %3201 = vmatpush.xpose.msra.mxu0 %v1541
        %3202 = vmatpush.xpose.msra.mxu0 %v1427
        %3203 = vmatpush.xpose.msra.mxu0 %v1313
        %3204 = vmatpush.xpose.msra.mxu0 %v1199
        %3205 = vmatpush.xpose.msra.mxu0 %v1085
        %3206 = vmatpush.xpose.msra.mxu0 %v971
        %3207 = vmatpush.xpose.msra.mxu0 %v857
        %3208 = vmatpush.xpose.msra.mxu0 %v743
        %3209 = vmatpush.xpose.msra.mxu0 %v629
        %3210 = vmatpush.xpose.msra.mxu0 %v515
        %3211 = vmatpush.xpose.msra.mxu0 %v401
        %3212 = vmatmul.f32.gmra.mxu0 %v1927
        %v3213 = vpop.f32.mrf.mxu0
        %v3214 = vadd.f32 %v3194, %v3213
        %3215 = vdwg.mxu0
        %3216 = vmatpush.xpose.msra.mxu0 0.0
        %3217 = vmatpush.xpose.msra.mxu0 0.0
        %3218 = vmatpush.xpose.msra.mxu0 0.0
        %3219 = vmatpush.xpose.msra.mxu0 %v1770
        %3220 = vmatpush.xpose.msra.mxu0 %v1656
        %3221 = vmatpush.xpose.msra.mxu0 %v1542
        %3222 = vmatpush.xpose.msra.mxu0 %v1428
        %3223 = vmatpush.xpose.msra.mxu0 %v1314
        %3224 = vmatpush.xpose.msra.mxu0 %v1200
        %3225 = vmatpush.xpose.msra.mxu0 %v1086
        %3226 = vmatpush.xpose.msra.mxu0 %v972
        %3227 = vmatpush.xpose.msra.mxu0 %v858
        %3228 = vmatpush.xpose.msra.mxu0 %v744
        %3229 = vmatpush.xpose.msra.mxu0 %v630
        %3230 = vmatpush.xpose.msra.mxu0 %v516
        %3231 = vmatpush.xpose.msra.mxu0 %v402
        %3232 = vmatmul.f32.gmra.mxu0 %v1928
        %v3233 = vpop.f32.mrf.mxu0
        %v3234 = vadd.f32 %v3214, %v3233
        %3235 = vdwg.mxu0
        %3236 = vmatpush.xpose.msra.mxu0 0.0
        %3237 = vmatpush.xpose.msra.mxu0 0.0
        %3238 = vmatpush.xpose.msra.mxu0 0.0
        %3239 = vmatpush.xpose.msra.mxu0 %v1771
        %3240 = vmatpush.xpose.msra.mxu0 %v1657
        %3241 = vmatpush.xpose.msra.mxu0 %v1543
        %3242 = vmatpush.xpose.msra.mxu0 %v1429
        %3243 = vmatpush.xpose.msra.mxu0 %v1315
        %3244 = vmatpush.xpose.msra.mxu0 %v1201
        %3245 = vmatpush.xpose.msra.mxu0 %v1087
        %3246 = vmatpush.xpose.msra.mxu0 %v973
        %3247 = vmatpush.xpose.msra.mxu0 %v859
        %3248 = vmatpush.xpose.msra.mxu0 %v745
        %3249 = vmatpush.xpose.msra.mxu0 %v631
        %3250 = vmatpush.xpose.msra.mxu0 %v517
        %3251 = vmatpush.xpose.msra.mxu0 %v403
        %3252 = vmatmul.f32.gmra.mxu0 %v1931
        %v3253 = vpop.f32.mrf.mxu0
        %v3254 = vadd.f32 %v3234, %v3253
        %3255 = vdwg.mxu0
        %3256 = vmatpush.xpose.msra.mxu0 0.0
        %3257 = vmatpush.xpose.msra.mxu0 0.0
        %3258 = vmatpush.xpose.msra.mxu0 0.0
        %3259 = vmatpush.xpose.msra.mxu0 %v1772
        %3260 = vmatpush.xpose.msra.mxu0 %v1658
        %3261 = vmatpush.xpose.msra.mxu0 %v1544
        %3262 = vmatpush.xpose.msra.mxu0 %v1430
        %3263 = vmatpush.xpose.msra.mxu0 %v1316
        %3264 = vmatpush.xpose.msra.mxu0 %v1202
        %3265 = vmatpush.xpose.msra.mxu0 %v1088
        %3266 = vmatpush.xpose.msra.mxu0 %v974
        %3267 = vmatpush.xpose.msra.mxu0 %v860
        %3268 = vmatpush.xpose.msra.mxu0 %v746
        %3269 = vmatpush.xpose.msra.mxu0 %v632
        %3270 = vmatpush.xpose.msra.mxu0 %v518
        %3271 = vmatpush.xpose.msra.mxu0 %v404
        %3272 = vmatmul.f32.gmra.mxu0 %v1932
        %v3273 = vpop.f32.mrf.mxu0
        %v3274 = vadd.f32 %v3254, %v3273
        %3275 = vdwg.mxu0
        %3276 = vmatpush.xpose.msra.mxu0 0.0
        %3277 = vmatpush.xpose.msra.mxu0 0.0
        %3278 = vmatpush.xpose.msra.mxu0 0.0
        %3279 = vmatpush.xpose.msra.mxu0 %v1773
        %3280 = vmatpush.xpose.msra.mxu0 %v1659
        %3281 = vmatpush.xpose.msra.mxu0 %v1545
        %3282 = vmatpush.xpose.msra.mxu0 %v1431
        %3283 = vmatpush.xpose.msra.mxu0 %v1317
        %3284 = vmatpush.xpose.msra.mxu0 %v1203
        %3285 = vmatpush.xpose.msra.mxu0 %v1089
        %3286 = vmatpush.xpose.msra.mxu0 %v975
        %3287 = vmatpush.xpose.msra.mxu0 %v861
        %3288 = vmatpush.xpose.msra.mxu0 %v747
        %3289 = vmatpush.xpose.msra.mxu0 %v633
        %3290 = vmatpush.xpose.msra.mxu0 %v519
        %3291 = vmatpush.xpose.msra.mxu0 %v405
        %3292 = vmatmul.f32.gmra.mxu0 %v1933
        %v3293 = vpop.f32.mrf.mxu0
        %v3294 = vadd.f32 %v3274, %v3293
        %3295 = vdwg.mxu0
        %3296 = vmatpush.xpose.msra.mxu0 0.0
        %3297 = vmatpush.xpose.msra.mxu0 0.0
        %3298 = vmatpush.xpose.msra.mxu0 0.0
        %3299 = vmatpush.xpose.msra.mxu0 %v1774
        %3300 = vmatpush.xpose.msra.mxu0 %v1660
        %3301 = vmatpush.xpose.msra.mxu0 %v1546
        %3302 = vmatpush.xpose.msra.mxu0 %v1432
        %3303 = vmatpush.xpose.msra.mxu0 %v1318
        %3304 = vmatpush.xpose.msra.mxu0 %v1204
        %3305 = vmatpush.xpose.msra.mxu0 %v1090
        %3306 = vmatpush.xpose.msra.mxu0 %v976
        %3307 = vmatpush.xpose.msra.mxu0 %v862
        %3308 = vmatpush.xpose.msra.mxu0 %v748
        %3309 = vmatpush.xpose.msra.mxu0 %v634
        %3310 = vmatpush.xpose.msra.mxu0 %v520
        %3311 = vmatpush.xpose.msra.mxu0 %v406
        %3312 = vmatmul.f32.gmra.mxu0 %v1934
        %v3313 = vpop.f32.mrf.mxu0
        %v3314 = vadd.f32 %v3294, %v3313
        %3315 = vdwg.mxu0
        %3316 = vmatpush.xpose.msra.mxu0 0.0
        %3317 = vmatpush.xpose.msra.mxu0 0.0
        %3318 = vmatpush.xpose.msra.mxu0 0.0
        %3319 = vmatpush.xpose.msra.mxu0 %v1775
        %3320 = vmatpush.xpose.msra.mxu0 %v1661
        %3321 = vmatpush.xpose.msra.mxu0 %v1547
        %3322 = vmatpush.xpose.msra.mxu0 %v1433
        %3323 = vmatpush.xpose.msra.mxu0 %v1319
        %3324 = vmatpush.xpose.msra.mxu0 %v1205
        %3325 = vmatpush.xpose.msra.mxu0 %v1091
        %3326 = vmatpush.xpose.msra.mxu0 %v977
        %3327 = vmatpush.xpose.msra.mxu0 %v863
        %3328 = vmatpush.xpose.msra.mxu0 %v749
        %3329 = vmatpush.xpose.msra.mxu0 %v635
        %3330 = vmatpush.xpose.msra.mxu0 %v521
        %3331 = vmatpush.xpose.msra.mxu0 %v407
        %3332 = vmatmul.f32.gmra.mxu0 %v1935
        %v3333 = vpop.f32.mrf.mxu0
        %v3334 = vadd.f32 %v3314, %v3333
        %3335 = vdwg.mxu0
        %3336 = vmatpush.xpose.msra.mxu0 0.0
        %3337 = vmatpush.xpose.msra.mxu0 0.0
        %3338 = vmatpush.xpose.msra.mxu0 0.0
        %3339 = vmatpush.xpose.msra.mxu0 %v1776
        %3340 = vmatpush.xpose.msra.mxu0 %v1662
        %3341 = vmatpush.xpose.msra.mxu0 %v1548
        %3342 = vmatpush.xpose.msra.mxu0 %v1434
        %3343 = vmatpush.xpose.msra.mxu0 %v1320
        %3344 = vmatpush.xpose.msra.mxu0 %v1206
        %3345 = vmatpush.xpose.msra.mxu0 %v1092
        %3346 = vmatpush.xpose.msra.mxu0 %v978
        %3347 = vmatpush.xpose.msra.mxu0 %v864
        %3348 = vmatpush.xpose.msra.mxu0 %v750
        %3349 = vmatpush.xpose.msra.mxu0 %v636
        %3350 = vmatpush.xpose.msra.mxu0 %v522
        %3351 = vmatpush.xpose.msra.mxu0 %v408
        %3352 = vmatmul.f32.gmra.mxu0 %v1936
        %v3353 = vpop.f32.mrf.mxu0
        %v3354 = vadd.f32 %v3334, %v3353
        %3355 = vdwg.mxu0
        %3356 = vmatpush.xpose.msra.mxu0 0.0
        %3357 = vmatpush.xpose.msra.mxu0 0.0
        %3358 = vmatpush.xpose.msra.mxu0 0.0
        %3359 = vmatpush.xpose.msra.mxu0 %v1777
        %3360 = vmatpush.xpose.msra.mxu0 %v1663
        %3361 = vmatpush.xpose.msra.mxu0 %v1549
        %3362 = vmatpush.xpose.msra.mxu0 %v1435
        %3363 = vmatpush.xpose.msra.mxu0 %v1321
        %3364 = vmatpush.xpose.msra.mxu0 %v1207
        %3365 = vmatpush.xpose.msra.mxu0 %v1093
        %3366 = vmatpush.xpose.msra.mxu0 %v979
        %3367 = vmatpush.xpose.msra.mxu0 %v865
        %3368 = vmatpush.xpose.msra.mxu0 %v751
        %3369 = vmatpush.xpose.msra.mxu0 %v637
        %3370 = vmatpush.xpose.msra.mxu0 %v523
        %3371 = vmatpush.xpose.msra.mxu0 %v409
        %3372 = vmatmul.f32.gmra.mxu0 %v1937
        %v3373 = vpop.f32.mrf.mxu0
        %v3374 = vadd.f32 %v3354, %v3373
        %3375 = vdwg.mxu0
        %3376 = vmatpush.xpose.msra.mxu0 0.0
        %3377 = vmatpush.xpose.msra.mxu0 0.0
        %3378 = vmatpush.xpose.msra.mxu0 0.0
        %3379 = vmatpush.xpose.msra.mxu0 %v1778
        %3380 = vmatpush.xpose.msra.mxu0 %v1664
        %3381 = vmatpush.xpose.msra.mxu0 %v1550
        %3382 = vmatpush.xpose.msra.mxu0 %v1436
        %3383 = vmatpush.xpose.msra.mxu0 %v1322
        %3384 = vmatpush.xpose.msra.mxu0 %v1208
        %3385 = vmatpush.xpose.msra.mxu0 %v1094
        %3386 = vmatpush.xpose.msra.mxu0 %v980
        %3387 = vmatpush.xpose.msra.mxu0 %v866
        %3388 = vmatpush.xpose.msra.mxu0 %v752
        %3389 = vmatpush.xpose.msra.mxu0 %v638
        %3390 = vmatpush.xpose.msra.mxu0 %v524
        %3391 = vmatpush.xpose.msra.mxu0 %v410
        %3392 = vmatmul.f32.gmra.mxu0 %v1938
        %v3393 = vpop.f32.mrf.mxu0
        %v3394 = vadd.f32 %v3374, %v3393
        %3395 = vdwg.mxu0
        %3396 = vmatpush.xpose.msra.mxu0 0.0
        %3397 = vmatpush.xpose.msra.mxu0 0.0
        %3398 = vmatpush.xpose.msra.mxu0 0.0
        %3399 = vmatpush.xpose.msra.mxu0 %v1779
        %3400 = vmatpush.xpose.msra.mxu0 %v1665
        %3401 = vmatpush.xpose.msra.mxu0 %v1551
        %3402 = vmatpush.xpose.msra.mxu0 %v1437
        %3403 = vmatpush.xpose.msra.mxu0 %v1323
        %3404 = vmatpush.xpose.msra.mxu0 %v1209
        %3405 = vmatpush.xpose.msra.mxu0 %v1095
        %3406 = vmatpush.xpose.msra.mxu0 %v981
        %3407 = vmatpush.xpose.msra.mxu0 %v867
        %3408 = vmatpush.xpose.msra.mxu0 %v753
        %3409 = vmatpush.xpose.msra.mxu0 %v639
        %3410 = vmatpush.xpose.msra.mxu0 %v525
        %3411 = vmatpush.xpose.msra.mxu0 %v411
        %3412 = vmatmul.f32.gmra.mxu0 %v1941
        %v3413 = vpop.f32.mrf.mxu0
        %v3414 = vadd.f32 %v3394, %v3413
        %3415 = vdwg.mxu0
        %3416 = vmatpush.xpose.msra.mxu0 0.0
        %3417 = vmatpush.xpose.msra.mxu0 0.0
        %3418 = vmatpush.xpose.msra.mxu0 0.0
        %3419 = vmatpush.xpose.msra.mxu0 %v1780
        %3420 = vmatpush.xpose.msra.mxu0 %v1666
        %3421 = vmatpush.xpose.msra.mxu0 %v1552
        %3422 = vmatpush.xpose.msra.mxu0 %v1438
        %3423 = vmatpush.xpose.msra.mxu0 %v1324
        %3424 = vmatpush.xpose.msra.mxu0 %v1210
        %3425 = vmatpush.xpose.msra.mxu0 %v1096
        %3426 = vmatpush.xpose.msra.mxu0 %v982
        %3427 = vmatpush.xpose.msra.mxu0 %v868
        %3428 = vmatpush.xpose.msra.mxu0 %v754
        %3429 = vmatpush.xpose.msra.mxu0 %v640
        %3430 = vmatpush.xpose.msra.mxu0 %v526
        %3431 = vmatpush.xpose.msra.mxu0 %v412
        %3432 = vmatmul.f32.gmra.mxu0 %v1942
        %v3433 = vpop.f32.mrf.mxu0
        %v3434 = vadd.f32 %v3414, %v3433
        %3435 = vdwg.mxu0
        %3436 = vmatpush.xpose.msra.mxu0 0.0
        %3437 = vmatpush.xpose.msra.mxu0 0.0
        %3438 = vmatpush.xpose.msra.mxu0 0.0
        %3439 = vmatpush.xpose.msra.mxu0 %v1781
        %3440 = vmatpush.xpose.msra.mxu0 %v1667
        %3441 = vmatpush.xpose.msra.mxu0 %v1553
        %3442 = vmatpush.xpose.msra.mxu0 %v1439
        %3443 = vmatpush.xpose.msra.mxu0 %v1325
        %3444 = vmatpush.xpose.msra.mxu0 %v1211
        %3445 = vmatpush.xpose.msra.mxu0 %v1097
        %3446 = vmatpush.xpose.msra.mxu0 %v983
        %3447 = vmatpush.xpose.msra.mxu0 %v869
        %3448 = vmatpush.xpose.msra.mxu0 %v755
        %3449 = vmatpush.xpose.msra.mxu0 %v641
        %3450 = vmatpush.xpose.msra.mxu0 %v527
        %3451 = vmatpush.xpose.msra.mxu0 %v413
        %3452 = vmatmul.f32.gmra.mxu0 %v1943
        %v3453 = vpop.f32.mrf.mxu0
        %v3454 = vadd.f32 %v3434, %v3453
        %3455 = vdwg.mxu0
        %3456 = vmatpush.xpose.msra.mxu0 0.0
        %3457 = vmatpush.xpose.msra.mxu0 0.0
        %3458 = vmatpush.xpose.msra.mxu0 0.0
        %3459 = vmatpush.xpose.msra.mxu0 %v1782
        %3460 = vmatpush.xpose.msra.mxu0 %v1668
        %3461 = vmatpush.xpose.msra.mxu0 %v1554
        %3462 = vmatpush.xpose.msra.mxu0 %v1440
        %3463 = vmatpush.xpose.msra.mxu0 %v1326
        %3464 = vmatpush.xpose.msra.mxu0 %v1212
        %3465 = vmatpush.xpose.msra.mxu0 %v1098
        %3466 = vmatpush.xpose.msra.mxu0 %v984
        %3467 = vmatpush.xpose.msra.mxu0 %v870
        %3468 = vmatpush.xpose.msra.mxu0 %v756
        %3469 = vmatpush.xpose.msra.mxu0 %v642
        %3470 = vmatpush.xpose.msra.mxu0 %v528
        %3471 = vmatpush.xpose.msra.mxu0 %v414
        %3472 = vmatmul.f32.gmra.mxu0 %v1944
        %v3473 = vpop.f32.mrf.mxu0
        %v3474 = vadd.f32 %v3454, %v3473
        %3475 = vdwg.mxu0
        %3476 = vmatpush.xpose.msra.mxu0 0.0
        %3477 = vmatpush.xpose.msra.mxu0 0.0
        %3478 = vmatpush.xpose.msra.mxu0 0.0
        %3479 = vmatpush.xpose.msra.mxu0 %v1783
        %3480 = vmatpush.xpose.msra.mxu0 %v1669
        %3481 = vmatpush.xpose.msra.mxu0 %v1555
        %3482 = vmatpush.xpose.msra.mxu0 %v1441
        %3483 = vmatpush.xpose.msra.mxu0 %v1327
        %3484 = vmatpush.xpose.msra.mxu0 %v1213
        %3485 = vmatpush.xpose.msra.mxu0 %v1099
        %3486 = vmatpush.xpose.msra.mxu0 %v985
        %3487 = vmatpush.xpose.msra.mxu0 %v871
        %3488 = vmatpush.xpose.msra.mxu0 %v757
        %3489 = vmatpush.xpose.msra.mxu0 %v643
        %3490 = vmatpush.xpose.msra.mxu0 %v529
        %3491 = vmatpush.xpose.msra.mxu0 %v415
        %3492 = vmatmul.f32.gmra.mxu0 %v1945
        %v3493 = vpop.f32.mrf.mxu0
        %v3494 = vadd.f32 %v3474, %v3493
        %3495 = vdwg.mxu0
        %3496 = vmatpush.xpose.msra.mxu0 0.0
        %3497 = vmatpush.xpose.msra.mxu0 0.0
        %3498 = vmatpush.xpose.msra.mxu0 0.0
        %3499 = vmatpush.xpose.msra.mxu0 %v1784
        %3500 = vmatpush.xpose.msra.mxu0 %v1670
        %3501 = vmatpush.xpose.msra.mxu0 %v1556
        %3502 = vmatpush.xpose.msra.mxu0 %v1442
        %3503 = vmatpush.xpose.msra.mxu0 %v1328
        %3504 = vmatpush.xpose.msra.mxu0 %v1214
        %3505 = vmatpush.xpose.msra.mxu0 %v1100
        %3506 = vmatpush.xpose.msra.mxu0 %v986
        %3507 = vmatpush.xpose.msra.mxu0 %v872
        %3508 = vmatpush.xpose.msra.mxu0 %v758
        %3509 = vmatpush.xpose.msra.mxu0 %v644
        %3510 = vmatpush.xpose.msra.mxu0 %v530
        %3511 = vmatpush.xpose.msra.mxu0 %v416
        %3512 = vmatmul.f32.gmra.mxu0 %v1946
        %v3513 = vpop.f32.mrf.mxu0
        %v3514 = vadd.f32 %v3494, %v3513
        %3515 = vdwg.mxu0
        %3516 = vmatpush.xpose.msra.mxu0 0.0
        %3517 = vmatpush.xpose.msra.mxu0 0.0
        %3518 = vmatpush.xpose.msra.mxu0 0.0
        %3519 = vmatpush.xpose.msra.mxu0 %v1785
        %3520 = vmatpush.xpose.msra.mxu0 %v1671
        %3521 = vmatpush.xpose.msra.mxu0 %v1557
        %3522 = vmatpush.xpose.msra.mxu0 %v1443
        %3523 = vmatpush.xpose.msra.mxu0 %v1329
        %3524 = vmatpush.xpose.msra.mxu0 %v1215
        %3525 = vmatpush.xpose.msra.mxu0 %v1101
        %3526 = vmatpush.xpose.msra.mxu0 %v987
        %3527 = vmatpush.xpose.msra.mxu0 %v873
        %3528 = vmatpush.xpose.msra.mxu0 %v759
        %3529 = vmatpush.xpose.msra.mxu0 %v645
        %3530 = vmatpush.xpose.msra.mxu0 %v531
        %3531 = vmatpush.xpose.msra.mxu0 %v417
        %3532 = vmatmul.f32.gmra.mxu0 %v1947
        %v3533 = vpop.f32.mrf.mxu0
        %v3534 = vadd.f32 %v3514, %v3533
        %3535 = vdwg.mxu0
        %3536 = vmatpush.xpose.msra.mxu0 0.0
        %3537 = vmatpush.xpose.msra.mxu0 0.0
        %3538 = vmatpush.xpose.msra.mxu0 0.0
        %3539 = vmatpush.xpose.msra.mxu0 %v1786
        %3540 = vmatpush.xpose.msra.mxu0 %v1672
        %3541 = vmatpush.xpose.msra.mxu0 %v1558
        %3542 = vmatpush.xpose.msra.mxu0 %v1444
        %3543 = vmatpush.xpose.msra.mxu0 %v1330
        %3544 = vmatpush.xpose.msra.mxu0 %v1216
        %3545 = vmatpush.xpose.msra.mxu0 %v1102
        %3546 = vmatpush.xpose.msra.mxu0 %v988
        %3547 = vmatpush.xpose.msra.mxu0 %v874
        %3548 = vmatpush.xpose.msra.mxu0 %v760
        %3549 = vmatpush.xpose.msra.mxu0 %v646
        %3550 = vmatpush.xpose.msra.mxu0 %v532
        %3551 = vmatpush.xpose.msra.mxu0 %v418
        %3552 = vmatmul.f32.gmra.mxu0 %v1948
        %v3553 = vpop.f32.mrf.mxu0
        %v3554 = vadd.f32 %v3534, %v3553
        %3555 = vdwg.mxu0
        %3556 = vmatpush.xpose.msra.mxu0 0.0
        %3557 = vmatpush.xpose.msra.mxu0 0.0
        %3558 = vmatpush.xpose.msra.mxu0 0.0
        %3559 = vmatpush.xpose.msra.mxu0 %v1787
        %3560 = vmatpush.xpose.msra.mxu0 %v1673
        %3561 = vmatpush.xpose.msra.mxu0 %v1559
        %3562 = vmatpush.xpose.msra.mxu0 %v1445
        %3563 = vmatpush.xpose.msra.mxu0 %v1331
        %3564 = vmatpush.xpose.msra.mxu0 %v1217
        %3565 = vmatpush.xpose.msra.mxu0 %v1103
        %3566 = vmatpush.xpose.msra.mxu0 %v989
        %3567 = vmatpush.xpose.msra.mxu0 %v875
        %3568 = vmatpush.xpose.msra.mxu0 %v761
        %3569 = vmatpush.xpose.msra.mxu0 %v647
        %3570 = vmatpush.xpose.msra.mxu0 %v533
        %3571 = vmatpush.xpose.msra.mxu0 %v419
        %3572 = vmatmul.f32.gmra.mxu0 %v1951
        %v3573 = vpop.f32.mrf.mxu0
        %v3574 = vadd.f32 %v3554, %v3573
        %3575 = vdwg.mxu0
        %3576 = vmatpush.xpose.msra.mxu0 0.0
        %3577 = vmatpush.xpose.msra.mxu0 0.0
        %3578 = vmatpush.xpose.msra.mxu0 0.0
        %3579 = vmatpush.xpose.msra.mxu0 %v1788
        %3580 = vmatpush.xpose.msra.mxu0 %v1674
        %3581 = vmatpush.xpose.msra.mxu0 %v1560
        %3582 = vmatpush.xpose.msra.mxu0 %v1446
        %3583 = vmatpush.xpose.msra.mxu0 %v1332
        %3584 = vmatpush.xpose.msra.mxu0 %v1218
        %3585 = vmatpush.xpose.msra.mxu0 %v1104
        %3586 = vmatpush.xpose.msra.mxu0 %v990
        %3587 = vmatpush.xpose.msra.mxu0 %v876
        %3588 = vmatpush.xpose.msra.mxu0 %v762
        %3589 = vmatpush.xpose.msra.mxu0 %v648
        %3590 = vmatpush.xpose.msra.mxu0 %v534
        %3591 = vmatpush.xpose.msra.mxu0 %v420
        %3592 = vmatmul.f32.gmra.mxu0 %v1952
        %v3593 = vpop.f32.mrf.mxu0
        %v3594 = vadd.f32 %v3574, %v3593
        %3595 = vdwg.mxu0
        %3596 = vmatpush.xpose.msra.mxu0 0.0
        %3597 = vmatpush.xpose.msra.mxu0 0.0
        %3598 = vmatpush.xpose.msra.mxu0 0.0
        %3599 = vmatpush.xpose.msra.mxu0 %v1789
        %3600 = vmatpush.xpose.msra.mxu0 %v1675
        %3601 = vmatpush.xpose.msra.mxu0 %v1561
        %3602 = vmatpush.xpose.msra.mxu0 %v1447
        %3603 = vmatpush.xpose.msra.mxu0 %v1333
        %3604 = vmatpush.xpose.msra.mxu0 %v1219
        %3605 = vmatpush.xpose.msra.mxu0 %v1105
        %3606 = vmatpush.xpose.msra.mxu0 %v991
        %3607 = vmatpush.xpose.msra.mxu0 %v877
        %3608 = vmatpush.xpose.msra.mxu0 %v763
        %3609 = vmatpush.xpose.msra.mxu0 %v649
        %3610 = vmatpush.xpose.msra.mxu0 %v535
        %3611 = vmatpush.xpose.msra.mxu0 %v421
        %3612 = vmatmul.f32.gmra.mxu0 %v1953
        %v3613 = vpop.f32.mrf.mxu0
        %v3614 = vadd.f32 %v3594, %v3613
        %3615 = vdwg.mxu0
        %3616 = vmatpush.xpose.msra.mxu0 0.0
        %3617 = vmatpush.xpose.msra.mxu0 0.0
        %3618 = vmatpush.xpose.msra.mxu0 0.0
        %3619 = vmatpush.xpose.msra.mxu0 %v1790
        %3620 = vmatpush.xpose.msra.mxu0 %v1676
        %3621 = vmatpush.xpose.msra.mxu0 %v1562
        %3622 = vmatpush.xpose.msra.mxu0 %v1448
        %3623 = vmatpush.xpose.msra.mxu0 %v1334
        %3624 = vmatpush.xpose.msra.mxu0 %v1220
        %3625 = vmatpush.xpose.msra.mxu0 %v1106
        %3626 = vmatpush.xpose.msra.mxu0 %v992
        %3627 = vmatpush.xpose.msra.mxu0 %v878
        %3628 = vmatpush.xpose.msra.mxu0 %v764
        %3629 = vmatpush.xpose.msra.mxu0 %v650
        %3630 = vmatpush.xpose.msra.mxu0 %v536
        %3631 = vmatpush.xpose.msra.mxu0 %v422
        %3632 = vmatmul.f32.gmra.mxu0 %v1954
        %v3633 = vpop.f32.mrf.mxu0
        %v3634 = vadd.f32 %v3614, %v3633
        %3635 = vdwg.mxu0
        %3636 = vmatpush.xpose.msra.mxu0 0.0
        %3637 = vmatpush.xpose.msra.mxu0 0.0
        %3638 = vmatpush.xpose.msra.mxu0 0.0
        %3639 = vmatpush.xpose.msra.mxu0 %v1791
        %3640 = vmatpush.xpose.msra.mxu0 %v1677
        %3641 = vmatpush.xpose.msra.mxu0 %v1563
        %3642 = vmatpush.xpose.msra.mxu0 %v1449
        %3643 = vmatpush.xpose.msra.mxu0 %v1335
        %3644 = vmatpush.xpose.msra.mxu0 %v1221
        %3645 = vmatpush.xpose.msra.mxu0 %v1107
        %3646 = vmatpush.xpose.msra.mxu0 %v993
        %3647 = vmatpush.xpose.msra.mxu0 %v879
        %3648 = vmatpush.xpose.msra.mxu0 %v765
        %3649 = vmatpush.xpose.msra.mxu0 %v651
        %3650 = vmatpush.xpose.msra.mxu0 %v537
        %3651 = vmatpush.xpose.msra.mxu0 %v423
        %3652 = vmatmul.f32.gmra.mxu0 %v1955
        %v3653 = vpop.f32.mrf.mxu0
        %v3654 = vadd.f32 %v3634, %v3653
        %3655 = vdwg.mxu0
        %3656 = vmatpush.xpose.msra.mxu0 0.0
        %3657 = vmatpush.xpose.msra.mxu0 0.0
        %3658 = vmatpush.xpose.msra.mxu0 0.0
        %3659 = vmatpush.xpose.msra.mxu0 %v1792
        %3660 = vmatpush.xpose.msra.mxu0 %v1678
        %3661 = vmatpush.xpose.msra.mxu0 %v1564
        %3662 = vmatpush.xpose.msra.mxu0 %v1450
        %3663 = vmatpush.xpose.msra.mxu0 %v1336
        %3664 = vmatpush.xpose.msra.mxu0 %v1222
        %3665 = vmatpush.xpose.msra.mxu0 %v1108
        %3666 = vmatpush.xpose.msra.mxu0 %v994
        %3667 = vmatpush.xpose.msra.mxu0 %v880
        %3668 = vmatpush.xpose.msra.mxu0 %v766
        %3669 = vmatpush.xpose.msra.mxu0 %v652
        %3670 = vmatpush.xpose.msra.mxu0 %v538
        %3671 = vmatpush.xpose.msra.mxu0 %v424
        %3672 = vmatmul.f32.gmra.mxu0 %v1956
        %v3673 = vpop.f32.mrf.mxu0
        %v3674 = vadd.f32 %v3654, %v3673
        %3675 = vdwg.mxu0
        %3676 = vmatpush.xpose.msra.mxu0 0.0
        %3677 = vmatpush.xpose.msra.mxu0 0.0
        %3678 = vmatpush.xpose.msra.mxu0 0.0
        %3679 = vmatpush.xpose.msra.mxu0 %v1793
        %3680 = vmatpush.xpose.msra.mxu0 %v1679
        %3681 = vmatpush.xpose.msra.mxu0 %v1565
        %3682 = vmatpush.xpose.msra.mxu0 %v1451
        %3683 = vmatpush.xpose.msra.mxu0 %v1337
        %3684 = vmatpush.xpose.msra.mxu0 %v1223
        %3685 = vmatpush.xpose.msra.mxu0 %v1109
        %3686 = vmatpush.xpose.msra.mxu0 %v995
        %3687 = vmatpush.xpose.msra.mxu0 %v881
        %3688 = vmatpush.xpose.msra.mxu0 %v767
        %3689 = vmatpush.xpose.msra.mxu0 %v653
        %3690 = vmatpush.xpose.msra.mxu0 %v539
        %3691 = vmatpush.xpose.msra.mxu0 %v425
        %3692 = vmatmul.f32.gmra.mxu0 %v1957
        %v3693 = vpop.f32.mrf.mxu0
        %v3694 = vadd.f32 %v3674, %v3693
        %3695 = vdwg.mxu0
        %3696 = vmatpush.xpose.msra.mxu0 0.0
        %3697 = vmatpush.xpose.msra.mxu0 0.0
        %3698 = vmatpush.xpose.msra.mxu0 0.0
        %3699 = vmatpush.xpose.msra.mxu0 %v1794
        %3700 = vmatpush.xpose.msra.mxu0 %v1680
        %3701 = vmatpush.xpose.msra.mxu0 %v1566
        %3702 = vmatpush.xpose.msra.mxu0 %v1452
        %3703 = vmatpush.xpose.msra.mxu0 %v1338
        %3704 = vmatpush.xpose.msra.mxu0 %v1224
        %3705 = vmatpush.xpose.msra.mxu0 %v1110
        %3706 = vmatpush.xpose.msra.mxu0 %v996
        %3707 = vmatpush.xpose.msra.mxu0 %v882
        %3708 = vmatpush.xpose.msra.mxu0 %v768
        %3709 = vmatpush.xpose.msra.mxu0 %v654
        %3710 = vmatpush.xpose.msra.mxu0 %v540
        %3711 = vmatpush.xpose.msra.mxu0 %v426
        %3712 = vmatmul.f32.gmra.mxu0 %v1958
        %v3713 = vpop.f32.mrf.mxu0
        %v3714 = vadd.f32 %v3694, %v3713
        %3715 = vdwg.mxu0
        %3716 = vmatpush.xpose.msra.mxu0 0.0
        %3717 = vmatpush.xpose.msra.mxu0 0.0
        %3718 = vmatpush.xpose.msra.mxu0 0.0
        %3719 = vmatpush.xpose.msra.mxu0 %v1795
        %3720 = vmatpush.xpose.msra.mxu0 %v1681
        %3721 = vmatpush.xpose.msra.mxu0 %v1567
        %3722 = vmatpush.xpose.msra.mxu0 %v1453
        %3723 = vmatpush.xpose.msra.mxu0 %v1339
        %3724 = vmatpush.xpose.msra.mxu0 %v1225
        %3725 = vmatpush.xpose.msra.mxu0 %v1111
        %3726 = vmatpush.xpose.msra.mxu0 %v997
        %3727 = vmatpush.xpose.msra.mxu0 %v883
        %3728 = vmatpush.xpose.msra.mxu0 %v769
        %3729 = vmatpush.xpose.msra.mxu0 %v655
        %3730 = vmatpush.xpose.msra.mxu0 %v541
        %3731 = vmatpush.xpose.msra.mxu0 %v427
        %3732 = vmatmul.f32.gmra.mxu0 %v1961
        %v3733 = vpop.f32.mrf.mxu0
        %v3734 = vadd.f32 %v3714, %v3733
        %3735 = vdwg.mxu0
        %3736 = vmatpush.xpose.msra.mxu0 0.0
        %3737 = vmatpush.xpose.msra.mxu0 0.0
        %3738 = vmatpush.xpose.msra.mxu0 0.0
        %3739 = vmatpush.xpose.msra.mxu0 %v1796
        %3740 = vmatpush.xpose.msra.mxu0 %v1682
        %3741 = vmatpush.xpose.msra.mxu0 %v1568
        %3742 = vmatpush.xpose.msra.mxu0 %v1454
        %3743 = vmatpush.xpose.msra.mxu0 %v1340
        %3744 = vmatpush.xpose.msra.mxu0 %v1226
        %3745 = vmatpush.xpose.msra.mxu0 %v1112
        %3746 = vmatpush.xpose.msra.mxu0 %v998
        %3747 = vmatpush.xpose.msra.mxu0 %v884
        %3748 = vmatpush.xpose.msra.mxu0 %v770
        %3749 = vmatpush.xpose.msra.mxu0 %v656
        %3750 = vmatpush.xpose.msra.mxu0 %v542
        %3751 = vmatpush.xpose.msra.mxu0 %v428
        %3752 = vmatmul.f32.gmra.mxu0 %v1962
        %v3753 = vpop.f32.mrf.mxu0
        %v3754 = vadd.f32 %v3734, %v3753
        %3755 = vdwg.mxu0
        %3756 = vmatpush.xpose.msra.mxu0 0.0
        %3757 = vmatpush.xpose.msra.mxu0 0.0
        %3758 = vmatpush.xpose.msra.mxu0 0.0
        %3759 = vmatpush.xpose.msra.mxu0 %v1797
        %3760 = vmatpush.xpose.msra.mxu0 %v1683
        %3761 = vmatpush.xpose.msra.mxu0 %v1569
        %3762 = vmatpush.xpose.msra.mxu0 %v1455
        %3763 = vmatpush.xpose.msra.mxu0 %v1341
        %3764 = vmatpush.xpose.msra.mxu0 %v1227
        %3765 = vmatpush.xpose.msra.mxu0 %v1113
        %3766 = vmatpush.xpose.msra.mxu0 %v999
        %3767 = vmatpush.xpose.msra.mxu0 %v885
        %3768 = vmatpush.xpose.msra.mxu0 %v771
        %3769 = vmatpush.xpose.msra.mxu0 %v657
        %3770 = vmatpush.xpose.msra.mxu0 %v543
        %3771 = vmatpush.xpose.msra.mxu0 %v429
        %3772 = vmatmul.f32.gmra.mxu0 %v1963
        %v3773 = vpop.f32.mrf.mxu0
        %v3774 = vadd.f32 %v3754, %v3773
        %3775 = vdwg.mxu0
        %3776 = vmatpush.xpose.msra.mxu0 0.0
        %3777 = vmatpush.xpose.msra.mxu0 0.0
        %3778 = vmatpush.xpose.msra.mxu0 0.0
        %3779 = vmatpush.xpose.msra.mxu0 %v1798
        %3780 = vmatpush.xpose.msra.mxu0 %v1684
        %3781 = vmatpush.xpose.msra.mxu0 %v1570
        %3782 = vmatpush.xpose.msra.mxu0 %v1456
        %3783 = vmatpush.xpose.msra.mxu0 %v1342
        %3784 = vmatpush.xpose.msra.mxu0 %v1228
        %3785 = vmatpush.xpose.msra.mxu0 %v1114
        %3786 = vmatpush.xpose.msra.mxu0 %v1000
        %3787 = vmatpush.xpose.msra.mxu0 %v886
        %3788 = vmatpush.xpose.msra.mxu0 %v772
        %3789 = vmatpush.xpose.msra.mxu0 %v658
        %3790 = vmatpush.xpose.msra.mxu0 %v544
        %3791 = vmatpush.xpose.msra.mxu0 %v430
        %3792 = vmatmul.f32.gmra.mxu0 %v1964
        %v3793 = vpop.f32.mrf.mxu0
        %v3794 = vadd.f32 %v3774, %v3793
        %3795 = vdwg.mxu0
        %3796 = vmatpush.xpose.msra.mxu0 0.0
        %3797 = vmatpush.xpose.msra.mxu0 0.0
        %3798 = vmatpush.xpose.msra.mxu0 0.0
        %3799 = vmatpush.xpose.msra.mxu0 %v1799
        %3800 = vmatpush.xpose.msra.mxu0 %v1685
        %3801 = vmatpush.xpose.msra.mxu0 %v1571
        %3802 = vmatpush.xpose.msra.mxu0 %v1457
        %3803 = vmatpush.xpose.msra.mxu0 %v1343
        %3804 = vmatpush.xpose.msra.mxu0 %v1229
        %3805 = vmatpush.xpose.msra.mxu0 %v1115
        %3806 = vmatpush.xpose.msra.mxu0 %v1001
        %3807 = vmatpush.xpose.msra.mxu0 %v887
        %3808 = vmatpush.xpose.msra.mxu0 %v773
        %3809 = vmatpush.xpose.msra.mxu0 %v659
        %3810 = vmatpush.xpose.msra.mxu0 %v545
        %3811 = vmatpush.xpose.msra.mxu0 %v431
        %3812 = vmatmul.f32.gmra.mxu0 %v1965
        %v3813 = vpop.f32.mrf.mxu0
        %v3814 = vadd.f32 %v3794, %v3813
        %3815 = vdwg.mxu0
        %3816 = vmatpush.xpose.msra.mxu0 0.0
        %3817 = vmatpush.xpose.msra.mxu0 0.0
        %3818 = vmatpush.xpose.msra.mxu0 0.0
        %3819 = vmatpush.xpose.msra.mxu0 %v1800
        %3820 = vmatpush.xpose.msra.mxu0 %v1686
        %3821 = vmatpush.xpose.msra.mxu0 %v1572
        %3822 = vmatpush.xpose.msra.mxu0 %v1458
        %3823 = vmatpush.xpose.msra.mxu0 %v1344
        %3824 = vmatpush.xpose.msra.mxu0 %v1230
        %3825 = vmatpush.xpose.msra.mxu0 %v1116
        %3826 = vmatpush.xpose.msra.mxu0 %v1002
        %3827 = vmatpush.xpose.msra.mxu0 %v888
        %3828 = vmatpush.xpose.msra.mxu0 %v774
        %3829 = vmatpush.xpose.msra.mxu0 %v660
        %3830 = vmatpush.xpose.msra.mxu0 %v546
        %3831 = vmatpush.xpose.msra.mxu0 %v432
        %3832 = vmatmul.f32.gmra.mxu0 %v1966
        %v3833 = vpop.f32.mrf.mxu0
        %v3834 = vadd.f32 %v3814, %v3833
        %3835 = vdwg.mxu0
        %3836 = vmatpush.xpose.msra.mxu0 0.0
        %3837 = vmatpush.xpose.msra.mxu0 0.0
        %3838 = vmatpush.xpose.msra.mxu0 0.0
        %3839 = vmatpush.xpose.msra.mxu0 %v1801
        %3840 = vmatpush.xpose.msra.mxu0 %v1687
        %3841 = vmatpush.xpose.msra.mxu0 %v1573
        %3842 = vmatpush.xpose.msra.mxu0 %v1459
        %3843 = vmatpush.xpose.msra.mxu0 %v1345
        %3844 = vmatpush.xpose.msra.mxu0 %v1231
        %3845 = vmatpush.xpose.msra.mxu0 %v1117
        %3846 = vmatpush.xpose.msra.mxu0 %v1003
        %3847 = vmatpush.xpose.msra.mxu0 %v889
        %3848 = vmatpush.xpose.msra.mxu0 %v775
        %3849 = vmatpush.xpose.msra.mxu0 %v661
        %3850 = vmatpush.xpose.msra.mxu0 %v547
        %3851 = vmatpush.xpose.msra.mxu0 %v433
        %3852 = vmatmul.f32.gmra.mxu0 %v1967
        %v3853 = vpop.f32.mrf.mxu0
        %v3854 = vadd.f32 %v3834, %v3853
        %3855 = vdwg.mxu0
        %3856 = vmatpush.xpose.msra.mxu0 0.0
        %3857 = vmatpush.xpose.msra.mxu0 0.0
        %3858 = vmatpush.xpose.msra.mxu0 0.0
        %3859 = vmatpush.xpose.msra.mxu0 %v1802
        %3860 = vmatpush.xpose.msra.mxu0 %v1688
        %3861 = vmatpush.xpose.msra.mxu0 %v1574
        %3862 = vmatpush.xpose.msra.mxu0 %v1460
        %3863 = vmatpush.xpose.msra.mxu0 %v1346
        %3864 = vmatpush.xpose.msra.mxu0 %v1232
        %3865 = vmatpush.xpose.msra.mxu0 %v1118
        %3866 = vmatpush.xpose.msra.mxu0 %v1004
        %3867 = vmatpush.xpose.msra.mxu0 %v890
        %3868 = vmatpush.xpose.msra.mxu0 %v776
        %3869 = vmatpush.xpose.msra.mxu0 %v662
        %3870 = vmatpush.xpose.msra.mxu0 %v548
        %3871 = vmatpush.xpose.msra.mxu0 %v434
        %3872 = vmatmul.f32.gmra.mxu0 %v1968
        %v3873 = vpop.f32.mrf.mxu0
        %v3874 = vadd.f32 %v3854, %v3873
        %3875 = vdwg.mxu0
        %3876 = vmatpush.xpose.msra.mxu0 0.0
        %3877 = vmatpush.xpose.msra.mxu0 0.0
        %3878 = vmatpush.xpose.msra.mxu0 0.0
        %3879 = vmatpush.xpose.msra.mxu0 %v1803
        %3880 = vmatpush.xpose.msra.mxu0 %v1689
        %3881 = vmatpush.xpose.msra.mxu0 %v1575
        %3882 = vmatpush.xpose.msra.mxu0 %v1461
        %3883 = vmatpush.xpose.msra.mxu0 %v1347
        %3884 = vmatpush.xpose.msra.mxu0 %v1233
        %3885 = vmatpush.xpose.msra.mxu0 %v1119
        %3886 = vmatpush.xpose.msra.mxu0 %v1005
        %3887 = vmatpush.xpose.msra.mxu0 %v891
        %3888 = vmatpush.xpose.msra.mxu0 %v777
        %3889 = vmatpush.xpose.msra.mxu0 %v663
        %3890 = vmatpush.xpose.msra.mxu0 %v549
        %3891 = vmatpush.xpose.msra.mxu0 %v435
        %3892 = vmatmul.f32.gmra.mxu0 %v1971
        %v3893 = vpop.f32.mrf.mxu0
        %v3894 = vadd.f32 %v3874, %v3893
        %3895 = vdwg.mxu0
        %3896 = vmatpush.xpose.msra.mxu0 0.0
        %3897 = vmatpush.xpose.msra.mxu0 0.0
        %3898 = vmatpush.xpose.msra.mxu0 0.0
        %3899 = vmatpush.xpose.msra.mxu0 %v1804
        %3900 = vmatpush.xpose.msra.mxu0 %v1690
        %3901 = vmatpush.xpose.msra.mxu0 %v1576
        %3902 = vmatpush.xpose.msra.mxu0 %v1462
        %3903 = vmatpush.xpose.msra.mxu0 %v1348
        %3904 = vmatpush.xpose.msra.mxu0 %v1234
        %3905 = vmatpush.xpose.msra.mxu0 %v1120
        %3906 = vmatpush.xpose.msra.mxu0 %v1006
        %3907 = vmatpush.xpose.msra.mxu0 %v892
        %3908 = vmatpush.xpose.msra.mxu0 %v778
        %3909 = vmatpush.xpose.msra.mxu0 %v664
        %3910 = vmatpush.xpose.msra.mxu0 %v550
        %3911 = vmatpush.xpose.msra.mxu0 %v436
        %3912 = vmatmul.f32.gmra.mxu0 %v1972
        %v3913 = vpop.f32.mrf.mxu0
        %v3914 = vadd.f32 %v3894, %v3913
        %3915 = vdwg.mxu0
        %3916 = vmatpush.xpose.msra.mxu0 0.0
        %3917 = vmatpush.xpose.msra.mxu0 0.0
        %3918 = vmatpush.xpose.msra.mxu0 0.0
        %3919 = vmatpush.xpose.msra.mxu0 %v1805
        %3920 = vmatpush.xpose.msra.mxu0 %v1691
        %3921 = vmatpush.xpose.msra.mxu0 %v1577
        %3922 = vmatpush.xpose.msra.mxu0 %v1463
        %3923 = vmatpush.xpose.msra.mxu0 %v1349
        %3924 = vmatpush.xpose.msra.mxu0 %v1235
        %3925 = vmatpush.xpose.msra.mxu0 %v1121
        %3926 = vmatpush.xpose.msra.mxu0 %v1007
        %3927 = vmatpush.xpose.msra.mxu0 %v893
        %3928 = vmatpush.xpose.msra.mxu0 %v779
        %3929 = vmatpush.xpose.msra.mxu0 %v665
        %3930 = vmatpush.xpose.msra.mxu0 %v551
        %3931 = vmatpush.xpose.msra.mxu0 %v437
        %3932 = vmatmul.f32.gmra.mxu0 %v1973
        %v3933 = vpop.f32.mrf.mxu0
        %v3934 = vadd.f32 %v3914, %v3933
        %3935 = vdwg.mxu0
        %3936 = vmatpush.xpose.msra.mxu0 0.0
        %3937 = vmatpush.xpose.msra.mxu0 0.0
        %3938 = vmatpush.xpose.msra.mxu0 0.0
        %3939 = vmatpush.xpose.msra.mxu0 %v1806
        %3940 = vmatpush.xpose.msra.mxu0 %v1692
        %3941 = vmatpush.xpose.msra.mxu0 %v1578
        %3942 = vmatpush.xpose.msra.mxu0 %v1464
        %3943 = vmatpush.xpose.msra.mxu0 %v1350
        %3944 = vmatpush.xpose.msra.mxu0 %v1236
        %3945 = vmatpush.xpose.msra.mxu0 %v1122
        %3946 = vmatpush.xpose.msra.mxu0 %v1008
        %3947 = vmatpush.xpose.msra.mxu0 %v894
        %3948 = vmatpush.xpose.msra.mxu0 %v780
        %3949 = vmatpush.xpose.msra.mxu0 %v666
        %3950 = vmatpush.xpose.msra.mxu0 %v552
        %3951 = vmatpush.xpose.msra.mxu0 %v438
        %3952 = vmatmul.f32.gmra.mxu0 %v1974
        %v3953 = vpop.f32.mrf.mxu0
        %v3954 = vadd.f32 %v3934, %v3953
        %3955 = vdwg.mxu0
        %3956 = vmatpush.xpose.msra.mxu0 0.0
        %3957 = vmatpush.xpose.msra.mxu0 0.0
        %3958 = vmatpush.xpose.msra.mxu0 0.0
        %3959 = vmatpush.xpose.msra.mxu0 %v1807
        %3960 = vmatpush.xpose.msra.mxu0 %v1693
        %3961 = vmatpush.xpose.msra.mxu0 %v1579
        %3962 = vmatpush.xpose.msra.mxu0 %v1465
        %3963 = vmatpush.xpose.msra.mxu0 %v1351
        %3964 = vmatpush.xpose.msra.mxu0 %v1237
        %3965 = vmatpush.xpose.msra.mxu0 %v1123
        %3966 = vmatpush.xpose.msra.mxu0 %v1009
        %3967 = vmatpush.xpose.msra.mxu0 %v895
        %3968 = vmatpush.xpose.msra.mxu0 %v781
        %3969 = vmatpush.xpose.msra.mxu0 %v667
        %3970 = vmatpush.xpose.msra.mxu0 %v553
        %3971 = vmatpush.xpose.msra.mxu0 %v439
        %3972 = vmatmul.f32.gmra.mxu0 %v1975
        %v3973 = vpop.f32.mrf.mxu0
        %v3974 = vadd.f32 %v3954, %v3973
        %3975 = vdwg.mxu0
        %3976 = vmatpush.xpose.msra.mxu0 0.0
        %3977 = vmatpush.xpose.msra.mxu0 0.0
        %3978 = vmatpush.xpose.msra.mxu0 0.0
        %3979 = vmatpush.xpose.msra.mxu0 %v1808
        %3980 = vmatpush.xpose.msra.mxu0 %v1694
        %3981 = vmatpush.xpose.msra.mxu0 %v1580
        %3982 = vmatpush.xpose.msra.mxu0 %v1466
        %3983 = vmatpush.xpose.msra.mxu0 %v1352
        %3984 = vmatpush.xpose.msra.mxu0 %v1238
        %3985 = vmatpush.xpose.msra.mxu0 %v1124
        %3986 = vmatpush.xpose.msra.mxu0 %v1010
        %3987 = vmatpush.xpose.msra.mxu0 %v896
        %3988 = vmatpush.xpose.msra.mxu0 %v782
        %3989 = vmatpush.xpose.msra.mxu0 %v668
        %3990 = vmatpush.xpose.msra.mxu0 %v554
        %3991 = vmatpush.xpose.msra.mxu0 %v440
        %3992 = vmatmul.f32.gmra.mxu0 %v1976
        %v3993 = vpop.f32.mrf.mxu0
        %v3994 = vadd.f32 %v3974, %v3993
        %3995 = vdwg.mxu0
        %3996 = vmatpush.xpose.msra.mxu0 0.0
        %3997 = vmatpush.xpose.msra.mxu0 0.0
        %3998 = vmatpush.xpose.msra.mxu0 0.0
        %3999 = vmatpush.xpose.msra.mxu0 %v1809
        %4000 = vmatpush.xpose.msra.mxu0 %v1695
        %4001 = vmatpush.xpose.msra.mxu0 %v1581
        %4002 = vmatpush.xpose.msra.mxu0 %v1467
        %4003 = vmatpush.xpose.msra.mxu0 %v1353
        %4004 = vmatpush.xpose.msra.mxu0 %v1239
        %4005 = vmatpush.xpose.msra.mxu0 %v1125
        %4006 = vmatpush.xpose.msra.mxu0 %v1011
        %4007 = vmatpush.xpose.msra.mxu0 %v897
        %4008 = vmatpush.xpose.msra.mxu0 %v783
        %4009 = vmatpush.xpose.msra.mxu0 %v669
        %4010 = vmatpush.xpose.msra.mxu0 %v555
        %4011 = vmatpush.xpose.msra.mxu0 %v441
        %4012 = vmatmul.f32.gmra.mxu0 %v1977
        %v4013 = vpop.f32.mrf.mxu0
        %v4014 = vadd.f32 %v3994, %v4013
        %4015 = vdwg.mxu0
        %4016 = vmatpush.xpose.msra.mxu0 0.0
        %4017 = vmatpush.xpose.msra.mxu0 0.0
        %4018 = vmatpush.xpose.msra.mxu0 0.0
        %4019 = vmatpush.xpose.msra.mxu0 %v1810
        %4020 = vmatpush.xpose.msra.mxu0 %v1696
        %4021 = vmatpush.xpose.msra.mxu0 %v1582
        %4022 = vmatpush.xpose.msra.mxu0 %v1468
        %4023 = vmatpush.xpose.msra.mxu0 %v1354
        %4024 = vmatpush.xpose.msra.mxu0 %v1240
        %4025 = vmatpush.xpose.msra.mxu0 %v1126
        %4026 = vmatpush.xpose.msra.mxu0 %v1012
        %4027 = vmatpush.xpose.msra.mxu0 %v898
        %4028 = vmatpush.xpose.msra.mxu0 %v784
        %4029 = vmatpush.xpose.msra.mxu0 %v670
        %4030 = vmatpush.xpose.msra.mxu0 %v556
        %4031 = vmatpush.xpose.msra.mxu0 %v442
        %4032 = vmatmul.f32.gmra.mxu0 %v1978
        %v4033 = vpop.f32.mrf.mxu0
        %v4034 = vadd.f32 %v4014, %v4033
        %4035 = vdwg.mxu0
        %4036 = vmatpush.xpose.msra.mxu0 0.0
        %4037 = vmatpush.xpose.msra.mxu0 0.0
        %4038 = vmatpush.xpose.msra.mxu0 0.0
        %4039 = vmatpush.xpose.msra.mxu0 %v1811
        %4040 = vmatpush.xpose.msra.mxu0 %v1697
        %4041 = vmatpush.xpose.msra.mxu0 %v1583
        %4042 = vmatpush.xpose.msra.mxu0 %v1469
        %4043 = vmatpush.xpose.msra.mxu0 %v1355
        %4044 = vmatpush.xpose.msra.mxu0 %v1241
        %4045 = vmatpush.xpose.msra.mxu0 %v1127
        %4046 = vmatpush.xpose.msra.mxu0 %v1013
        %4047 = vmatpush.xpose.msra.mxu0 %v899
        %4048 = vmatpush.xpose.msra.mxu0 %v785
        %4049 = vmatpush.xpose.msra.mxu0 %v671
        %4050 = vmatpush.xpose.msra.mxu0 %v557
        %4051 = vmatpush.xpose.msra.mxu0 %v443
        %4052 = vmatmul.f32.gmra.mxu0 %v1981
        %v4053 = vpop.f32.mrf.mxu0
        %v4054 = vadd.f32 %v4034, %v4053
        %4055 = vdwg.mxu0
        %4056 = vmatpush.xpose.msra.mxu0 0.0
        %4057 = vmatpush.xpose.msra.mxu0 0.0
        %4058 = vmatpush.xpose.msra.mxu0 0.0
        %4059 = vmatpush.xpose.msra.mxu0 %v1812
        %4060 = vmatpush.xpose.msra.mxu0 %v1698
        %4061 = vmatpush.xpose.msra.mxu0 %v1584
        %4062 = vmatpush.xpose.msra.mxu0 %v1470
        %4063 = vmatpush.xpose.msra.mxu0 %v1356
        %4064 = vmatpush.xpose.msra.mxu0 %v1242
        %4065 = vmatpush.xpose.msra.mxu0 %v1128
        %4066 = vmatpush.xpose.msra.mxu0 %v1014
        %4067 = vmatpush.xpose.msra.mxu0 %v900
        %4068 = vmatpush.xpose.msra.mxu0 %v786
        %4069 = vmatpush.xpose.msra.mxu0 %v672
        %4070 = vmatpush.xpose.msra.mxu0 %v558
        %4071 = vmatpush.xpose.msra.mxu0 %v444
        %4072 = vmatmul.f32.gmra.mxu0 %v1982
        %v4073 = vpop.f32.mrf.mxu0
        %v4074 = vadd.f32 %v4054, %v4073
        %4075 = vdwg.mxu0
        %4076 = vmatpush.xpose.msra.mxu0 0.0
        %4077 = vmatpush.xpose.msra.mxu0 0.0
        %4078 = vmatpush.xpose.msra.mxu0 0.0
        %4079 = vmatpush.xpose.msra.mxu0 %v1813
        %4080 = vmatpush.xpose.msra.mxu0 %v1699
        %4081 = vmatpush.xpose.msra.mxu0 %v1585
        %4082 = vmatpush.xpose.msra.mxu0 %v1471
        %4083 = vmatpush.xpose.msra.mxu0 %v1357
        %4084 = vmatpush.xpose.msra.mxu0 %v1243
        %4085 = vmatpush.xpose.msra.mxu0 %v1129
        %4086 = vmatpush.xpose.msra.mxu0 %v1015
        %4087 = vmatpush.xpose.msra.mxu0 %v901
        %4088 = vmatpush.xpose.msra.mxu0 %v787
        %4089 = vmatpush.xpose.msra.mxu0 %v673
        %4090 = vmatpush.xpose.msra.mxu0 %v559
        %4091 = vmatpush.xpose.msra.mxu0 %v445
        %4092 = vmatmul.f32.gmra.mxu0 %v1983
        %v4093 = vpop.f32.mrf.mxu0
        %v4094 = vadd.f32 %v4074, %v4093
        %4095 = vdwg.mxu0
        %4096 = vmatpush.xpose.msra.mxu0 0.0
        %4097 = vmatpush.xpose.msra.mxu0 0.0
        %4098 = vmatpush.xpose.msra.mxu0 0.0
        %4099 = vmatpush.xpose.msra.mxu0 %v1814
        %4100 = vmatpush.xpose.msra.mxu0 %v1700
        %4101 = vmatpush.xpose.msra.mxu0 %v1586
        %4102 = vmatpush.xpose.msra.mxu0 %v1472
        %4103 = vmatpush.xpose.msra.mxu0 %v1358
        %4104 = vmatpush.xpose.msra.mxu0 %v1244
        %4105 = vmatpush.xpose.msra.mxu0 %v1130
        %4106 = vmatpush.xpose.msra.mxu0 %v1016
        %4107 = vmatpush.xpose.msra.mxu0 %v902
        %4108 = vmatpush.xpose.msra.mxu0 %v788
        %4109 = vmatpush.xpose.msra.mxu0 %v674
        %4110 = vmatpush.xpose.msra.mxu0 %v560
        %4111 = vmatpush.xpose.msra.mxu0 %v446
        %4112 = vmatmul.f32.gmra.mxu0 %v1984
        %v4113 = vpop.f32.mrf.mxu0
        %v4114 = vadd.f32 %v4094, %v4113
        %4115 = vdwg.mxu0
        %4116 = vmatpush.xpose.msra.mxu0 0.0
        %4117 = vmatpush.xpose.msra.mxu0 0.0
        %4118 = vmatpush.xpose.msra.mxu0 0.0
        %4119 = vmatpush.xpose.msra.mxu0 %v1815
        %4120 = vmatpush.xpose.msra.mxu0 %v1701
        %4121 = vmatpush.xpose.msra.mxu0 %v1587
        %4122 = vmatpush.xpose.msra.mxu0 %v1473
        %4123 = vmatpush.xpose.msra.mxu0 %v1359
        %4124 = vmatpush.xpose.msra.mxu0 %v1245
        %4125 = vmatpush.xpose.msra.mxu0 %v1131
        %4126 = vmatpush.xpose.msra.mxu0 %v1017
        %4127 = vmatpush.xpose.msra.mxu0 %v903
        %4128 = vmatpush.xpose.msra.mxu0 %v789
        %4129 = vmatpush.xpose.msra.mxu0 %v675
        %4130 = vmatpush.xpose.msra.mxu0 %v561
        %4131 = vmatpush.xpose.msra.mxu0 %v447
        %4132 = vmatmul.f32.gmra.mxu0 %v1985
        %v4133 = vpop.f32.mrf.mxu0
        %v4134 = vadd.f32 %v4114, %v4133
        %4135 = vdwg.mxu0
        %4136 = vmatpush.xpose.msra.mxu0 0.0
        %4137 = vmatpush.xpose.msra.mxu0 0.0
        %4138 = vmatpush.xpose.msra.mxu0 0.0
        %4139 = vmatpush.xpose.msra.mxu0 %v1816
        %4140 = vmatpush.xpose.msra.mxu0 %v1702
        %4141 = vmatpush.xpose.msra.mxu0 %v1588
        %4142 = vmatpush.xpose.msra.mxu0 %v1474
        %4143 = vmatpush.xpose.msra.mxu0 %v1360
        %4144 = vmatpush.xpose.msra.mxu0 %v1246
        %4145 = vmatpush.xpose.msra.mxu0 %v1132
        %4146 = vmatpush.xpose.msra.mxu0 %v1018
        %4147 = vmatpush.xpose.msra.mxu0 %v904
        %4148 = vmatpush.xpose.msra.mxu0 %v790
        %4149 = vmatpush.xpose.msra.mxu0 %v676
        %4150 = vmatpush.xpose.msra.mxu0 %v562
        %4151 = vmatpush.xpose.msra.mxu0 %v448
        %4152 = vmatmul.f32.gmra.mxu0 %v1986
        %v4153 = vpop.f32.mrf.mxu0
        %v4154 = vadd.f32 %v4134, %v4153
        %4155 = vdwg.mxu0
        %4156 = vmatpush.xpose.msra.mxu0 0.0
        %4157 = vmatpush.xpose.msra.mxu0 0.0
        %4158 = vmatpush.xpose.msra.mxu0 0.0
        %4159 = vmatpush.xpose.msra.mxu0 %v1817
        %4160 = vmatpush.xpose.msra.mxu0 %v1703
        %4161 = vmatpush.xpose.msra.mxu0 %v1589
        %4162 = vmatpush.xpose.msra.mxu0 %v1475
        %4163 = vmatpush.xpose.msra.mxu0 %v1361
        %4164 = vmatpush.xpose.msra.mxu0 %v1247
        %4165 = vmatpush.xpose.msra.mxu0 %v1133
        %4166 = vmatpush.xpose.msra.mxu0 %v1019
        %4167 = vmatpush.xpose.msra.mxu0 %v905
        %4168 = vmatpush.xpose.msra.mxu0 %v791
        %4169 = vmatpush.xpose.msra.mxu0 %v677
        %4170 = vmatpush.xpose.msra.mxu0 %v563
        %4171 = vmatpush.xpose.msra.mxu0 %v449
        %4172 = vmatmul.f32.gmra.mxu0 %v1987
        %v4173 = vpop.f32.mrf.mxu0
        %v4174 = vadd.f32 %v4154, %v4173
        %4175 = vdwg.mxu0
        %4176 = vmatpush.xpose.msra.mxu0 0.0
        %4177 = vmatpush.xpose.msra.mxu0 0.0
        %4178 = vmatpush.xpose.msra.mxu0 0.0
        %4179 = vmatpush.xpose.msra.mxu0 %v1818
        %4180 = vmatpush.xpose.msra.mxu0 %v1704
        %4181 = vmatpush.xpose.msra.mxu0 %v1590
        %4182 = vmatpush.xpose.msra.mxu0 %v1476
        %4183 = vmatpush.xpose.msra.mxu0 %v1362
        %4184 = vmatpush.xpose.msra.mxu0 %v1248
        %4185 = vmatpush.xpose.msra.mxu0 %v1134
        %4186 = vmatpush.xpose.msra.mxu0 %v1020
        %4187 = vmatpush.xpose.msra.mxu0 %v906
        %4188 = vmatpush.xpose.msra.mxu0 %v792
        %4189 = vmatpush.xpose.msra.mxu0 %v678
        %4190 = vmatpush.xpose.msra.mxu0 %v564
        %4191 = vmatpush.xpose.msra.mxu0 %v450
        %4192 = vmatmul.f32.gmra.mxu0 %v1988
        %v4193 = vpop.f32.mrf.mxu0
        %v4194 = vadd.f32 %v4174, %v4193
        %4195 = vdwg.mxu0
        %4196 = vmatpush.xpose.msra.mxu0 0.0
        %4197 = vmatpush.xpose.msra.mxu0 0.0
        %4198 = vmatpush.xpose.msra.mxu0 0.0
        %4199 = vmatpush.xpose.msra.mxu0 %v1819
        %4200 = vmatpush.xpose.msra.mxu0 %v1705
        %4201 = vmatpush.xpose.msra.mxu0 %v1591
        %4202 = vmatpush.xpose.msra.mxu0 %v1477
        %4203 = vmatpush.xpose.msra.mxu0 %v1363
        %4204 = vmatpush.xpose.msra.mxu0 %v1249
        %4205 = vmatpush.xpose.msra.mxu0 %v1135
        %4206 = vmatpush.xpose.msra.mxu0 %v1021
        %4207 = vmatpush.xpose.msra.mxu0 %v907
        %4208 = vmatpush.xpose.msra.mxu0 %v793
        %4209 = vmatpush.xpose.msra.mxu0 %v679
        %4210 = vmatpush.xpose.msra.mxu0 %v565
        %4211 = vmatpush.xpose.msra.mxu0 %v451
        %4212 = vmatmul.f32.gmra.mxu0 %v1991
        %v4213 = vpop.f32.mrf.mxu0
        %v4214 = vadd.f32 %v4194, %v4213
        %4215 = vdwg.mxu0
        %4216 = vmatpush.xpose.msra.mxu0 0.0
        %4217 = vmatpush.xpose.msra.mxu0 0.0
        %4218 = vmatpush.xpose.msra.mxu0 0.0
        %4219 = vmatpush.xpose.msra.mxu0 %v1820
        %4220 = vmatpush.xpose.msra.mxu0 %v1706
        %4221 = vmatpush.xpose.msra.mxu0 %v1592
        %4222 = vmatpush.xpose.msra.mxu0 %v1478
        %4223 = vmatpush.xpose.msra.mxu0 %v1364
        %4224 = vmatpush.xpose.msra.mxu0 %v1250
        %4225 = vmatpush.xpose.msra.mxu0 %v1136
        %4226 = vmatpush.xpose.msra.mxu0 %v1022
        %4227 = vmatpush.xpose.msra.mxu0 %v908
        %4228 = vmatpush.xpose.msra.mxu0 %v794
        %4229 = vmatpush.xpose.msra.mxu0 %v680
        %4230 = vmatpush.xpose.msra.mxu0 %v566
        %4231 = vmatpush.xpose.msra.mxu0 %v452
        %4232 = vmatmul.f32.gmra.mxu0 %v1992
        %v4233 = vpop.f32.mrf.mxu0
        %v4234 = vadd.f32 %v4214, %v4233
        %4235 = vdwg.mxu0
        %4236 = vmatpush.xpose.msra.mxu0 0.0
        %4237 = vmatpush.xpose.msra.mxu0 0.0
        %4238 = vmatpush.xpose.msra.mxu0 0.0
        %4239 = vmatpush.xpose.msra.mxu0 %v1821
        %4240 = vmatpush.xpose.msra.mxu0 %v1707
        %4241 = vmatpush.xpose.msra.mxu0 %v1593
        %4242 = vmatpush.xpose.msra.mxu0 %v1479
        %4243 = vmatpush.xpose.msra.mxu0 %v1365
        %4244 = vmatpush.xpose.msra.mxu0 %v1251
        %4245 = vmatpush.xpose.msra.mxu0 %v1137
        %4246 = vmatpush.xpose.msra.mxu0 %v1023
        %4247 = vmatpush.xpose.msra.mxu0 %v909
        %4248 = vmatpush.xpose.msra.mxu0 %v795
        %4249 = vmatpush.xpose.msra.mxu0 %v681
        %4250 = vmatpush.xpose.msra.mxu0 %v567
        %4251 = vmatpush.xpose.msra.mxu0 %v453
        %4252 = vmatmul.f32.gmra.mxu0 %v1993
        %v4253 = vpop.f32.mrf.mxu0
        %v4254 = vadd.f32 %v4234, %v4253
        %4255 = vdwg.mxu0
        %4256 = vmatpush.xpose.msra.mxu0 0.0
        %4257 = vmatpush.xpose.msra.mxu0 0.0
        %4258 = vmatpush.xpose.msra.mxu0 0.0
        %4259 = vmatpush.xpose.msra.mxu0 %v1822
        %4260 = vmatpush.xpose.msra.mxu0 %v1708
        %4261 = vmatpush.xpose.msra.mxu0 %v1594
        %4262 = vmatpush.xpose.msra.mxu0 %v1480
        %4263 = vmatpush.xpose.msra.mxu0 %v1366
        %4264 = vmatpush.xpose.msra.mxu0 %v1252
        %4265 = vmatpush.xpose.msra.mxu0 %v1138
        %4266 = vmatpush.xpose.msra.mxu0 %v1024
        %4267 = vmatpush.xpose.msra.mxu0 %v910
        %4268 = vmatpush.xpose.msra.mxu0 %v796
        %4269 = vmatpush.xpose.msra.mxu0 %v682
        %4270 = vmatpush.xpose.msra.mxu0 %v568
        %4271 = vmatpush.xpose.msra.mxu0 %v454
        %4272 = vmatmul.f32.gmra.mxu0 %v1994
        %v4273 = vpop.f32.mrf.mxu0
        %v4274 = vadd.f32 %v4254, %v4273
        %4275 = vdwg.mxu0
        %4276 = vmatpush.xpose.msra.mxu0 0.0
        %4277 = vmatpush.xpose.msra.mxu0 0.0
        %4278 = vmatpush.xpose.msra.mxu0 0.0
        %4279 = vmatpush.xpose.msra.mxu0 %v1823
        %4280 = vmatpush.xpose.msra.mxu0 %v1709
        %4281 = vmatpush.xpose.msra.mxu0 %v1595
        %4282 = vmatpush.xpose.msra.mxu0 %v1481
        %4283 = vmatpush.xpose.msra.mxu0 %v1367
        %4284 = vmatpush.xpose.msra.mxu0 %v1253
        %4285 = vmatpush.xpose.msra.mxu0 %v1139
        %4286 = vmatpush.xpose.msra.mxu0 %v1025
        %4287 = vmatpush.xpose.msra.mxu0 %v911
        %4288 = vmatpush.xpose.msra.mxu0 %v797
        %4289 = vmatpush.xpose.msra.mxu0 %v683
        %4290 = vmatpush.xpose.msra.mxu0 %v569
        %4291 = vmatpush.xpose.msra.mxu0 %v455
        %4292 = vmatmul.f32.gmra.mxu0 %v1995
        %v4293 = vpop.f32.mrf.mxu0
        %v4294 = vadd.f32 %v4274, %v4293
        %4295 = vdwg.mxu0
        %4296 = vmatpush.xpose.msra.mxu0 0.0
        %4297 = vmatpush.xpose.msra.mxu0 0.0
        %4298 = vmatpush.xpose.msra.mxu0 0.0
        %4299 = vmatpush.xpose.msra.mxu0 %v1824
        %4300 = vmatpush.xpose.msra.mxu0 %v1710
        %4301 = vmatpush.xpose.msra.mxu0 %v1596
        %4302 = vmatpush.xpose.msra.mxu0 %v1482
        %4303 = vmatpush.xpose.msra.mxu0 %v1368
        %4304 = vmatpush.xpose.msra.mxu0 %v1254
        %4305 = vmatpush.xpose.msra.mxu0 %v1140
        %4306 = vmatpush.xpose.msra.mxu0 %v1026
        %4307 = vmatpush.xpose.msra.mxu0 %v912
        %4308 = vmatpush.xpose.msra.mxu0 %v798
        %4309 = vmatpush.xpose.msra.mxu0 %v684
        %4310 = vmatpush.xpose.msra.mxu0 %v570
        %4311 = vmatpush.xpose.msra.mxu0 %v456
        %4312 = vmatmul.f32.gmra.mxu0 %v1996
        %v4313 = vpop.f32.mrf.mxu0
        %v4314 = vadd.f32 %v4294, %v4313
        %4315 = vdwg.mxu0
        %4316 = vmatpush.xpose.msra.mxu0 0.0
        %4317 = vmatpush.xpose.msra.mxu0 0.0
        %4318 = vmatpush.xpose.msra.mxu0 0.0
        %4319 = vmatpush.xpose.msra.mxu0 %v1825
        %4320 = vmatpush.xpose.msra.mxu0 %v1711
        %4321 = vmatpush.xpose.msra.mxu0 %v1597
        %4322 = vmatpush.xpose.msra.mxu0 %v1483
        %4323 = vmatpush.xpose.msra.mxu0 %v1369
        %4324 = vmatpush.xpose.msra.mxu0 %v1255
        %4325 = vmatpush.xpose.msra.mxu0 %v1141
        %4326 = vmatpush.xpose.msra.mxu0 %v1027
        %4327 = vmatpush.xpose.msra.mxu0 %v913
        %4328 = vmatpush.xpose.msra.mxu0 %v799
        %4329 = vmatpush.xpose.msra.mxu0 %v685
        %4330 = vmatpush.xpose.msra.mxu0 %v571
        %4331 = vmatpush.xpose.msra.mxu0 %v457
        %4332 = vmatmul.f32.gmra.mxu0 %v1997
        %v4333 = vpop.f32.mrf.mxu0
        %v4334 = vadd.f32 %v4314, %v4333
        %4335 = vdwg.mxu0
        %4336 = vmatpush.xpose.msra.mxu0 0.0
        %4337 = vmatpush.xpose.msra.mxu0 0.0
        %4338 = vmatpush.xpose.msra.mxu0 0.0
        %4339 = vmatpush.xpose.msra.mxu0 %v1826
        %4340 = vmatpush.xpose.msra.mxu0 %v1712
        %4341 = vmatpush.xpose.msra.mxu0 %v1598
        %4342 = vmatpush.xpose.msra.mxu0 %v1484
        %4343 = vmatpush.xpose.msra.mxu0 %v1370
        %4344 = vmatpush.xpose.msra.mxu0 %v1256
        %4345 = vmatpush.xpose.msra.mxu0 %v1142
        %4346 = vmatpush.xpose.msra.mxu0 %v1028
        %4347 = vmatpush.xpose.msra.mxu0 %v914
        %4348 = vmatpush.xpose.msra.mxu0 %v800
        %4349 = vmatpush.xpose.msra.mxu0 %v686
        %4350 = vmatpush.xpose.msra.mxu0 %v572
        %4351 = vmatpush.xpose.msra.mxu0 %v458
        %4352 = vmatmul.f32.gmra.mxu0 %v1998
        %v4353 = vpop.f32.mrf.mxu0
        %v4354 = vadd.f32 %v4334, %v4353
        %4355 = vdwg.mxu0
        %4356 = vmatpush.xpose.msra.mxu0 0.0
        %4357 = vmatpush.xpose.msra.mxu0 0.0
        %4358 = vmatpush.xpose.msra.mxu0 0.0
        %4359 = vmatpush.xpose.msra.mxu0 %v1827
        %4360 = vmatpush.xpose.msra.mxu0 %v1713
        %4361 = vmatpush.xpose.msra.mxu0 %v1599
        %4362 = vmatpush.xpose.msra.mxu0 %v1485
        %4363 = vmatpush.xpose.msra.mxu0 %v1371
        %4364 = vmatpush.xpose.msra.mxu0 %v1257
        %4365 = vmatpush.xpose.msra.mxu0 %v1143
        %4366 = vmatpush.xpose.msra.mxu0 %v1029
        %4367 = vmatpush.xpose.msra.mxu0 %v915
        %4368 = vmatpush.xpose.msra.mxu0 %v801
        %4369 = vmatpush.xpose.msra.mxu0 %v687
        %4370 = vmatpush.xpose.msra.mxu0 %v573
        %4371 = vmatpush.xpose.msra.mxu0 %v459
        %4372 = vmatmul.f32.gmra.mxu0 %v2000
        %v4373 = vpop.f32.mrf.mxu0
        %v4374 = vadd.f32 %v4354, %v4373
        %4375 = vdwg.mxu0
        %4376 = vmatpush.xpose.msra.mxu0 0.0
        %4377 = vmatpush.xpose.msra.mxu0 0.0
        %4378 = vmatpush.xpose.msra.mxu0 0.0
        %4379 = vmatpush.xpose.msra.mxu0 %v1828
        %4380 = vmatpush.xpose.msra.mxu0 %v1714
        %4381 = vmatpush.xpose.msra.mxu0 %v1600
        %4382 = vmatpush.xpose.msra.mxu0 %v1486
        %4383 = vmatpush.xpose.msra.mxu0 %v1372
        %4384 = vmatpush.xpose.msra.mxu0 %v1258
        %4385 = vmatpush.xpose.msra.mxu0 %v1144
        %4386 = vmatpush.xpose.msra.mxu0 %v1030
        %4387 = vmatpush.xpose.msra.mxu0 %v916
        %4388 = vmatpush.xpose.msra.mxu0 %v802
        %4389 = vmatpush.xpose.msra.mxu0 %v688
        %4390 = vmatpush.xpose.msra.mxu0 %v574
        %4391 = vmatpush.xpose.msra.mxu0 %v460
        %4392 = vmatmul.f32.gmra.mxu0 %v2001
        %v4393 = vpop.f32.mrf.mxu0
        %v4394 = vadd.f32 %v4374, %v4393
        %4395 = vdwg.mxu0
        %v4396 = vadd.f32 %v317, %v4394
        %vm4397 = vcmask 812032
        %4398 = vst.msk [vmem:[#allocation2] sm:$0x3] %vm4397, %v4396
        %p4399 = scmp.eq.s32.totalorder %s23, 7
        // Predicated region
        $region57: #{forward.1} parent=47 // pred_check
          %p4400 = pneg %p4399
        $region58: #{forward.1} parent=47 // pred_check_branch
          %4402 = sbr.rel (%p4400) target = $region60
        $region59: #{forward.1} parent=47 // pred_region
          %v4403 = vld [vmem:[#allocation2] sm:$0x3]
          %v4404 = vld [vmem:[%s2] sm:$0x1]
          %v4406 = vperm.slane %v4404, 0
          %v4408 = vadd.f32 %v4403, %v4406
          %vm4409 = vcmp.ge.f32.partialorder %v4408, 0.0
          %v4410 = vmul.f32 %v4408, 0.2
          %v4411 = vsel %vm4409, %v4408, %v4410
          %v4412 = vsel %vm4397, %v4411, 0.0
          %4413 = vadd.xlane.f32.xlu0 %v4412
          %v4414 = vpop.xlane.xlu0 %4413
          %v4415 = vrcp.pop 100.0
          %v4416 = vmul.f32 100.0, %v4415
          %v4417 = vsub.f32 1.0, %v4416
          %v4418 = vmul.f32 %v4415, %v4417
          %v4419 = vadd.f32 %v4415, %v4418
          %vm4420 = vweird.f32 %v4415
          %v4421 = vsel %vm4420, %v4415, %v4419
          %v4422 = vmul.f32 %v4414, %v4421
          %v4423 = vsub.f32 %v4411, %v4422
          %v4424 = vmul.f32 %v4423, %v4423
          %v4425 = vsel %vm4397, %v4424, 0.0
          %4426 = vadd.xlane.f32.xlu0 %v4425
          %v4427 = vpop.xlane.xlu0 %4426
          %v4428 = vmul.f32 %v4427, %v4421
          %v4429 = vadd.f32 %v4428, 1e-05
          %v4430 = vrsqrt.pop %v4429
          %v4431 = vmul.f32 %v4430, %v4429
          %v4432 = vmul.f32 %v4431, %v4430
          %v4433 = vmul.f32 0.5, %v4432
          %v4434 = vsub.f32 1.5, %v4433
          %v4435 = vmul.f32 %v4430, %v4434
          %vm4436 = vweird.f32 %v4429
          %vm4437 = vweird.f32 %v4430
          %vm4438 = vmor %vm4436, %vm4437
          %v4439 = vsel %vm4438, %v4430, %v4435
          %v4440 = vmul.f32 %v4423, %v4439
          %v4441 = vld [vmem:[%s3] sm:$0x1]
          %v4443 = vperm.slane %v4441, 0
          %v4445 = vmul.f32 %v4440, %v4443
          %v4446 = vld [vmem:[%s4] sm:$0x1]
          %v4448 = vperm.slane %v4446, 0
          %v4450 = vadd.f32 %v4445, %v4448
          %v4451 = vld [vmem:[%s5] sm:$0x1]
          %v4453 = vperm.slane %v4451, 0
          %v4455 = vmul.f32 %v4450, %v4453
          %v4456 = vsel %vm4397, %v4455, 0.0
          %4457 = vadd.xlane.f32.xlu0 %v4456
          %v4458 = vpop.xlane.xlu0 %4457
          %v4459 = vld [vmem:[#allocation3] sm:$0x1]
          %v4461 = vperm.slane %v4459, 0
          %v4463 = vadd.f32 %v4458, %v4461
          %v4464 = vxor.u32 %v4463, 2147483648
          %v4465 = vmul.f32 %v4464, 1.442695
          %v4466 = vpow.pop %v4465
          %v4467 = vadd.f32 %v4466, 1.0
          %v4468 = vrcp.pop %v4467
          %v4469 = vmul.f32 %v4467, %v4468
          %v4470 = vsub.f32 1.0, %v4469
          %v4471 = vmul.f32 %v4468, %v4470
          %v4472 = vadd.f32 %v4468, %v4471
          %vm4473 = vweird.f32 %v4467
          %vm4474 = vweird.f32 %v4468
          %vm4475 = vmor %vm4473, %vm4474
          %v4476 = vsel %vm4475, %v4468, %v4472
          %v4477 = vand.u32 2147483647, %v4467
          %vm4478 = vcmp.eq.f32.partialorder %v4477, 8.507059e+37
          %v4479 = vand.u32 %v4467, 2147483648
          %v4480 = vor.u32 1.1754944e-38, %v4479
          %v4481 = vsel %vm4478, %v4480, %v4476
          %v4482 = vmul.f32 1.0, %v4481
          %vm4483 = vcmask 1024
          %4484 = vst.msk [vmem:[%s7] sm:$0x3] %vm4483, %v4482
        $region60: #{forward.1} parent=47 // pred_fallthru
          _
        // Predicated region
        $region61: #{forward.1} parent=47 // pred_check
          %p4485 = pneg %p193
        $region62: #{forward.1} parent=47 // pred_check_branch
          %4487 = sbr.rel (%p4485) target = $region64
        $region63: #{forward.1} parent=47 // pred_region
          _
        $region64: #{forward.1} parent=47 // pred_fallthru
          _
        // Predicated region
        $region65: #{forward.1} parent=47 // pred_check
          %p4488 = pneg %p193
        $region66: #{forward.1} parent=47 // pred_check_branch
          %4490 = sbr.rel (%p4488) target = $region68
        $region67: #{forward.1} parent=47 // pred_region
          _
        $region68: #{forward.1} parent=47 // pred_fallthru
          _
      $region48: #{forward.1} parent=5 // pred_fallthru
        _
      %p4491 = scmp.le.s32.totalorder 2, %s18
      // Predicated region
      $region69: #{forward.1} parent=5 // pred_check
        %p4492 = pneg %p4491
      $region70: #{forward.1} parent=5 // pred_check_branch
        %4494 = sbr.rel (%p4492) target = $region72
      $region71: #{forward.1} parent=5 // pred_region
        %s4495 = ssub.s32 %s18, 2
      $region72: #{forward.1} parent=5 // pred_fallthru
        _
    $region6: #{forward.1} parent=1 // loop_footer
      %s22 = sadd.s32 1, %s18
    $region7: #{forward.1} parent=1 // loop_footer_branch
      %17 = sbr.rel target = $region3
    $region8: #{forward.1} parent=1 // loop_exit
      _
    %4496 = vsyncpa [#allocation5], 1
    %s4497 = scalar_lea.sflag [#allocation5], 1
    %4498 = vsyncpa %s4497, 1

</llo_original>
